<compile_context>
chip_gen: v6e
topology: v6e:2x2x1
jax: 0.10.0
libtpu: 0.0.40
codegen_flags: <defaults>
</compile_context>

<pallas_src>
import math
import jax
import jax.numpy as jnp
from jax import lax
from jax.experimental import pallas as pl
from jax.experimental.pallas import tpu as pltpu


# ---------------------------------------------------------------------------
# Kernel
# ---------------------------------------------------------------------------
def bigru_fc_kernel(x_ref, wi_ref, bi_ref, wh_ref, bhn_ref, wfc_ref, bfc_ref,
                    out_ref, xw_scr):
    """Bidirectional single-layer GRU recurrence + final Linear.

    x_ref   : (T, B, Ep)      embedded sequence, time-major, zero-padded
    wi_ref  : (2, Ep, 3*Hp)   input-gate weights  [Wir|Wiz|Win] per direction
    bi_ref  : (2, 1, 3*Hp)    [bir+bhr | biz+bhz | bin] per direction
    wh_ref  : (2, Hp, 3*Hp)   hidden-gate weights [Whr|Whz|Whn] per direction
    bhn_ref : (2, 1, Hp)      hidden bias of the n gate (stays inside r*(...))
    wfc_ref : (2, Hp, Op)     fc weight split: [0] -> h_fwd, [1] -> h_bwd
    bfc_ref : (1, Op)
    out_ref : (B, Op)
    xw_scr  : (2, T, B, 3*Hp) precomputed input-gate activations
    """
    T, B, Ep = x_ref.shape
    Hp = wh_ref.shape[1]
    H3 = wh_ref.shape[2]          # 3 * Hp

    # ---- (1) Hoisted input projection: two big MXU matmuls, off the serial
    #          chain.  Input (and pre-summed r/z hidden) biases folded in.
    x2 = x_ref[...].reshape(T * B, Ep)
    for d in range(2):                                   # static unrolled
        xw = jnp.dot(x2, wi_ref[d], preferred_element_type=jnp.float32)
        xw = xw + bi_ref[d]
        xw_scr[d] = xw.reshape(T, B, H3)

    xw_f = xw_scr.at[0]            # ref-views, zero-cost
    xw_b = xw_scr.at[1]

    # ---- (2) Hoist bias broadcasts (JAX does not CSE broadcast_in_dim).
    bhn_f = jnp.broadcast_to(bhn_ref[0], (B, Hp))
    bhn_b = jnp.broadcast_to(bhn_ref[1], (B, Hp))

    def cell(h, gx, wh, bhn):
        # Fused hidden matmul: one (B,Hp)@(Hp,3Hp) instead of three.
        gh = jnp.dot(h, wh, preferred_element_type=jnp.float32)    # (B, 3Hp)
        r = jax.nn.sigmoid(gx[:, :Hp] + gh[:, :Hp])
        z = jax.nn.sigmoid(gx[:, Hp:2 * Hp] + gh[:, Hp:2 * Hp])
        n = jnp.tanh(gx[:, 2 * Hp:] + r * (gh[:, 2 * Hp:] + bhn))
        return (1.0 - z) * n + z * h

    # ---- (3) Interleaved fwd/bwd recurrence (independent chains -> 2x ILP),
    #          unrolled so adjacent iterations co-issue on MXU / EUP / VPU.
    def body(t, carry):
        h_f, h_b = carry
        h_f = cell(h_f, xw_f[t], wh_ref[0], bhn_f)
        h_b = cell(h_b, xw_b[T - 1 - t], wh_ref[1], bhn_b)
        return (h_f, h_b)

    h0 = jnp.zeros((B, Hp), jnp.float32)
    h_f, h_b = lax.fori_loop(0, T, body, (h0, h0), unroll=True)

    # ---- (4) Final Linear; lane-dense (Op = multiple of 128) output store.
    out_ref[...] = (jnp.dot(h_f, wfc_ref[0], preferred_element_type=jnp.float32)
                    + jnp.dot(h_b, wfc_ref[1], preferred_element_type=jnp.float32)
                    + bfc_ref[...]).astype(out_ref.dtype)


# ---------------------------------------------------------------------------
# Wrapper / weight plumbing
# ---------------------------------------------------------------------------
def _round_up(n, m):
    return ((n + m - 1) // m) * m


def _pad2(a, r, c):
    return jnp.pad(a, ((0, r - a.shape[0]), (0, c - a.shape[1])))


def _pad1(a, n):
    return jnp.pad(a, (0, n - a.shape[0]))


def _dir_params(w_ih, w_hh, b_ih, b_hh, H, Hp, Ep):
    """PyTorch gate order is [r, z, n] stacked along dim 0 of (3H, ...)."""
    wir, wiz, win = w_ih[:H].T, w_ih[H:2 * H].T, w_ih[2 * H:].T   # (E, H)
    whr, whz, whn = w_hh[:H].T, w_hh[H:2 * H].T, w_hh[2 * H:].T   # (H, H)
    wi = jnp.concatenate(
        [_pad2(wir, Ep, Hp), _pad2(wiz, Ep, Hp), _pad2(win, Ep, Hp)], axis=1)
    wh = jnp.concatenate(
        [_pad2(whr, Hp, Hp), _pad2(whz, Hp, Hp), _pad2(whn, Hp, Hp)], axis=1)
    br = _pad1(b_ih[:H] + b_hh[:H], Hp)
    bz = _pad1(b_ih[H:2 * H] + b_hh[H:2 * H], Hp)
    bn = _pad1(b_ih[2 * H:], Hp)
    bi = jnp.concatenate([br, bz, bn]).reshape(1, 3 * Hp)
    bhn = _pad1(b_hh[2 * H:], Hp).reshape(1, Hp)
    return wi, wh, bi, bhn


def gru_model_forward(token_ids, p):
    """Pallas implementation of GRUModel.forward."""
    H = p["hidden_size"]
    O = p["b_fc"].shape[0]

    # TODO(synk): embedding row-gather left to XLA; a manual DMA gather kernel
    # is not worthwhile at these sizes.
    emb = p["embedding"][token_ids]                          # (B, T, E)
    x = jnp.transpose(emb, (1, 0, 2)).astype(jnp.float32)    # (T, B, E)
    T, B, E = x.shape

    Hp = _round_up(H, 128)
    Op = _round_up(O, 128)
    Ep = _round_up(E, 128)
    Bp = _round_up(B, 8)

    x_p = jnp.pad(x, ((0, 0), (0, Bp - B), (0, Ep - E)))     # (T, Bp, Ep)

    wi_f, wh_f, bi_f, bhn_f = _dir_params(
        p["w_ih_f"], p["w_hh_f"], p["b_ih_f"], p["b_hh_f"], H, Hp, Ep)
    wi_b, wh_b, bi_b, bhn_b = _dir_params(
        p["w_ih_b"], p["w_hh_b"], p["b_ih_b"], p["b_hh_b"], H, Hp, Ep)

    wi = jnp.stack([wi_f, wi_b])          # (2, Ep, 3Hp)
    wh = jnp.stack([wh_f, wh_b])          # (2, Hp, 3Hp)
    bi = jnp.stack([bi_f, bi_b])          # (2, 1, 3Hp)
    bhn = jnp.stack([bhn_f, bhn_b])       # (2, 1, Hp)

    # hidden_cat = cat([hidden[-1], hidden[-2]]) = [h_backward, h_forward]
    # fc weight (O, 2H): cols [:H] hit h_backward, cols [H:] hit h_forward.
    wfc = jnp.stack([_pad2(p["w_fc"][:, H:].T, Hp, Op),      # pairs with h_fwd
                     _pad2(p["w_fc"][:, :H].T, Hp, Op)])     # pairs with h_bwd
    bfc = _pad1(p["b_fc"], Op).reshape(1, Op)

    vmem = pl.BlockSpec(memory_space=pltpu.MemorySpace.VMEM)
    out_p = pl.pallas_call(
        bigru_fc_kernel,
        out_shape=jax.ShapeDtypeStruct((Bp, Op), jnp.float32),
        in_specs=[vmem] * 7,
        out_specs=vmem,
        scratch_shapes=[pltpu.VMEM((2, T, Bp, 3 * Hp), jnp.float32)],
    )(x_p, wi, bi, wh, bhn, wfc, bfc)

    return out_p[:B, :O]


# ---------------------------------------------------------------------------
# Pure-JAX reference (mirrors torch.nn.GRU(bidirectional=True) + Linear)
# ---------------------------------------------------------------------------
def gru_model_ref(token_ids, p):
    H = p["hidden_size"]
    emb = p["embedding"][token_ids].astype(jnp.float32)
    B = emb.shape[0]
    xs = jnp.transpose(emb, (1, 0, 2))                       # (T, B, E)

    def run_dir(w_ih, w_hh, b_ih, b_hh, seq):
        def cell(h, x_t):
            gi = x_t @ w_ih.T + b_ih
            gh = h @ w_hh.T + b_hh
            r = jax.nn.sigmoid(gi[:, :H] + gh[:, :H])
            z = jax.nn.sigmoid(gi[:, H:2 * H] + gh[:, H:2 * H])
            n = jnp.tanh(gi[:, 2 * H:] + r * gh[:, 2 * H:])
            return (1.0 - z) * n + z * h, None
        h0 = jnp.zeros((B, H), jnp.float32)
        h_fin, _ = lax.scan(cell, h0, seq)
        return h_fin

    h_f = run_dir(p["w_ih_f"], p["w_hh_f"], p["b_ih_f"], p["b_hh_f"], xs)
    h_b = run_dir(p["w_ih_b"], p["w_hh_b"], p["b_ih_b"], p["b_hh_b"], xs[::-1])
    hidden_cat = jnp.concatenate([h_b, h_f], axis=1)         # (B, 2H)
    return hidden_cat @ p["w_fc"].T + p["b_fc"]


# ---------------------------------------------------------------------------
# Params / main
# ---------------------------------------------------------------------------
def init_params(key, voc_size, emb_size, hidden_size, output_size):
    ks = jax.random.split(key, 12)
    sh = 1.0 / math.sqrt(hidden_size)
    sf = 1.0 / math.sqrt(2 * hidden_size)

    def u(k, shape, s):
        return jax.random.uniform(k, shape, jnp.float32, -s, s)

    return {
        "hidden_size": hidden_size,
        "embedding": jax.random.normal(ks[0], (voc_size, emb_size), jnp.float32),
        # forward direction (torch weight_ih_l0 / weight_hh_l0 layout: (3H, E/H))
        "w_ih_f": u(ks[1], (3 * hidden_size, emb_size), sh),
        "w_hh_f": u(ks[2], (3 * hidden_size, hidden_size), sh),
        "b_ih_f": u(ks[3], (3 * hidden_size,), sh),
        "b_hh_f": u(ks[4], (3 * hidden_size,), sh),
        # backward direction (torch *_l0_reverse)
        "w_ih_b": u(ks[5], (3 * hidden_size, emb_size), sh),
        "w_hh_b": u(ks[6], (3 * hidden_size, hidden_size), sh),
        "b_ih_b": u(ks[7], (3 * hidden_size,), sh),
        "b_hh_b": u(ks[8], (3 * hidden_size,), sh),
        # fc: Linear(2H, O)
        "w_fc": u(ks[9], (output_size, 2 * hidden_size), sf),
        "b_fc": u(ks[10], (output_size,), sf),
    }


if __name__ == "__main__":
    VOC, EMB, HID, OUT = 50, 16, 32, 8
    B, T = 4, 8

    key = jax.random.PRNGKey(0)
    k_par, k_tok = jax.random.split(key)
    params = init_params(k_par, VOC, EMB, HID, OUT)
    token_ids = jax.random.randint(k_tok, (B, T), 0, VOC, dtype=jnp.int32)

    out = jax.block_until_ready(gru_model_forward(token_ids, params))
    ref = jax.block_until_ready(gru_model_ref(token_ids, params))

    assert out.shape == (B, OUT), out.shape
    err = float(jnp.max(jnp.abs(out - ref)))
    assert err < 2e-3, err
    print("KERNEL_OK")
</pallas_src>

<mosaic_0001>
module attributes {stable_mosaic.version = 11 : i64} {
  func.func @bigru_fc_kernel(%arg0: memref<8x8x128xf32, #tpu.memory_space<vmem>>, %arg1: memref<2x128x384xf32, #tpu.memory_space<vmem>>, %arg2: memref<2x1x384xf32, #tpu.memory_space<vmem>>, %arg3: memref<2x128x384xf32, #tpu.memory_space<vmem>>, %arg4: memref<2x1x128xf32, #tpu.memory_space<vmem>>, %arg5: memref<2x128x128xf32, #tpu.memory_space<vmem>>, %arg6: memref<1x128xf32, #tpu.memory_space<vmem>>, %arg7: memref<8x128xf32, #tpu.memory_space<vmem>>, %arg8: memref<2x8x8x384xf32, #tpu.memory_space<vmem>>) attributes {dimension_semantics = [], scalar_prefetch = 0 : i64, scratch_operands = 1 : i64, tpu.core_type = #tpu.core_type<tc>} {
    %c0 = arith.constant 0 : index
    %c0_0 = arith.constant 0 : index
    %c0_1 = arith.constant 0 : index
    %0 = vector.load %arg0[%c0, %c0_0, %c0_1] : memref<8x8x128xf32, #tpu.memory_space<vmem>>, vector<8x8x128xf32>
    %1 = vector.shape_cast %0 : vector<8x8x128xf32> to vector<64x128xf32>
    %c0_2 = arith.constant 0 : index
    %c0_3 = arith.constant 0 : index
    %c0_4 = arith.constant 0 : index
    %2 = vector.load %arg1[%c0_2, %c0_3, %c0_4] : memref<2x128x384xf32, #tpu.memory_space<vmem>>, vector<1x128x384xf32>
    %3 = vector.shape_cast %2 : vector<1x128x384xf32> to vector<128x384xf32>
    %cst = arith.constant dense<0.000000e+00> : vector<64x384xf32>
    %4 = tpu.matmul %1, %3, %cst {dimension_numbers = #tpu.dot_dimension_numbers<[1], [0], [0], [1], [0, 0, 1, 1], [], []>} : vector<64x128xf32>, vector<128x384xf32>, vector<64x384xf32> -> vector<64x384xf32>
    %c0_5 = arith.constant 0 : index
    %c0_6 = arith.constant 0 : index
    %c0_7 = arith.constant 0 : index
    %5 = vector.load %arg2[%c0_5, %c0_6, %c0_7] : memref<2x1x384xf32, #tpu.memory_space<vmem>>, vector<1x1x384xf32>
    %6 = vector.shape_cast %5 : vector<1x1x384xf32> to vector<1x384xf32>
    %7 = vector.broadcast %6 : vector<1x384xf32> to vector<64x384xf32>
    %8 = arith.addf %4, %7 : vector<64x384xf32>
    %9 = vector.shape_cast %8 : vector<64x384xf32> to vector<8x8x384xf32>
    %c0_8 = arith.constant 0 : index
    %c0_9 = arith.constant 0 : index
    %c0_10 = arith.constant 0 : index
    %c0_11 = arith.constant 0 : index
    %10 = vector.load %arg8[%c0_8, %c0_9, %c0_10, %c0_11] : memref<2x8x8x384xf32, #tpu.memory_space<vmem>>, vector<1x8x8x384xf32>
    %11 = vector.shape_cast %10 : vector<1x8x8x384xf32> to vector<8x8x384xf32>
    %12 = vector.shape_cast %9 : vector<8x8x384xf32> to vector<1x8x8x384xf32>
    tpu.vector_store %arg8[%c0_8, %c0_9, %c0_10, %c0_11], %12 {strides = array<i32>} : memref<2x8x8x384xf32, #tpu.memory_space<vmem>>, vector<1x8x8x384xf32>,
    %c1 = arith.constant 1 : index
    %c0_12 = arith.constant 0 : index
    %c0_13 = arith.constant 0 : index
    %13 = vector.load %arg1[%c1, %c0_12, %c0_13] : memref<2x128x384xf32, #tpu.memory_space<vmem>>, vector<1x128x384xf32>
    %14 = vector.shape_cast %13 : vector<1x128x384xf32> to vector<128x384xf32>
    %cst_14 = arith.constant dense<0.000000e+00> : vector<64x384xf32>
    %15 = tpu.matmul %1, %14, %cst_14 {dimension_numbers = #tpu.dot_dimension_numbers<[1], [0], [0], [1], [0, 0, 1, 1], [], []>} : vector<64x128xf32>, vector<128x384xf32>, vector<64x384xf32> -> vector<64x384xf32>
    %c1_15 = arith.constant 1 : index
    %c0_16 = arith.constant 0 : index
    %c0_17 = arith.constant 0 : index
    %16 = vector.load %arg2[%c1_15, %c0_16, %c0_17] : memref<2x1x384xf32, #tpu.memory_space<vmem>>, vector<1x1x384xf32>
    %17 = vector.shape_cast %16 : vector<1x1x384xf32> to vector<1x384xf32>
    %18 = vector.broadcast %17 : vector<1x384xf32> to vector<64x384xf32>
    %19 = arith.addf %15, %18 : vector<64x384xf32>
    %20 = vector.shape_cast %19 : vector<64x384xf32> to vector<8x8x384xf32>
    %c1_18 = arith.constant 1 : index
    %c0_19 = arith.constant 0 : index
    %c0_20 = arith.constant 0 : index
    %c0_21 = arith.constant 0 : index
    %21 = vector.load %arg8[%c1_18, %c0_19, %c0_20, %c0_21] : memref<2x8x8x384xf32, #tpu.memory_space<vmem>>, vector<1x8x8x384xf32>
    %22 = vector.shape_cast %21 : vector<1x8x8x384xf32> to vector<8x8x384xf32>
    %23 = vector.shape_cast %20 : vector<8x8x384xf32> to vector<1x8x8x384xf32>
    tpu.vector_store %arg8[%c1_18, %c0_19, %c0_20, %c0_21], %23 {strides = array<i32>} : memref<2x8x8x384xf32, #tpu.memory_space<vmem>>, vector<1x8x8x384xf32>,
    %c0_22 = arith.constant 0 : index
    %c0_23 = arith.constant 0 : index
    %c0_24 = arith.constant 0 : index
    %24 = vector.load %arg4[%c0_22, %c0_23, %c0_24] : memref<2x1x128xf32, #tpu.memory_space<vmem>>, vector<1x1x128xf32>
    %25 = vector.shape_cast %24 : vector<1x1x128xf32> to vector<1x128xf32>
    %26 = vector.shape_cast %25 : vector<1x128xf32> to vector<1x128xf32>
    %27 = vector.broadcast %26 : vector<1x128xf32> to vector<8x128xf32>
    %c1_25 = arith.constant 1 : index
    %c0_26 = arith.constant 0 : index
    %c0_27 = arith.constant 0 : index
    %28 = vector.load %arg4[%c1_25, %c0_26, %c0_27] : memref<2x1x128xf32, #tpu.memory_space<vmem>>, vector<1x1x128xf32>
    %29 = vector.shape_cast %28 : vector<1x1x128xf32> to vector<1x128xf32>
    %30 = vector.shape_cast %29 : vector<1x128xf32> to vector<1x128xf32>
    %31 = vector.broadcast %30 : vector<1x128xf32> to vector<8x128xf32>
    %cst_28 = arith.constant 0.000000e+00 : f32
    %32 = vector.broadcast %cst_28 : f32 to vector<8x128xf32>
    %c0_i32 = arith.constant 0 : i32
    %c1_i32 = arith.constant 1 : i32
    %c0_i32_29 = arith.constant 0 : i32
    %c0_i32_30 = arith.constant 0 : i32
    %c0_i32_31 = arith.constant 0 : i32
    %c0_i32_32 = arith.constant 0 : i32
    %33 = tpu.memref_slice %arg8[%c0_i32, %c0_i32_30, %c0_i32_31, %c0_i32_32] : memref<2x8x8x384xf32, #tpu.memory_space<vmem>> -> memref<1x8x8x384xf32, #tpu.memory_space<vmem>>
    %34 = tpu.memref_squeeze %33 : memref<1x8x8x384xf32, #tpu.memory_space<vmem>> -> memref<8x8x384xf32, #tpu.memory_space<vmem>>
    %35 = arith.index_cast %c0_i32_29 : i32 to index
    %c0_33 = arith.constant 0 : index
    %c0_34 = arith.constant 0 : index
    %36 = vector.load %34[%35, %c0_33, %c0_34] : memref<8x8x384xf32, #tpu.memory_space<vmem>>, vector<1x8x384xf32>
    %37 = vector.shape_cast %36 : vector<1x8x384xf32> to vector<8x384xf32>
    %c0_35 = arith.constant 0 : index
    %c0_36 = arith.constant 0 : index
    %c0_37 = arith.constant 0 : index
    %38 = vector.load %arg3[%c0_35, %c0_36, %c0_37] : memref<2x128x384xf32, #tpu.memory_space<vmem>>, vector<1x128x384xf32>
    %39 = vector.shape_cast %38 : vector<1x128x384xf32> to vector<128x384xf32>
    %cst_38 = arith.constant dense<0.000000e+00> : vector<8x384xf32>
    %40 = tpu.matmul %32, %39, %cst_38 {dimension_numbers = #tpu.dot_dimension_numbers<[1], [0], [0], [1], [0, 0, 1, 1], [], []>} : vector<8x128xf32>, vector<128x384xf32>, vector<8x384xf32> -> vector<8x384xf32>
    %41 = vector.extract_strided_slice %37 {offsets = [0, 0], sizes = [8, 128], strides = [1, 1]} : vector<8x384xf32> to vector<8x128xf32>
    %42 = vector.extract_strided_slice %40 {offsets = [0, 0], sizes = [8, 128], strides = [1, 1]} : vector<8x384xf32> to vector<8x128xf32>
    %43 = arith.addf %41, %42 : vector<8x128xf32>
    %44 = arith.negf %43 : vector<8x128xf32>
    %45 = math.exp %44 : vector<8x128xf32>
    %cst_39 = arith.constant 1.000000e+00 : f32
    %46 = vector.broadcast %cst_39 : f32 to vector<8x128xf32>
    %47 = arith.addf %46, %45 : vector<8x128xf32>
    %48 = arith.divf %46, %47 : vector<8x128xf32>
    %49 = vector.extract_strided_slice %37 {offsets = [0, 128], sizes = [8, 128], strides = [1, 1]} : vector<8x384xf32> to vector<8x128xf32>
    %50 = vector.extract_strided_slice %40 {offsets = [0, 128], sizes = [8, 128], strides = [1, 1]} : vector<8x384xf32> to vector<8x128xf32>
    %51 = arith.addf %49, %50 : vector<8x128xf32>
    %52 = arith.negf %51 : vector<8x128xf32>
    %53 = math.exp %52 : vector<8x128xf32>
    %cst_40 = arith.constant 1.000000e+00 : f32
    %54 = vector.broadcast %cst_40 : f32 to vector<8x128xf32>
    %55 = arith.addf %54, %53 : vector<8x128xf32>
    %56 = arith.divf %54, %55 : vector<8x128xf32>
    %57 = vector.extract_strided_slice %37 {offsets = [0, 256], sizes = [8, 128], strides = [1, 1]} : vector<8x384xf32> to vector<8x128xf32>
    %58 = vector.extract_strided_slice %40 {offsets = [0, 256], sizes = [8, 128], strides = [1, 1]} : vector<8x384xf32> to vector<8x128xf32>
    %59 = arith.addf %58, %27 : vector<8x128xf32>
    %60 = arith.mulf %48, %59 : vector<8x128xf32>
    %61 = arith.addf %57, %60 : vector<8x128xf32>
    %62 = math.tanh %61 : vector<8x128xf32>
    %cst_41 = arith.constant 1.000000e+00 : f32
    %63 = vector.broadcast %cst_41 : f32 to vector<8x128xf32>
    %64 = arith.subf %63, %56 : vector<8x128xf32>
    %65 = arith.mulf %64, %62 : vector<8x128xf32>
    %66 = arith.mulf %56, %32 : vector<8x128xf32>
    %67 = arith.addf %65, %66 : vector<8x128xf32>
    %c7_i32 = arith.constant 7 : i32
    %68 = arith.subi %c7_i32, %c0_i32_29 : i32
    %c0_i32_42 = arith.constant 0 : i32
    %c0_i32_43 = arith.constant 0 : i32
    %c0_i32_44 = arith.constant 0 : i32
    %69 = tpu.memref_slice %arg8[%c1_i32, %c0_i32_42, %c0_i32_43, %c0_i32_44] : memref<2x8x8x384xf32, #tpu.memory_space<vmem>> -> memref<1x8x8x384xf32, #tpu.memory_space<vmem>>
    %70 = tpu.memref_squeeze %69 : memref<1x8x8x384xf32, #tpu.memory_space<vmem>> -> memref<8x8x384xf32, #tpu.memory_space<vmem>>
    %71 = arith.index_cast %68 : i32 to index
    %c0_45 = arith.constant 0 : index
    %c0_46 = arith.constant 0 : index
    %72 = vector.load %70[%71, %c0_45, %c0_46] : memref<8x8x384xf32, #tpu.memory_space<vmem>>, vector<1x8x384xf32>
    %73 = vector.shape_cast %72 : vector<1x8x384xf32> to vector<8x384xf32>
    %c1_47 = arith.constant 1 : index
    %c0_48 = arith.constant 0 : index
    %c0_49 = arith.constant 0 : index
    %74 = vector.load %arg3[%c1_47, %c0_48, %c0_49] : memref<2x128x384xf32, #tpu.memory_space<vmem>>, vector<1x128x384xf32>
    %75 = vector.shape_cast %74 : vector<1x128x384xf32> to vector<128x384xf32>
    %cst_50 = arith.constant dense<0.000000e+00> : vector<8x384xf32>
    %76 = tpu.matmul %32, %75, %cst_50 {dimension_numbers = #tpu.dot_dimension_numbers<[1], [0], [0], [1], [0, 0, 1, 1], [], []>} : vector<8x128xf32>, vector<128x384xf32>, vector<8x384xf32> -> vector<8x384xf32>
    %77 = vector.extract_strided_slice %73 {offsets = [0, 0], sizes = [8, 128], strides = [1, 1]} : vector<8x384xf32> to vector<8x128xf32>
    %78 = vector.extract_strided_slice %76 {offsets = [0, 0], sizes = [8, 128], strides = [1, 1]} : vector<8x384xf32> to vector<8x128xf32>
    %79 = arith.addf %77, %78 : vector<8x128xf32>
    %80 = arith.negf %79 : vector<8x128xf32>
    %81 = math.exp %80 : vector<8x128xf32>
    %cst_51 = arith.constant 1.000000e+00 : f32
    %82 = vector.broadcast %cst_51 : f32 to vector<8x128xf32>
    %83 = arith.addf %82, %81 : vector<8x128xf32>
    %84 = arith.divf %82, %83 : vector<8x128xf32>
    %85 = vector.extract_strided_slice %73 {offsets = [0, 128], sizes = [8, 128], strides = [1, 1]} : vector<8x384xf32> to vector<8x128xf32>
    %86 = vector.extract_strided_slice %76 {offsets = [0, 128], sizes = [8, 128], strides = [1, 1]} : vector<8x384xf32> to vector<8x128xf32>
    %87 = arith.addf %85, %86 : vector<8x128xf32>
    %88 = arith.negf %87 : vector<8x128xf32>
    %89 = math.exp %88 : vector<8x128xf32>
    %cst_52 = arith.constant 1.000000e+00 : f32
    %90 = vector.broadcast %cst_52 : f32 to vector<8x128xf32>
    %91 = arith.addf %90, %89 : vector<8x128xf32>
    %92 = arith.divf %90, %91 : vector<8x128xf32>
    %93 = vector.extract_strided_slice %73 {offsets = [0, 256], sizes = [8, 128], strides = [1, 1]} : vector<8x384xf32> to vector<8x128xf32>
    %94 = vector.extract_strided_slice %76 {offsets = [0, 256], sizes = [8, 128], strides = [1, 1]} : vector<8x384xf32> to vector<8x128xf32>
    %95 = arith.addf %94, %31 : vector<8x128xf32>
    %96 = arith.mulf %84, %95 : vector<8x128xf32>
    %97 = arith.addf %93, %96 : vector<8x128xf32>
    %98 = math.tanh %97 : vector<8x128xf32>
    %cst_53 = arith.constant 1.000000e+00 : f32
    %99 = vector.broadcast %cst_53 : f32 to vector<8x128xf32>
    %100 = arith.subf %99, %92 : vector<8x128xf32>
    %101 = arith.mulf %100, %98 : vector<8x128xf32>
    %102 = arith.mulf %92, %32 : vector<8x128xf32>
    %103 = arith.addf %101, %102 : vector<8x128xf32>
    %c1_i32_54 = arith.constant 1 : i32
    %c0_i32_55 = arith.constant 0 : i32
    %c0_i32_56 = arith.constant 0 : i32
    %c0_i32_57 = arith.constant 0 : i32
    %104 = tpu.memref_slice %arg8[%c0_i32, %c0_i32_55, %c0_i32_56, %c0_i32_57] : memref<2x8x8x384xf32, #tpu.memory_space<vmem>> -> memref<1x8x8x384xf32, #tpu.memory_space<vmem>>
    %105 = tpu.memref_squeeze %104 : memref<1x8x8x384xf32, #tpu.memory_space<vmem>> -> memref<8x8x384xf32, #tpu.memory_space<vmem>>
    %106 = arith.index_cast %c1_i32_54 : i32 to index
    %c0_58 = arith.constant 0 : index
    %c0_59 = arith.constant 0 : index
    %107 = vector.load %105[%106, %c0_58, %c0_59] : memref<8x8x384xf32, #tpu.memory_space<vmem>>, vector<1x8x384xf32>
    %108 = vector.shape_cast %107 : vector<1x8x384xf32> to vector<8x384xf32>
    %c0_60 = arith.constant 0 : index
    %c0_61 = arith.constant 0 : index
    %c0_62 = arith.constant 0 : index
    %109 = vector.load %arg3[%c0_60, %c0_61, %c0_62] : memref<2x128x384xf32, #tpu.memory_space<vmem>>, vector<1x128x384xf32>
    %110 = vector.shape_cast %109 : vector<1x128x384xf32> to vector<128x384xf32>
    %cst_63 = arith.constant dense<0.000000e+00> : vector<8x384xf32>
    %111 = tpu.matmul %67, %110, %cst_63 {dimension_numbers = #tpu.dot_dimension_numbers<[1], [0], [0], [1], [0, 0, 1, 1], [], []>} : vector<8x128xf32>, vector<128x384xf32>, vector<8x384xf32> -> vector<8x384xf32>
    %112 = vector.extract_strided_slice %108 {offsets = [0, 0], sizes = [8, 128], strides = [1, 1]} : vector<8x384xf32> to vector<8x128xf32>
    %113 = vector.extract_strided_slice %111 {offsets = [0, 0], sizes = [8, 128], strides = [1, 1]} : vector<8x384xf32> to vector<8x128xf32>
    %114 = arith.addf %112, %113 : vector<8x128xf32>
    %115 = arith.negf %114 : vector<8x128xf32>
    %116 = math.exp %115 : vector<8x128xf32>
    %cst_64 = arith.constant 1.000000e+00 : f32
    %117 = vector.broadcast %cst_64 : f32 to vector<8x128xf32>
    %118 = arith.addf %117, %116 : vector<8x128xf32>
    %119 = arith.divf %117, %118 : vector<8x128xf32>
    %120 = vector.extract_strided_slice %108 {offsets = [0, 128], sizes = [8, 128], strides = [1, 1]} : vector<8x384xf32> to vector<8x128xf32>
    %121 = vector.extract_strided_slice %111 {offsets = [0, 128], sizes = [8, 128], strides = [1, 1]} : vector<8x384xf32> to vector<8x128xf32>
    %122 = arith.addf %120, %121 : vector<8x128xf32>
    %123 = arith.negf %122 : vector<8x128xf32>
    %124 = math.exp %123 : vector<8x128xf32>
    %cst_65 = arith.constant 1.000000e+00 : f32
    %125 = vector.broadcast %cst_65 : f32 to vector<8x128xf32>
    %126 = arith.addf %125, %124 : vector<8x128xf32>
    %127 = arith.divf %125, %126 : vector<8x128xf32>
    %128 = vector.extract_strided_slice %108 {offsets = [0, 256], sizes = [8, 128], strides = [1, 1]} : vector<8x384xf32> to vector<8x128xf32>
    %129 = vector.extract_strided_slice %111 {offsets = [0, 256], sizes = [8, 128], strides = [1, 1]} : vector<8x384xf32> to vector<8x128xf32>
    %130 = arith.addf %129, %27 : vector<8x128xf32>
    %131 = arith.mulf %119, %130 : vector<8x128xf32>
    %132 = arith.addf %128, %131 : vector<8x128xf32>
    %133 = math.tanh %132 : vector<8x128xf32>
    %cst_66 = arith.constant 1.000000e+00 : f32
    %134 = vector.broadcast %cst_66 : f32 to vector<8x128xf32>
    %135 = arith.subf %134, %127 : vector<8x128xf32>
    %136 = arith.mulf %135, %133 : vector<8x128xf32>
    %137 = arith.mulf %127, %67 : vector<8x128xf32>
    %138 = arith.addf %136, %137 : vector<8x128xf32>
    %c7_i32_67 = arith.constant 7 : i32
    %139 = arith.subi %c7_i32_67, %c1_i32_54 : i32
    %c0_i32_68 = arith.constant 0 : i32
    %c0_i32_69 = arith.constant 0 : i32
    %c0_i32_70 = arith.constant 0 : i32
    %140 = tpu.memref_slice %arg8[%c1_i32, %c0_i32_68, %c0_i32_69, %c0_i32_70] : memref<2x8x8x384xf32, #tpu.memory_space<vmem>> -> memref<1x8x8x384xf32, #tpu.memory_space<vmem>>
    %141 = tpu.memref_squeeze %140 : memref<1x8x8x384xf32, #tpu.memory_space<vmem>> -> memref<8x8x384xf32, #tpu.memory_space<vmem>>
    %142 = arith.index_cast %139 : i32 to index
    %c0_71 = arith.constant 0 : index
    %c0_72 = arith.constant 0 : index
    %143 = vector.load %141[%142, %c0_71, %c0_72] : memref<8x8x384xf32, #tpu.memory_space<vmem>>, vector<1x8x384xf32>
    %144 = vector.shape_cast %143 : vector<1x8x384xf32> to vector<8x384xf32>
    %c1_73 = arith.constant 1 : index
    %c0_74 = arith.constant 0 : index
    %c0_75 = arith.constant 0 : index
    %145 = vector.load %arg3[%c1_73, %c0_74, %c0_75] : memref<2x128x384xf32, #tpu.memory_space<vmem>>, vector<1x128x384xf32>
    %146 = vector.shape_cast %145 : vector<1x128x384xf32> to vector<128x384xf32>
    %cst_76 = arith.constant dense<0.000000e+00> : vector<8x384xf32>
    %147 = tpu.matmul %103, %146, %cst_76 {dimension_numbers = #tpu.dot_dimension_numbers<[1], [0], [0], [1], [0, 0, 1, 1], [], []>} : vector<8x128xf32>, vector<128x384xf32>, vector<8x384xf32> -> vector<8x384xf32>
    %148 = vector.extract_strided_slice %144 {offsets = [0, 0], sizes = [8, 128], strides = [1, 1]} : vector<8x384xf32> to vector<8x128xf32>
    %149 = vector.extract_strided_slice %147 {offsets = [0, 0], sizes = [8, 128], strides = [1, 1]} : vector<8x384xf32> to vector<8x128xf32>
    %150 = arith.addf %148, %149 : vector<8x128xf32>
    %151 = arith.negf %150 : vector<8x128xf32>
    %152 = math.exp %151 : vector<8x128xf32>
    %cst_77 = arith.constant 1.000000e+00 : f32
    %153 = vector.broadcast %cst_77 : f32 to vector<8x128xf32>
    %154 = arith.addf %153, %152 : vector<8x128xf32>
    %155 = arith.divf %153, %154 : vector<8x128xf32>
    %156 = vector.extract_strided_slice %144 {offsets = [0, 128], sizes = [8, 128], strides = [1, 1]} : vector<8x384xf32> to vector<8x128xf32>
    %157 = vector.extract_strided_slice %147 {offsets = [0, 128], sizes = [8, 128], strides = [1, 1]} : vector<8x384xf32> to vector<8x128xf32>
    %158 = arith.addf %156, %157 : vector<8x128xf32>
    %159 = arith.negf %158 : vector<8x128xf32>
    %160 = math.exp %159 : vector<8x128xf32>
    %cst_78 = arith.constant 1.000000e+00 : f32
    %161 = vector.broadcast %cst_78 : f32 to vector<8x128xf32>
    %162 = arith.addf %161, %160 : vector<8x128xf32>
    %163 = arith.divf %161, %162 : vector<8x128xf32>
    %164 = vector.extract_strided_slice %144 {offsets = [0, 256], sizes = [8, 128], strides = [1, 1]} : vector<8x384xf32> to vector<8x128xf32>
    %165 = vector.extract_strided_slice %147 {offsets = [0, 256], sizes = [8, 128], strides = [1, 1]} : vector<8x384xf32> to vector<8x128xf32>
    %166 = arith.addf %165, %31 : vector<8x128xf32>
    %167 = arith.mulf %155, %166 : vector<8x128xf32>
    %168 = arith.addf %164, %167 : vector<8x128xf32>
    %169 = math.tanh %168 : vector<8x128xf32>
    %cst_79 = arith.constant 1.000000e+00 : f32
    %170 = vector.broadcast %cst_79 : f32 to vector<8x128xf32>
    %171 = arith.subf %170, %163 : vector<8x128xf32>
    %172 = arith.mulf %171, %169 : vector<8x128xf32>
    %173 = arith.mulf %163, %103 : vector<8x128xf32>
    %174 = arith.addf %172, %173 : vector<8x128xf32>
    %c2_i32 = arith.constant 2 : i32
    %c0_i32_80 = arith.constant 0 : i32
    %c0_i32_81 = arith.constant 0 : i32
    %c0_i32_82 = arith.constant 0 : i32
    %175 = tpu.memref_slice %arg8[%c0_i32, %c0_i32_80, %c0_i32_81, %c0_i32_82] : memref<2x8x8x384xf32, #tpu.memory_space<vmem>> -> memref<1x8x8x384xf32, #tpu.memory_space<vmem>>
    %176 = tpu.memref_squeeze %175 : memref<1x8x8x384xf32, #tpu.memory_space<vmem>> -> memref<8x8x384xf32, #tpu.memory_space<vmem>>
    %177 = arith.index_cast %c2_i32 : i32 to index
    %c0_83 = arith.constant 0 : index
    %c0_84 = arith.constant 0 : index
    %178 = vector.load %176[%177, %c0_83, %c0_84] : memref<8x8x384xf32, #tpu.memory_space<vmem>>, vector<1x8x384xf32>
    %179 = vector.shape_cast %178 : vector<1x8x384xf32> to vector<8x384xf32>
    %c0_85 = arith.constant 0 : index
    %c0_86 = arith.constant 0 : index
    %c0_87 = arith.constant 0 : index
    %180 = vector.load %arg3[%c0_85, %c0_86, %c0_87] : memref<2x128x384xf32, #tpu.memory_space<vmem>>, vector<1x128x384xf32>
    %181 = vector.shape_cast %180 : vector<1x128x384xf32> to vector<128x384xf32>
    %cst_88 = arith.constant dense<0.000000e+00> : vector<8x384xf32>
    %182 = tpu.matmul %138, %181, %cst_88 {dimension_numbers = #tpu.dot_dimension_numbers<[1], [0], [0], [1], [0, 0, 1, 1], [], []>} : vector<8x128xf32>, vector<128x384xf32>, vector<8x384xf32> -> vector<8x384xf32>
    %183 = vector.extract_strided_slice %179 {offsets = [0, 0], sizes = [8, 128], strides = [1, 1]} : vector<8x384xf32> to vector<8x128xf32>
    %184 = vector.extract_strided_slice %182 {offsets = [0, 0], sizes = [8, 128], strides = [1, 1]} : vector<8x384xf32> to vector<8x128xf32>
    %185 = arith.addf %183, %184 : vector<8x128xf32>
    %186 = arith.negf %185 : vector<8x128xf32>
    %187 = math.exp %186 : vector<8x128xf32>
    %cst_89 = arith.constant 1.000000e+00 : f32
    %188 = vector.broadcast %cst_89 : f32 to vector<8x128xf32>
    %189 = arith.addf %188, %187 : vector<8x128xf32>
    %190 = arith.divf %188, %189 : vector<8x128xf32>
    %191 = vector.extract_strided_slice %179 {offsets = [0, 128], sizes = [8, 128], strides = [1, 1]} : vector<8x384xf32> to vector<8x128xf32>
    %192 = vector.extract_strided_slice %182 {offsets = [0, 128], sizes = [8, 128], strides = [1, 1]} : vector<8x384xf32> to vector<8x128xf32>
    %193 = arith.addf %191, %192 : vector<8x128xf32>
    %194 = arith.negf %193 : vector<8x128xf32>
    %195 = math.exp %194 : vector<8x128xf32>
    %cst_90 = arith.constant 1.000000e+00 : f32
    %196 = vector.broadcast %cst_90 : f32 to vector<8x128xf32>
    %197 = arith.addf %196, %195 : vector<8x128xf32>
    %198 = arith.divf %196, %197 : vector<8x128xf32>
    %199 = vector.extract_strided_slice %179 {offsets = [0, 256], sizes = [8, 128], strides = [1, 1]} : vector<8x384xf32> to vector<8x128xf32>
    %200 = vector.extract_strided_slice %182 {offsets = [0, 256], sizes = [8, 128], strides = [1, 1]} : vector<8x384xf32> to vector<8x128xf32>
    %201 = arith.addf %200, %27 : vector<8x128xf32>
    %202 = arith.mulf %190, %201 : vector<8x128xf32>
    %203 = arith.addf %199, %202 : vector<8x128xf32>
    %204 = math.tanh %203 : vector<8x128xf32>
    %cst_91 = arith.constant 1.000000e+00 : f32
    %205 = vector.broadcast %cst_91 : f32 to vector<8x128xf32>
    %206 = arith.subf %205, %198 : vector<8x128xf32>
    %207 = arith.mulf %206, %204 : vector<8x128xf32>
    %208 = arith.mulf %198, %138 : vector<8x128xf32>
    %209 = arith.addf %207, %208 : vector<8x128xf32>
    %c7_i32_92 = arith.constant 7 : i32
    %210 = arith.subi %c7_i32_92, %c2_i32 : i32
    %c0_i32_93 = arith.constant 0 : i32
    %c0_i32_94 = arith.constant 0 : i32
    %c0_i32_95 = arith.constant 0 : i32
    %211 = tpu.memref_slice %arg8[%c1_i32, %c0_i32_93, %c0_i32_94, %c0_i32_95] : memref<2x8x8x384xf32, #tpu.memory_space<vmem>> -> memref<1x8x8x384xf32, #tpu.memory_space<vmem>>
    %212 = tpu.memref_squeeze %211 : memref<1x8x8x384xf32, #tpu.memory_space<vmem>> -> memref<8x8x384xf32, #tpu.memory_space<vmem>>
    %213 = arith.index_cast %210 : i32 to index
    %c0_96 = arith.constant 0 : index
    %c0_97 = arith.constant 0 : index
    %214 = vector.load %212[%213, %c0_96, %c0_97] : memref<8x8x384xf32, #tpu.memory_space<vmem>>, vector<1x8x384xf32>
    %215 = vector.shape_cast %214 : vector<1x8x384xf32> to vector<8x384xf32>
    %c1_98 = arith.constant 1 : index
    %c0_99 = arith.constant 0 : index
    %c0_100 = arith.constant 0 : index
    %216 = vector.load %arg3[%c1_98, %c0_99, %c0_100] : memref<2x128x384xf32, #tpu.memory_space<vmem>>, vector<1x128x384xf32>
    %217 = vector.shape_cast %216 : vector<1x128x384xf32> to vector<128x384xf32>
    %cst_101 = arith.constant dense<0.000000e+00> : vector<8x384xf32>
    %218 = tpu.matmul %174, %217, %cst_101 {dimension_numbers = #tpu.dot_dimension_numbers<[1], [0], [0], [1], [0, 0, 1, 1], [], []>} : vector<8x128xf32>, vector<128x384xf32>, vector<8x384xf32> -> vector<8x384xf32>
    %219 = vector.extract_strided_slice %215 {offsets = [0, 0], sizes = [8, 128], strides = [1, 1]} : vector<8x384xf32> to vector<8x128xf32>
    %220 = vector.extract_strided_slice %218 {offsets = [0, 0], sizes = [8, 128], strides = [1, 1]} : vector<8x384xf32> to vector<8x128xf32>
    %221 = arith.addf %219, %220 : vector<8x128xf32>
    %222 = arith.negf %221 : vector<8x128xf32>
    %223 = math.exp %222 : vector<8x128xf32>
    %cst_102 = arith.constant 1.000000e+00 : f32
    %224 = vector.broadcast %cst_102 : f32 to vector<8x128xf32>
    %225 = arith.addf %224, %223 : vector<8x128xf32>
    %226 = arith.divf %224, %225 : vector<8x128xf32>
    %227 = vector.extract_strided_slice %215 {offsets = [0, 128], sizes = [8, 128], strides = [1, 1]} : vector<8x384xf32> to vector<8x128xf32>
    %228 = vector.extract_strided_slice %218 {offsets = [0, 128], sizes = [8, 128], strides = [1, 1]} : vector<8x384xf32> to vector<8x128xf32>
    %229 = arith.addf %227, %228 : vector<8x128xf32>
    %230 = arith.negf %229 : vector<8x128xf32>
    %231 = math.exp %230 : vector<8x128xf32>
    %cst_103 = arith.constant 1.000000e+00 : f32
    %232 = vector.broadcast %cst_103 : f32 to vector<8x128xf32>
    %233 = arith.addf %232, %231 : vector<8x128xf32>
    %234 = arith.divf %232, %233 : vector<8x128xf32>
    %235 = vector.extract_strided_slice %215 {offsets = [0, 256], sizes = [8, 128], strides = [1, 1]} : vector<8x384xf32> to vector<8x128xf32>
    %236 = vector.extract_strided_slice %218 {offsets = [0, 256], sizes = [8, 128], strides = [1, 1]} : vector<8x384xf32> to vector<8x128xf32>
    %237 = arith.addf %236, %31 : vector<8x128xf32>
    %238 = arith.mulf %226, %237 : vector<8x128xf32>
    %239 = arith.addf %235, %238 : vector<8x128xf32>
    %240 = math.tanh %239 : vector<8x128xf32>
    %cst_104 = arith.constant 1.000000e+00 : f32
    %241 = vector.broadcast %cst_104 : f32 to vector<8x128xf32>
    %242 = arith.subf %241, %234 : vector<8x128xf32>
    %243 = arith.mulf %242, %240 : vector<8x128xf32>
    %244 = arith.mulf %234, %174 : vector<8x128xf32>
    %245 = arith.addf %243, %244 : vector<8x128xf32>
    %c3_i32 = arith.constant 3 : i32
    %c0_i32_105 = arith.constant 0 : i32
    %c0_i32_106 = arith.constant 0 : i32
    %c0_i32_107 = arith.constant 0 : i32
    %246 = tpu.memref_slice %arg8[%c0_i32, %c0_i32_105, %c0_i32_106, %c0_i32_107] : memref<2x8x8x384xf32, #tpu.memory_space<vmem>> -> memref<1x8x8x384xf32, #tpu.memory_space<vmem>>
    %247 = tpu.memref_squeeze %246 : memref<1x8x8x384xf32, #tpu.memory_space<vmem>> -> memref<8x8x384xf32, #tpu.memory_space<vmem>>
    %248 = arith.index_cast %c3_i32 : i32 to index
    %c0_108 = arith.constant 0 : index
    %c0_109 = arith.constant 0 : index
    %249 = vector.load %247[%248, %c0_108, %c0_109] : memref<8x8x384xf32, #tpu.memory_space<vmem>>, vector<1x8x384xf32>
    %250 = vector.shape_cast %249 : vector<1x8x384xf32> to vector<8x384xf32>
    %c0_110 = arith.constant 0 : index
    %c0_111 = arith.constant 0 : index
    %c0_112 = arith.constant 0 : index
    %251 = vector.load %arg3[%c0_110, %c0_111, %c0_112] : memref<2x128x384xf32, #tpu.memory_space<vmem>>, vector<1x128x384xf32>
    %252 = vector.shape_cast %251 : vector<1x128x384xf32> to vector<128x384xf32>
    %cst_113 = arith.constant dense<0.000000e+00> : vector<8x384xf32>
    %253 = tpu.matmul %209, %252, %cst_113 {dimension_numbers = #tpu.dot_dimension_numbers<[1], [0], [0], [1], [0, 0, 1, 1], [], []>} : vector<8x128xf32>, vector<128x384xf32>, vector<8x384xf32> -> vector<8x384xf32>
    %254 = vector.extract_strided_slice %250 {offsets = [0, 0], sizes = [8, 128], strides = [1, 1]} : vector<8x384xf32> to vector<8x128xf32>
    %255 = vector.extract_strided_slice %253 {offsets = [0, 0], sizes = [8, 128], strides = [1, 1]} : vector<8x384xf32> to vector<8x128xf32>
    %256 = arith.addf %254, %255 : vector<8x128xf32>
    %257 = arith.negf %256 : vector<8x128xf32>
    %258 = math.exp %257 : vector<8x128xf32>
    %cst_114 = arith.constant 1.000000e+00 : f32
    %259 = vector.broadcast %cst_114 : f32 to vector<8x128xf32>
    %260 = arith.addf %259, %258 : vector<8x128xf32>
    %261 = arith.divf %259, %260 : vector<8x128xf32>
    %262 = vector.extract_strided_slice %250 {offsets = [0, 128], sizes = [8, 128], strides = [1, 1]} : vector<8x384xf32> to vector<8x128xf32>
    %263 = vector.extract_strided_slice %253 {offsets = [0, 128], sizes = [8, 128], strides = [1, 1]} : vector<8x384xf32> to vector<8x128xf32>
    %264 = arith.addf %262, %263 : vector<8x128xf32>
    %265 = arith.negf %264 : vector<8x128xf32>
    %266 = math.exp %265 : vector<8x128xf32>
    %cst_115 = arith.constant 1.000000e+00 : f32
    %267 = vector.broadcast %cst_115 : f32 to vector<8x128xf32>
    %268 = arith.addf %267, %266 : vector<8x128xf32>
    %269 = arith.divf %267, %268 : vector<8x128xf32>
    %270 = vector.extract_strided_slice %250 {offsets = [0, 256], sizes = [8, 128], strides = [1, 1]} : vector<8x384xf32> to vector<8x128xf32>
    %271 = vector.extract_strided_slice %253 {offsets = [0, 256], sizes = [8, 128], strides = [1, 1]} : vector<8x384xf32> to vector<8x128xf32>
    %272 = arith.addf %271, %27 : vector<8x128xf32>
    %273 = arith.mulf %261, %272 : vector<8x128xf32>
    %274 = arith.addf %270, %273 : vector<8x128xf32>
    %275 = math.tanh %274 : vector<8x128xf32>
    %cst_116 = arith.constant 1.000000e+00 : f32
    %276 = vector.broadcast %cst_116 : f32 to vector<8x128xf32>
    %277 = arith.subf %276, %269 : vector<8x128xf32>
    %278 = arith.mulf %277, %275 : vector<8x128xf32>
    %279 = arith.mulf %269, %209 : vector<8x128xf32>
    %280 = arith.addf %278, %279 : vector<8x128xf32>
    %c7_i32_117 = arith.constant 7 : i32
    %281 = arith.subi %c7_i32_117, %c3_i32 : i32
    %c0_i32_118 = arith.constant 0 : i32
    %c0_i32_119 = arith.constant 0 : i32
    %c0_i32_120 = arith.constant 0 : i32
    %282 = tpu.memref_slice %arg8[%c1_i32, %c0_i32_118, %c0_i32_119, %c0_i32_120] : memref<2x8x8x384xf32, #tpu.memory_space<vmem>> -> memref<1x8x8x384xf32, #tpu.memory_space<vmem>>
    %283 = tpu.memref_squeeze %282 : memref<1x8x8x384xf32, #tpu.memory_space<vmem>> -> memref<8x8x384xf32, #tpu.memory_space<vmem>>
    %284 = arith.index_cast %281 : i32 to index
    %c0_121 = arith.constant 0 : index
    %c0_122 = arith.constant 0 : index
    %285 = vector.load %283[%284, %c0_121, %c0_122] : memref<8x8x384xf32, #tpu.memory_space<vmem>>, vector<1x8x384xf32>
    %286 = vector.shape_cast %285 : vector<1x8x384xf32> to vector<8x384xf32>
    %c1_123 = arith.constant 1 : index
    %c0_124 = arith.constant 0 : index
    %c0_125 = arith.constant 0 : index
    %287 = vector.load %arg3[%c1_123, %c0_124, %c0_125] : memref<2x128x384xf32, #tpu.memory_space<vmem>>, vector<1x128x384xf32>
    %288 = vector.shape_cast %287 : vector<1x128x384xf32> to vector<128x384xf32>
    %cst_126 = arith.constant dense<0.000000e+00> : vector<8x384xf32>
    %289 = tpu.matmul %245, %288, %cst_126 {dimension_numbers = #tpu.dot_dimension_numbers<[1], [0], [0], [1], [0, 0, 1, 1], [], []>} : vector<8x128xf32>, vector<128x384xf32>, vector<8x384xf32> -> vector<8x384xf32>
    %290 = vector.extract_strided_slice %286 {offsets = [0, 0], sizes = [8, 128], strides = [1, 1]} : vector<8x384xf32> to vector<8x128xf32>
    %291 = vector.extract_strided_slice %289 {offsets = [0, 0], sizes = [8, 128], strides = [1, 1]} : vector<8x384xf32> to vector<8x128xf32>
    %292 = arith.addf %290, %291 : vector<8x128xf32>
    %293 = arith.negf %292 : vector<8x128xf32>
    %294 = math.exp %293 : vector<8x128xf32>
    %cst_127 = arith.constant 1.000000e+00 : f32
    %295 = vector.broadcast %cst_127 : f32 to vector<8x128xf32>
    %296 = arith.addf %295, %294 : vector<8x128xf32>
    %297 = arith.divf %295, %296 : vector<8x128xf32>
    %298 = vector.extract_strided_slice %286 {offsets = [0, 128], sizes = [8, 128], strides = [1, 1]} : vector<8x384xf32> to vector<8x128xf32>
    %299 = vector.extract_strided_slice %289 {offsets = [0, 128], sizes = [8, 128], strides = [1, 1]} : vector<8x384xf32> to vector<8x128xf32>
    %300 = arith.addf %298, %299 : vector<8x128xf32>
    %301 = arith.negf %300 : vector<8x128xf32>
    %302 = math.exp %301 : vector<8x128xf32>
    %cst_128 = arith.constant 1.000000e+00 : f32
    %303 = vector.broadcast %cst_128 : f32 to vector<8x128xf32>
    %304 = arith.addf %303, %302 : vector<8x128xf32>
    %305 = arith.divf %303, %304 : vector<8x128xf32>
    %306 = vector.extract_strided_slice %286 {offsets = [0, 256], sizes = [8, 128], strides = [1, 1]} : vector<8x384xf32> to vector<8x128xf32>
    %307 = vector.extract_strided_slice %289 {offsets = [0, 256], sizes = [8, 128], strides = [1, 1]} : vector<8x384xf32> to vector<8x128xf32>
    %308 = arith.addf %307, %31 : vector<8x128xf32>
    %309 = arith.mulf %297, %308 : vector<8x128xf32>
    %310 = arith.addf %306, %309 : vector<8x128xf32>
    %311 = math.tanh %310 : vector<8x128xf32>
    %cst_129 = arith.constant 1.000000e+00 : f32
    %312 = vector.broadcast %cst_129 : f32 to vector<8x128xf32>
    %313 = arith.subf %312, %305 : vector<8x128xf32>
    %314 = arith.mulf %313, %311 : vector<8x128xf32>
    %315 = arith.mulf %305, %245 : vector<8x128xf32>
    %316 = arith.addf %314, %315 : vector<8x128xf32>
    %c4_i32 = arith.constant 4 : i32
    %c0_i32_130 = arith.constant 0 : i32
    %c0_i32_131 = arith.constant 0 : i32
    %c0_i32_132 = arith.constant 0 : i32
    %317 = tpu.memref_slice %arg8[%c0_i32, %c0_i32_130, %c0_i32_131, %c0_i32_132] : memref<2x8x8x384xf32, #tpu.memory_space<vmem>> -> memref<1x8x8x384xf32, #tpu.memory_space<vmem>>
    %318 = tpu.memref_squeeze %317 : memref<1x8x8x384xf32, #tpu.memory_space<vmem>> -> memref<8x8x384xf32, #tpu.memory_space<vmem>>
    %319 = arith.index_cast %c4_i32 : i32 to index
    %c0_133 = arith.constant 0 : index
    %c0_134 = arith.constant 0 : index
    %320 = vector.load %318[%319, %c0_133, %c0_134] : memref<8x8x384xf32, #tpu.memory_space<vmem>>, vector<1x8x384xf32>
    %321 = vector.shape_cast %320 : vector<1x8x384xf32> to vector<8x384xf32>
    %c0_135 = arith.constant 0 : index
    %c0_136 = arith.constant 0 : index
    %c0_137 = arith.constant 0 : index
    %322 = vector.load %arg3[%c0_135, %c0_136, %c0_137] : memref<2x128x384xf32, #tpu.memory_space<vmem>>, vector<1x128x384xf32>
    %323 = vector.shape_cast %322 : vector<1x128x384xf32> to vector<128x384xf32>
    %cst_138 = arith.constant dense<0.000000e+00> : vector<8x384xf32>
    %324 = tpu.matmul %280, %323, %cst_138 {dimension_numbers = #tpu.dot_dimension_numbers<[1], [0], [0], [1], [0, 0, 1, 1], [], []>} : vector<8x128xf32>, vector<128x384xf32>, vector<8x384xf32> -> vector<8x384xf32>
    %325 = vector.extract_strided_slice %321 {offsets = [0, 0], sizes = [8, 128], strides = [1, 1]} : vector<8x384xf32> to vector<8x128xf32>
    %326 = vector.extract_strided_slice %324 {offsets = [0, 0], sizes = [8, 128], strides = [1, 1]} : vector<8x384xf32> to vector<8x128xf32>
    %327 = arith.addf %325, %326 : vector<8x128xf32>
    %328 = arith.negf %327 : vector<8x128xf32>
    %329 = math.exp %328 : vector<8x128xf32>
    %cst_139 = arith.constant 1.000000e+00 : f32
    %330 = vector.broadcast %cst_139 : f32 to vector<8x128xf32>
    %331 = arith.addf %330, %329 : vector<8x128xf32>
    %332 = arith.divf %330, %331 : vector<8x128xf32>
    %333 = vector.extract_strided_slice %321 {offsets = [0, 128], sizes = [8, 128], strides = [1, 1]} : vector<8x384xf32> to vector<8x128xf32>
    %334 = vector.extract_strided_slice %324 {offsets = [0, 128], sizes = [8, 128], strides = [1, 1]} : vector<8x384xf32> to vector<8x128xf32>
    %335 = arith.addf %333, %334 : vector<8x128xf32>
    %336 = arith.negf %335 : vector<8x128xf32>
    %337 = math.exp %336 : vector<8x128xf32>
    %cst_140 = arith.constant 1.000000e+00 : f32
    %338 = vector.broadcast %cst_140 : f32 to vector<8x128xf32>
    %339 = arith.addf %338, %337 : vector<8x128xf32>
    %340 = arith.divf %338, %339 : vector<8x128xf32>
    %341 = vector.extract_strided_slice %321 {offsets = [0, 256], sizes = [8, 128], strides = [1, 1]} : vector<8x384xf32> to vector<8x128xf32>
    %342 = vector.extract_strided_slice %324 {offsets = [0, 256], sizes = [8, 128], strides = [1, 1]} : vector<8x384xf32> to vector<8x128xf32>
    %343 = arith.addf %342, %27 : vector<8x128xf32>
    %344 = arith.mulf %332, %343 : vector<8x128xf32>
    %345 = arith.addf %341, %344 : vector<8x128xf32>
    %346 = math.tanh %345 : vector<8x128xf32>
    %cst_141 = arith.constant 1.000000e+00 : f32
    %347 = vector.broadcast %cst_141 : f32 to vector<8x128xf32>
    %348 = arith.subf %347, %340 : vector<8x128xf32>
    %349 = arith.mulf %348, %346 : vector<8x128xf32>
    %350 = arith.mulf %340, %280 : vector<8x128xf32>
    %351 = arith.addf %349, %350 : vector<8x128xf32>
    %c7_i32_142 = arith.constant 7 : i32
    %352 = arith.subi %c7_i32_142, %c4_i32 : i32
    %c0_i32_143 = arith.constant 0 : i32
    %c0_i32_144 = arith.constant 0 : i32
    %c0_i32_145 = arith.constant 0 : i32
    %353 = tpu.memref_slice %arg8[%c1_i32, %c0_i32_143, %c0_i32_144, %c0_i32_145] : memref<2x8x8x384xf32, #tpu.memory_space<vmem>> -> memref<1x8x8x384xf32, #tpu.memory_space<vmem>>
    %354 = tpu.memref_squeeze %353 : memref<1x8x8x384xf32, #tpu.memory_space<vmem>> -> memref<8x8x384xf32, #tpu.memory_space<vmem>>
    %355 = arith.index_cast %352 : i32 to index
    %c0_146 = arith.constant 0 : index
    %c0_147 = arith.constant 0 : index
    %356 = vector.load %354[%355, %c0_146, %c0_147] : memref<8x8x384xf32, #tpu.memory_space<vmem>>, vector<1x8x384xf32>
    %357 = vector.shape_cast %356 : vector<1x8x384xf32> to vector<8x384xf32>
    %c1_148 = arith.constant 1 : index
    %c0_149 = arith.constant 0 : index
    %c0_150 = arith.constant 0 : index
    %358 = vector.load %arg3[%c1_148, %c0_149, %c0_150] : memref<2x128x384xf32, #tpu.memory_space<vmem>>, vector<1x128x384xf32>
    %359 = vector.shape_cast %358 : vector<1x128x384xf32> to vector<128x384xf32>
    %cst_151 = arith.constant dense<0.000000e+00> : vector<8x384xf32>
    %360 = tpu.matmul %316, %359, %cst_151 {dimension_numbers = #tpu.dot_dimension_numbers<[1], [0], [0], [1], [0, 0, 1, 1], [], []>} : vector<8x128xf32>, vector<128x384xf32>, vector<8x384xf32> -> vector<8x384xf32>
    %361 = vector.extract_strided_slice %357 {offsets = [0, 0], sizes = [8, 128], strides = [1, 1]} : vector<8x384xf32> to vector<8x128xf32>
    %362 = vector.extract_strided_slice %360 {offsets = [0, 0], sizes = [8, 128], strides = [1, 1]} : vector<8x384xf32> to vector<8x128xf32>
    %363 = arith.addf %361, %362 : vector<8x128xf32>
    %364 = arith.negf %363 : vector<8x128xf32>
    %365 = math.exp %364 : vector<8x128xf32>
    %cst_152 = arith.constant 1.000000e+00 : f32
    %366 = vector.broadcast %cst_152 : f32 to vector<8x128xf32>
    %367 = arith.addf %366, %365 : vector<8x128xf32>
    %368 = arith.divf %366, %367 : vector<8x128xf32>
    %369 = vector.extract_strided_slice %357 {offsets = [0, 128], sizes = [8, 128], strides = [1, 1]} : vector<8x384xf32> to vector<8x128xf32>
    %370 = vector.extract_strided_slice %360 {offsets = [0, 128], sizes = [8, 128], strides = [1, 1]} : vector<8x384xf32> to vector<8x128xf32>
    %371 = arith.addf %369, %370 : vector<8x128xf32>
    %372 = arith.negf %371 : vector<8x128xf32>
    %373 = math.exp %372 : vector<8x128xf32>
    %cst_153 = arith.constant 1.000000e+00 : f32
    %374 = vector.broadcast %cst_153 : f32 to vector<8x128xf32>
    %375 = arith.addf %374, %373 : vector<8x128xf32>
    %376 = arith.divf %374, %375 : vector<8x128xf32>
    %377 = vector.extract_strided_slice %357 {offsets = [0, 256], sizes = [8, 128], strides = [1, 1]} : vector<8x384xf32> to vector<8x128xf32>
    %378 = vector.extract_strided_slice %360 {offsets = [0, 256], sizes = [8, 128], strides = [1, 1]} : vector<8x384xf32> to vector<8x128xf32>
    %379 = arith.addf %378, %31 : vector<8x128xf32>
    %380 = arith.mulf %368, %379 : vector<8x128xf32>
    %381 = arith.addf %377, %380 : vector<8x128xf32>
    %382 = math.tanh %381 : vector<8x128xf32>
    %cst_154 = arith.constant 1.000000e+00 : f32
    %383 = vector.broadcast %cst_154 : f32 to vector<8x128xf32>
    %384 = arith.subf %383, %376 : vector<8x128xf32>
    %385 = arith.mulf %384, %382 : vector<8x128xf32>
    %386 = arith.mulf %376, %316 : vector<8x128xf32>
    %387 = arith.addf %385, %386 : vector<8x128xf32>
    %c5_i32 = arith.constant 5 : i32
    %c0_i32_155 = arith.constant 0 : i32
    %c0_i32_156 = arith.constant 0 : i32
    %c0_i32_157 = arith.constant 0 : i32
    %388 = tpu.memref_slice %arg8[%c0_i32, %c0_i32_155, %c0_i32_156, %c0_i32_157] : memref<2x8x8x384xf32, #tpu.memory_space<vmem>> -> memref<1x8x8x384xf32, #tpu.memory_space<vmem>>
    %389 = tpu.memref_squeeze %388 : memref<1x8x8x384xf32, #tpu.memory_space<vmem>> -> memref<8x8x384xf32, #tpu.memory_space<vmem>>
    %390 = arith.index_cast %c5_i32 : i32 to index
    %c0_158 = arith.constant 0 : index
    %c0_159 = arith.constant 0 : index
    %391 = vector.load %389[%390, %c0_158, %c0_159] : memref<8x8x384xf32, #tpu.memory_space<vmem>>, vector<1x8x384xf32>
    %392 = vector.shape_cast %391 : vector<1x8x384xf32> to vector<8x384xf32>
    %c0_160 = arith.constant 0 : index
    %c0_161 = arith.constant 0 : index
    %c0_162 = arith.constant 0 : index
    %393 = vector.load %arg3[%c0_160, %c0_161, %c0_162] : memref<2x128x384xf32, #tpu.memory_space<vmem>>, vector<1x128x384xf32>
    %394 = vector.shape_cast %393 : vector<1x128x384xf32> to vector<128x384xf32>
    %cst_163 = arith.constant dense<0.000000e+00> : vector<8x384xf32>
    %395 = tpu.matmul %351, %394, %cst_163 {dimension_numbers = #tpu.dot_dimension_numbers<[1], [0], [0], [1], [0, 0, 1, 1], [], []>} : vector<8x128xf32>, vector<128x384xf32>, vector<8x384xf32> -> vector<8x384xf32>
    %396 = vector.extract_strided_slice %392 {offsets = [0, 0], sizes = [8, 128], strides = [1, 1]} : vector<8x384xf32> to vector<8x128xf32>
    %397 = vector.extract_strided_slice %395 {offsets = [0, 0], sizes = [8, 128], strides = [1, 1]} : vector<8x384xf32> to vector<8x128xf32>
    %398 = arith.addf %396, %397 : vector<8x128xf32>
    %399 = arith.negf %398 : vector<8x128xf32>
    %400 = math.exp %399 : vector<8x128xf32>
    %cst_164 = arith.constant 1.000000e+00 : f32
    %401 = vector.broadcast %cst_164 : f32 to vector<8x128xf32>
    %402 = arith.addf %401, %400 : vector<8x128xf32>
    %403 = arith.divf %401, %402 : vector<8x128xf32>
    %404 = vector.extract_strided_slice %392 {offsets = [0, 128], sizes = [8, 128], strides = [1, 1]} : vector<8x384xf32> to vector<8x128xf32>
    %405 = vector.extract_strided_slice %395 {offsets = [0, 128], sizes = [8, 128], strides = [1, 1]} : vector<8x384xf32> to vector<8x128xf32>
    %406 = arith.addf %404, %405 : vector<8x128xf32>
    %407 = arith.negf %406 : vector<8x128xf32>
    %408 = math.exp %407 : vector<8x128xf32>
    %cst_165 = arith.constant 1.000000e+00 : f32
    %409 = vector.broadcast %cst_165 : f32 to vector<8x128xf32>
    %410 = arith.addf %409, %408 : vector<8x128xf32>
    %411 = arith.divf %409, %410 : vector<8x128xf32>
    %412 = vector.extract_strided_slice %392 {offsets = [0, 256], sizes = [8, 128], strides = [1, 1]} : vector<8x384xf32> to vector<8x128xf32>
    %413 = vector.extract_strided_slice %395 {offsets = [0, 256], sizes = [8, 128], strides = [1, 1]} : vector<8x384xf32> to vector<8x128xf32>
    %414 = arith.addf %413, %27 : vector<8x128xf32>
    %415 = arith.mulf %403, %414 : vector<8x128xf32>
    %416 = arith.addf %412, %415 : vector<8x128xf32>
    %417 = math.tanh %416 : vector<8x128xf32>
    %cst_166 = arith.constant 1.000000e+00 : f32
    %418 = vector.broadcast %cst_166 : f32 to vector<8x128xf32>
    %419 = arith.subf %418, %411 : vector<8x128xf32>
    %420 = arith.mulf %419, %417 : vector<8x128xf32>
    %421 = arith.mulf %411, %351 : vector<8x128xf32>
    %422 = arith.addf %420, %421 : vector<8x128xf32>
    %c7_i32_167 = arith.constant 7 : i32
    %423 = arith.subi %c7_i32_167, %c5_i32 : i32
    %c0_i32_168 = arith.constant 0 : i32
    %c0_i32_169 = arith.constant 0 : i32
    %c0_i32_170 = arith.constant 0 : i32
    %424 = tpu.memref_slice %arg8[%c1_i32, %c0_i32_168, %c0_i32_169, %c0_i32_170] : memref<2x8x8x384xf32, #tpu.memory_space<vmem>> -> memref<1x8x8x384xf32, #tpu.memory_space<vmem>>
    %425 = tpu.memref_squeeze %424 : memref<1x8x8x384xf32, #tpu.memory_space<vmem>> -> memref<8x8x384xf32, #tpu.memory_space<vmem>>
    %426 = arith.index_cast %423 : i32 to index
    %c0_171 = arith.constant 0 : index
    %c0_172 = arith.constant 0 : index
    %427 = vector.load %425[%426, %c0_171, %c0_172] : memref<8x8x384xf32, #tpu.memory_space<vmem>>, vector<1x8x384xf32>
    %428 = vector.shape_cast %427 : vector<1x8x384xf32> to vector<8x384xf32>
    %c1_173 = arith.constant 1 : index
    %c0_174 = arith.constant 0 : index
    %c0_175 = arith.constant 0 : index
    %429 = vector.load %arg3[%c1_173, %c0_174, %c0_175] : memref<2x128x384xf32, #tpu.memory_space<vmem>>, vector<1x128x384xf32>
    %430 = vector.shape_cast %429 : vector<1x128x384xf32> to vector<128x384xf32>
    %cst_176 = arith.constant dense<0.000000e+00> : vector<8x384xf32>
    %431 = tpu.matmul %387, %430, %cst_176 {dimension_numbers = #tpu.dot_dimension_numbers<[1], [0], [0], [1], [0, 0, 1, 1], [], []>} : vector<8x128xf32>, vector<128x384xf32>, vector<8x384xf32> -> vector<8x384xf32>
    %432 = vector.extract_strided_slice %428 {offsets = [0, 0], sizes = [8, 128], strides = [1, 1]} : vector<8x384xf32> to vector<8x128xf32>
    %433 = vector.extract_strided_slice %431 {offsets = [0, 0], sizes = [8, 128], strides = [1, 1]} : vector<8x384xf32> to vector<8x128xf32>
    %434 = arith.addf %432, %433 : vector<8x128xf32>
    %435 = arith.negf %434 : vector<8x128xf32>
    %436 = math.exp %435 : vector<8x128xf32>
    %cst_177 = arith.constant 1.000000e+00 : f32
    %437 = vector.broadcast %cst_177 : f32 to vector<8x128xf32>
    %438 = arith.addf %437, %436 : vector<8x128xf32>
    %439 = arith.divf %437, %438 : vector<8x128xf32>
    %440 = vector.extract_strided_slice %428 {offsets = [0, 128], sizes = [8, 128], strides = [1, 1]} : vector<8x384xf32> to vector<8x128xf32>
    %441 = vector.extract_strided_slice %431 {offsets = [0, 128], sizes = [8, 128], strides = [1, 1]} : vector<8x384xf32> to vector<8x128xf32>
    %442 = arith.addf %440, %441 : vector<8x128xf32>
    %443 = arith.negf %442 : vector<8x128xf32>
    %444 = math.exp %443 : vector<8x128xf32>
    %cst_178 = arith.constant 1.000000e+00 : f32
    %445 = vector.broadcast %cst_178 : f32 to vector<8x128xf32>
    %446 = arith.addf %445, %444 : vector<8x128xf32>
    %447 = arith.divf %445, %446 : vector<8x128xf32>
    %448 = vector.extract_strided_slice %428 {offsets = [0, 256], sizes = [8, 128], strides = [1, 1]} : vector<8x384xf32> to vector<8x128xf32>
    %449 = vector.extract_strided_slice %431 {offsets = [0, 256], sizes = [8, 128], strides = [1, 1]} : vector<8x384xf32> to vector<8x128xf32>
    %450 = arith.addf %449, %31 : vector<8x128xf32>
    %451 = arith.mulf %439, %450 : vector<8x128xf32>
    %452 = arith.addf %448, %451 : vector<8x128xf32>
    %453 = math.tanh %452 : vector<8x128xf32>
    %cst_179 = arith.constant 1.000000e+00 : f32
    %454 = vector.broadcast %cst_179 : f32 to vector<8x128xf32>
    %455 = arith.subf %454, %447 : vector<8x128xf32>
    %456 = arith.mulf %455, %453 : vector<8x128xf32>
    %457 = arith.mulf %447, %387 : vector<8x128xf32>
    %458 = arith.addf %456, %457 : vector<8x128xf32>
    %c6_i32 = arith.constant 6 : i32
    %c0_i32_180 = arith.constant 0 : i32
    %c0_i32_181 = arith.constant 0 : i32
    %c0_i32_182 = arith.constant 0 : i32
    %459 = tpu.memref_slice %arg8[%c0_i32, %c0_i32_180, %c0_i32_181, %c0_i32_182] : memref<2x8x8x384xf32, #tpu.memory_space<vmem>> -> memref<1x8x8x384xf32, #tpu.memory_space<vmem>>
    %460 = tpu.memref_squeeze %459 : memref<1x8x8x384xf32, #tpu.memory_space<vmem>> -> memref<8x8x384xf32, #tpu.memory_space<vmem>>
    %461 = arith.index_cast %c6_i32 : i32 to index
    %c0_183 = arith.constant 0 : index
    %c0_184 = arith.constant 0 : index
    %462 = vector.load %460[%461, %c0_183, %c0_184] : memref<8x8x384xf32, #tpu.memory_space<vmem>>, vector<1x8x384xf32>
    %463 = vector.shape_cast %462 : vector<1x8x384xf32> to vector<8x384xf32>
    %c0_185 = arith.constant 0 : index
    %c0_186 = arith.constant 0 : index
    %c0_187 = arith.constant 0 : index
    %464 = vector.load %arg3[%c0_185, %c0_186, %c0_187] : memref<2x128x384xf32, #tpu.memory_space<vmem>>, vector<1x128x384xf32>
    %465 = vector.shape_cast %464 : vector<1x128x384xf32> to vector<128x384xf32>
    %cst_188 = arith.constant dense<0.000000e+00> : vector<8x384xf32>
    %466 = tpu.matmul %422, %465, %cst_188 {dimension_numbers = #tpu.dot_dimension_numbers<[1], [0], [0], [1], [0, 0, 1, 1], [], []>} : vector<8x128xf32>, vector<128x384xf32>, vector<8x384xf32> -> vector<8x384xf32>
    %467 = vector.extract_strided_slice %463 {offsets = [0, 0], sizes = [8, 128], strides = [1, 1]} : vector<8x384xf32> to vector<8x128xf32>
    %468 = vector.extract_strided_slice %466 {offsets = [0, 0], sizes = [8, 128], strides = [1, 1]} : vector<8x384xf32> to vector<8x128xf32>
    %469 = arith.addf %467, %468 : vector<8x128xf32>
    %470 = arith.negf %469 : vector<8x128xf32>
    %471 = math.exp %470 : vector<8x128xf32>
    %cst_189 = arith.constant 1.000000e+00 : f32
    %472 = vector.broadcast %cst_189 : f32 to vector<8x128xf32>
    %473 = arith.addf %472, %471 : vector<8x128xf32>
    %474 = arith.divf %472, %473 : vector<8x128xf32>
    %475 = vector.extract_strided_slice %463 {offsets = [0, 128], sizes = [8, 128], strides = [1, 1]} : vector<8x384xf32> to vector<8x128xf32>
    %476 = vector.extract_strided_slice %466 {offsets = [0, 128], sizes = [8, 128], strides = [1, 1]} : vector<8x384xf32> to vector<8x128xf32>
    %477 = arith.addf %475, %476 : vector<8x128xf32>
    %478 = arith.negf %477 : vector<8x128xf32>
    %479 = math.exp %478 : vector<8x128xf32>
    %cst_190 = arith.constant 1.000000e+00 : f32
    %480 = vector.broadcast %cst_190 : f32 to vector<8x128xf32>
    %481 = arith.addf %480, %479 : vector<8x128xf32>
    %482 = arith.divf %480, %481 : vector<8x128xf32>
    %483 = vector.extract_strided_slice %463 {offsets = [0, 256], sizes = [8, 128], strides = [1, 1]} : vector<8x384xf32> to vector<8x128xf32>
    %484 = vector.extract_strided_slice %466 {offsets = [0, 256], sizes = [8, 128], strides = [1, 1]} : vector<8x384xf32> to vector<8x128xf32>
    %485 = arith.addf %484, %27 : vector<8x128xf32>
    %486 = arith.mulf %474, %485 : vector<8x128xf32>
    %487 = arith.addf %483, %486 : vector<8x128xf32>
    %488 = math.tanh %487 : vector<8x128xf32>
    %cst_191 = arith.constant 1.000000e+00 : f32
    %489 = vector.broadcast %cst_191 : f32 to vector<8x128xf32>
    %490 = arith.subf %489, %482 : vector<8x128xf32>
    %491 = arith.mulf %490, %488 : vector<8x128xf32>
    %492 = arith.mulf %482, %422 : vector<8x128xf32>
    %493 = arith.addf %491, %492 : vector<8x128xf32>
    %c7_i32_192 = arith.constant 7 : i32
    %494 = arith.subi %c7_i32_192, %c6_i32 : i32
    %c0_i32_193 = arith.constant 0 : i32
    %c0_i32_194 = arith.constant 0 : i32
    %c0_i32_195 = arith.constant 0 : i32
    %495 = tpu.memref_slice %arg8[%c1_i32, %c0_i32_193, %c0_i32_194, %c0_i32_195] : memref<2x8x8x384xf32, #tpu.memory_space<vmem>> -> memref<1x8x8x384xf32, #tpu.memory_space<vmem>>
    %496 = tpu.memref_squeeze %495 : memref<1x8x8x384xf32, #tpu.memory_space<vmem>> -> memref<8x8x384xf32, #tpu.memory_space<vmem>>
    %497 = arith.index_cast %494 : i32 to index
    %c0_196 = arith.constant 0 : index
    %c0_197 = arith.constant 0 : index
    %498 = vector.load %496[%497, %c0_196, %c0_197] : memref<8x8x384xf32, #tpu.memory_space<vmem>>, vector<1x8x384xf32>
    %499 = vector.shape_cast %498 : vector<1x8x384xf32> to vector<8x384xf32>
    %c1_198 = arith.constant 1 : index
    %c0_199 = arith.constant 0 : index
    %c0_200 = arith.constant 0 : index
    %500 = vector.load %arg3[%c1_198, %c0_199, %c0_200] : memref<2x128x384xf32, #tpu.memory_space<vmem>>, vector<1x128x384xf32>
    %501 = vector.shape_cast %500 : vector<1x128x384xf32> to vector<128x384xf32>
    %cst_201 = arith.constant dense<0.000000e+00> : vector<8x384xf32>
    %502 = tpu.matmul %458, %501, %cst_201 {dimension_numbers = #tpu.dot_dimension_numbers<[1], [0], [0], [1], [0, 0, 1, 1], [], []>} : vector<8x128xf32>, vector<128x384xf32>, vector<8x384xf32> -> vector<8x384xf32>
    %503 = vector.extract_strided_slice %499 {offsets = [0, 0], sizes = [8, 128], strides = [1, 1]} : vector<8x384xf32> to vector<8x128xf32>
    %504 = vector.extract_strided_slice %502 {offsets = [0, 0], sizes = [8, 128], strides = [1, 1]} : vector<8x384xf32> to vector<8x128xf32>
    %505 = arith.addf %503, %504 : vector<8x128xf32>
    %506 = arith.negf %505 : vector<8x128xf32>
    %507 = math.exp %506 : vector<8x128xf32>
    %cst_202 = arith.constant 1.000000e+00 : f32
    %508 = vector.broadcast %cst_202 : f32 to vector<8x128xf32>
    %509 = arith.addf %508, %507 : vector<8x128xf32>
    %510 = arith.divf %508, %509 : vector<8x128xf32>
    %511 = vector.extract_strided_slice %499 {offsets = [0, 128], sizes = [8, 128], strides = [1, 1]} : vector<8x384xf32> to vector<8x128xf32>
    %512 = vector.extract_strided_slice %502 {offsets = [0, 128], sizes = [8, 128], strides = [1, 1]} : vector<8x384xf32> to vector<8x128xf32>
    %513 = arith.addf %511, %512 : vector<8x128xf32>
    %514 = arith.negf %513 : vector<8x128xf32>
    %515 = math.exp %514 : vector<8x128xf32>
    %cst_203 = arith.constant 1.000000e+00 : f32
    %516 = vector.broadcast %cst_203 : f32 to vector<8x128xf32>
    %517 = arith.addf %516, %515 : vector<8x128xf32>
    %518 = arith.divf %516, %517 : vector<8x128xf32>
    %519 = vector.extract_strided_slice %499 {offsets = [0, 256], sizes = [8, 128], strides = [1, 1]} : vector<8x384xf32> to vector<8x128xf32>
    %520 = vector.extract_strided_slice %502 {offsets = [0, 256], sizes = [8, 128], strides = [1, 1]} : vector<8x384xf32> to vector<8x128xf32>
    %521 = arith.addf %520, %31 : vector<8x128xf32>
    %522 = arith.mulf %510, %521 : vector<8x128xf32>
    %523 = arith.addf %519, %522 : vector<8x128xf32>
    %524 = math.tanh %523 : vector<8x128xf32>
    %cst_204 = arith.constant 1.000000e+00 : f32
    %525 = vector.broadcast %cst_204 : f32 to vector<8x128xf32>
    %526 = arith.subf %525, %518 : vector<8x128xf32>
    %527 = arith.mulf %526, %524 : vector<8x128xf32>
    %528 = arith.mulf %518, %458 : vector<8x128xf32>
    %529 = arith.addf %527, %528 : vector<8x128xf32>
    %c7_i32_205 = arith.constant 7 : i32
    %c0_i32_206 = arith.constant 0 : i32
    %c0_i32_207 = arith.constant 0 : i32
    %c0_i32_208 = arith.constant 0 : i32
    %530 = tpu.memref_slice %arg8[%c0_i32, %c0_i32_206, %c0_i32_207, %c0_i32_208] : memref<2x8x8x384xf32, #tpu.memory_space<vmem>> -> memref<1x8x8x384xf32, #tpu.memory_space<vmem>>
    %531 = tpu.memref_squeeze %530 : memref<1x8x8x384xf32, #tpu.memory_space<vmem>> -> memref<8x8x384xf32, #tpu.memory_space<vmem>>
    %532 = arith.index_cast %c7_i32_205 : i32 to index
    %c0_209 = arith.constant 0 : index
    %c0_210 = arith.constant 0 : index
    %533 = vector.load %531[%532, %c0_209, %c0_210] : memref<8x8x384xf32, #tpu.memory_space<vmem>>, vector<1x8x384xf32>
    %534 = vector.shape_cast %533 : vector<1x8x384xf32> to vector<8x384xf32>
    %c0_211 = arith.constant 0 : index
    %c0_212 = arith.constant 0 : index
    %c0_213 = arith.constant 0 : index
    %535 = vector.load %arg3[%c0_211, %c0_212, %c0_213] : memref<2x128x384xf32, #tpu.memory_space<vmem>>, vector<1x128x384xf32>
    %536 = vector.shape_cast %535 : vector<1x128x384xf32> to vector<128x384xf32>
    %cst_214 = arith.constant dense<0.000000e+00> : vector<8x384xf32>
    %537 = tpu.matmul %493, %536, %cst_214 {dimension_numbers = #tpu.dot_dimension_numbers<[1], [0], [0], [1], [0, 0, 1, 1], [], []>} : vector<8x128xf32>, vector<128x384xf32>, vector<8x384xf32> -> vector<8x384xf32>
    %538 = vector.extract_strided_slice %534 {offsets = [0, 0], sizes = [8, 128], strides = [1, 1]} : vector<8x384xf32> to vector<8x128xf32>
    %539 = vector.extract_strided_slice %537 {offsets = [0, 0], sizes = [8, 128], strides = [1, 1]} : vector<8x384xf32> to vector<8x128xf32>
    %540 = arith.addf %538, %539 : vector<8x128xf32>
    %541 = arith.negf %540 : vector<8x128xf32>
    %542 = math.exp %541 : vector<8x128xf32>
    %cst_215 = arith.constant 1.000000e+00 : f32
    %543 = vector.broadcast %cst_215 : f32 to vector<8x128xf32>
    %544 = arith.addf %543, %542 : vector<8x128xf32>
    %545 = arith.divf %543, %544 : vector<8x128xf32>
    %546 = vector.extract_strided_slice %534 {offsets = [0, 128], sizes = [8, 128], strides = [1, 1]} : vector<8x384xf32> to vector<8x128xf32>
    %547 = vector.extract_strided_slice %537 {offsets = [0, 128], sizes = [8, 128], strides = [1, 1]} : vector<8x384xf32> to vector<8x128xf32>
    %548 = arith.addf %546, %547 : vector<8x128xf32>
    %549 = arith.negf %548 : vector<8x128xf32>
    %550 = math.exp %549 : vector<8x128xf32>
    %cst_216 = arith.constant 1.000000e+00 : f32
    %551 = vector.broadcast %cst_216 : f32 to vector<8x128xf32>
    %552 = arith.addf %551, %550 : vector<8x128xf32>
    %553 = arith.divf %551, %552 : vector<8x128xf32>
    %554 = vector.extract_strided_slice %534 {offsets = [0, 256], sizes = [8, 128], strides = [1, 1]} : vector<8x384xf32> to vector<8x128xf32>
    %555 = vector.extract_strided_slice %537 {offsets = [0, 256], sizes = [8, 128], strides = [1, 1]} : vector<8x384xf32> to vector<8x128xf32>
    %556 = arith.addf %555, %27 : vector<8x128xf32>
    %557 = arith.mulf %545, %556 : vector<8x128xf32>
    %558 = arith.addf %554, %557 : vector<8x128xf32>
    %559 = math.tanh %558 : vector<8x128xf32>
    %cst_217 = arith.constant 1.000000e+00 : f32
    %560 = vector.broadcast %cst_217 : f32 to vector<8x128xf32>
    %561 = arith.subf %560, %553 : vector<8x128xf32>
    %562 = arith.mulf %561, %559 : vector<8x128xf32>
    %563 = arith.mulf %553, %493 : vector<8x128xf32>
    %564 = arith.addf %562, %563 : vector<8x128xf32>
    %c7_i32_218 = arith.constant 7 : i32
    %565 = arith.subi %c7_i32_218, %c7_i32_205 : i32
    %c0_i32_219 = arith.constant 0 : i32
    %c0_i32_220 = arith.constant 0 : i32
    %c0_i32_221 = arith.constant 0 : i32
    %566 = tpu.memref_slice %arg8[%c1_i32, %c0_i32_219, %c0_i32_220, %c0_i32_221] : memref<2x8x8x384xf32, #tpu.memory_space<vmem>> -> memref<1x8x8x384xf32, #tpu.memory_space<vmem>>
    %567 = tpu.memref_squeeze %566 : memref<1x8x8x384xf32, #tpu.memory_space<vmem>> -> memref<8x8x384xf32, #tpu.memory_space<vmem>>
    %568 = arith.index_cast %565 : i32 to index
    %c0_222 = arith.constant 0 : index
    %c0_223 = arith.constant 0 : index
    %569 = vector.load %567[%568, %c0_222, %c0_223] : memref<8x8x384xf32, #tpu.memory_space<vmem>>, vector<1x8x384xf32>
    %570 = vector.shape_cast %569 : vector<1x8x384xf32> to vector<8x384xf32>
    %c1_224 = arith.constant 1 : index
    %c0_225 = arith.constant 0 : index
    %c0_226 = arith.constant 0 : index
    %571 = vector.load %arg3[%c1_224, %c0_225, %c0_226] : memref<2x128x384xf32, #tpu.memory_space<vmem>>, vector<1x128x384xf32>
    %572 = vector.shape_cast %571 : vector<1x128x384xf32> to vector<128x384xf32>
    %cst_227 = arith.constant dense<0.000000e+00> : vector<8x384xf32>
    %573 = tpu.matmul %529, %572, %cst_227 {dimension_numbers = #tpu.dot_dimension_numbers<[1], [0], [0], [1], [0, 0, 1, 1], [], []>} : vector<8x128xf32>, vector<128x384xf32>, vector<8x384xf32> -> vector<8x384xf32>
    %574 = vector.extract_strided_slice %570 {offsets = [0, 0], sizes = [8, 128], strides = [1, 1]} : vector<8x384xf32> to vector<8x128xf32>
    %575 = vector.extract_strided_slice %573 {offsets = [0, 0], sizes = [8, 128], strides = [1, 1]} : vector<8x384xf32> to vector<8x128xf32>
    %576 = arith.addf %574, %575 : vector<8x128xf32>
    %577 = arith.negf %576 : vector<8x128xf32>
    %578 = math.exp %577 : vector<8x128xf32>
    %cst_228 = arith.constant 1.000000e+00 : f32
    %579 = vector.broadcast %cst_228 : f32 to vector<8x128xf32>
    %580 = arith.addf %579, %578 : vector<8x128xf32>
    %581 = arith.divf %579, %580 : vector<8x128xf32>
    %582 = vector.extract_strided_slice %570 {offsets = [0, 128], sizes = [8, 128], strides = [1, 1]} : vector<8x384xf32> to vector<8x128xf32>
    %583 = vector.extract_strided_slice %573 {offsets = [0, 128], sizes = [8, 128], strides = [1, 1]} : vector<8x384xf32> to vector<8x128xf32>
    %584 = arith.addf %582, %583 : vector<8x128xf32>
    %585 = arith.negf %584 : vector<8x128xf32>
    %586 = math.exp %585 : vector<8x128xf32>
    %cst_229 = arith.constant 1.000000e+00 : f32
    %587 = vector.broadcast %cst_229 : f32 to vector<8x128xf32>
    %588 = arith.addf %587, %586 : vector<8x128xf32>
    %589 = arith.divf %587, %588 : vector<8x128xf32>
    %590 = vector.extract_strided_slice %570 {offsets = [0, 256], sizes = [8, 128], strides = [1, 1]} : vector<8x384xf32> to vector<8x128xf32>
    %591 = vector.extract_strided_slice %573 {offsets = [0, 256], sizes = [8, 128], strides = [1, 1]} : vector<8x384xf32> to vector<8x128xf32>
    %592 = arith.addf %591, %31 : vector<8x128xf32>
    %593 = arith.mulf %581, %592 : vector<8x128xf32>
    %594 = arith.addf %590, %593 : vector<8x128xf32>
    %595 = math.tanh %594 : vector<8x128xf32>
    %cst_230 = arith.constant 1.000000e+00 : f32
    %596 = vector.broadcast %cst_230 : f32 to vector<8x128xf32>
    %597 = arith.subf %596, %589 : vector<8x128xf32>
    %598 = arith.mulf %597, %595 : vector<8x128xf32>
    %599 = arith.mulf %589, %529 : vector<8x128xf32>
    %600 = arith.addf %598, %599 : vector<8x128xf32>
    %c8_i32 = arith.constant 8 : i32
    %c0_231 = arith.constant 0 : index
    %c0_232 = arith.constant 0 : index
    %c0_233 = arith.constant 0 : index
    %601 = vector.load %arg5[%c0_231, %c0_232, %c0_233] : memref<2x128x128xf32, #tpu.memory_space<vmem>>, vector<1x128x128xf32>
    %602 = vector.shape_cast %601 : vector<1x128x128xf32> to vector<128x128xf32>
    %cst_234 = arith.constant dense<0.000000e+00> : vector<8x128xf32>
    %603 = tpu.matmul %564, %602, %cst_234 {dimension_numbers = #tpu.dot_dimension_numbers<[1], [0], [0], [1], [0, 0, 1, 1], [], []>} : vector<8x128xf32>, vector<128x128xf32>, vector<8x128xf32> -> vector<8x128xf32>
    %c1_235 = arith.constant 1 : index
    %c0_236 = arith.constant 0 : index
    %c0_237 = arith.constant 0 : index
    %604 = vector.load %arg5[%c1_235, %c0_236, %c0_237] : memref<2x128x128xf32, #tpu.memory_space<vmem>>, vector<1x128x128xf32>
    %605 = vector.shape_cast %604 : vector<1x128x128xf32> to vector<128x128xf32>
    %cst_238 = arith.constant dense<0.000000e+00> : vector<8x128xf32>
    %606 = tpu.matmul %600, %605, %cst_238 {dimension_numbers = #tpu.dot_dimension_numbers<[1], [0], [0], [1], [0, 0, 1, 1], [], []>} : vector<8x128xf32>, vector<128x128xf32>, vector<8x128xf32> -> vector<8x128xf32>
    %607 = arith.addf %603, %606 : vector<8x128xf32>
    %c0_239 = arith.constant 0 : index
    %c0_240 = arith.constant 0 : index
    %608 = vector.load %arg6[%c0_239, %c0_240] : memref<1x128xf32, #tpu.memory_space<vmem>>, vector<1x128xf32>
    %609 = vector.broadcast %608 : vector<1x128xf32> to vector<8x128xf32>
    %610 = arith.addf %607, %609 : vector<8x128xf32>
    %c0_241 = arith.constant 0 : index
    %c0_242 = arith.constant 0 : index
    %611 = vector.load %arg7[%c0_241, %c0_242] : memref<8x128xf32, #tpu.memory_space<vmem>>, vector<8x128xf32>
    tpu.vector_store %arg7[%c0_241, %c0_242], %610 {strides = array<i32>} : memref<8x128xf32, #tpu.memory_space<vmem>>, vector<8x128xf32>,
    return
  }
}

</mosaic_0001>

<llo_original>
// kernel: tpu_custom_call.1
$region0: #{tpu_custom_call.1}
  #allocation0 [shape = 'u32[]', space=smem, size = 0x4, offset = 0x4, fixed_abs, tag = 'smem constant byte address 0x4 - core index']
  #allocation1 [shape = 'u32[144,128]{1,0:T(1,128)}', space=vmem, size = 0x12000, scoped, tag = 'internal scratch']
  #allocation2 [shape = 'f32[2,8,8,384]{3,2,1,0:T(8,128)}', space=vmem, size = 0x30000, scoped, tag = 'scratch operand']
  %s0 = inlined_call_operand.hbm [shape: f32[8,8,128], index: 0, kind: input, shape index: {}]
  %s1 = inlined_call_operand.hbm [shape: f32[2,128,384], index: 1, kind: input, shape index: {}]
  %s2 = inlined_call_operand.hbm [shape: f32[2,1,384], index: 2, kind: input, shape index: {}]
  %s3 = inlined_call_operand.hbm [shape: f32[2,128,384], index: 3, kind: input, shape index: {}]
  %s4 = inlined_call_operand.vmem [shape: f32[2,1,128], index: 4, kind: input, shape index: {}]
  %s5 = inlined_call_operand.hbm [shape: f32[2,128,128], index: 5, kind: input, shape index: {}]
  %s6 = inlined_call_operand.vmem [shape: f32[1,128], index: 6, kind: input, shape index: {}]
  %s7 = inlined_call_operand.hbm [shape: f32[8,128], index: 7, kind: output, shape index: {}]
  %s8 = sld [smem:[#allocation0]]
  $region58: #{tpu_custom_call.1} parent=0
    _
  %s10 = ssub.s32 1, %s8
  %s11 = scalar_select 0, %s10, %s8
  $region1: #{tpu_custom_call.1} parent=0
    #allocation3 [shape = 'u8[32768]{0}', space=vmem, size = 0x8000, scoped, tag = 'input window, operand 0, single buffered']
    #allocation4 [shape = 's32[1]{0}', space=sflag, size = 0x4, scoped, tag = 'scoped memory for tpu_custom_call.1']
    #allocation5 [shape = 's32[1]{0}', space=sflag, size = 0x4, scoped, tag = 'scoped memory for tpu_custom_call.1']
    #allocation6 [shape = 'u8[393216]{0}', space=vmem, size = 0x60000, scoped, tag = 'input window, operand 1, single buffered']
    #allocation7 [shape = 's32[1]{0}', space=sflag, size = 0x4, scoped, tag = 'scoped memory for tpu_custom_call.1']
    #allocation8 [shape = 'u8[3072]{0}', space=vmem, size = 0xc00, scoped, tag = 'input window, operand 2, single buffered']
    #allocation9 [shape = 'u8[393216]{0}', space=vmem, size = 0x60000, scoped, tag = 'input window, operand 3, single buffered']
    #allocation10 [shape = 's32[1]{0}', space=sflag, size = 0x4, scoped, tag = 'scoped memory for tpu_custom_call.1']
    #allocation11 [shape = 'u8[131072]{0}', space=vmem, size = 0x20000, scoped, tag = 'input window, operand 5, single buffered']
    #allocation12 [shape = 'u8[4096]{0}', space=vmem, size = 0x1000, scoped, tag = 'output window, operand 0, single buffered']
    %12 = vsyncpa [#allocation4], 0
    %13 = vsyncpa [#allocation7], 0
    %14 = vsyncpa [#allocation10], 0
    %15 = vsyncpa [#allocation5], 0
    // Predicated region
    $region2: #{tpu_custom_call.1} parent=1 // pred_check
      _
    $region3: #{tpu_custom_call.1} parent=1 // pred_check_branch
      %17 = sbr.rel (0) target = $region5
    $region4: #{tpu_custom_call.1} parent=1 // pred_region
      %s19 = ssub.s32 1024, 1024
      %20 = vsyncadd [#allocation4], %s19
      %s21 = sshll.u32 [#allocation3], 4
      %s22 = int_to_ptr.vmem [resolvable:$true] %s21
      %27 = dma.hbm_to_vmem [thread:$0]  %s0, 1024, %s22, [#allocation4], 128, 128, 8
    $region5: #{tpu_custom_call.1} parent=1 // pred_fallthru
      _
    // Predicated region
    $region6: #{tpu_custom_call.1} parent=1 // pred_check
      _
    $region7: #{tpu_custom_call.1} parent=1 // pred_check_branch
      %29 = sbr.rel (0) target = $region9
    $region8: #{tpu_custom_call.1} parent=1 // pred_region
      %s31 = ssub.s32 12288, 12288
      %32 = vsyncadd [#allocation7], %s31
      %s33 = sshll.u32 [#allocation6], 4
      %s34 = int_to_ptr.vmem [resolvable:$true] %s33
      %39 = dma.hbm_to_vmem [thread:$0]  %s1, 12288, %s34, [#allocation7], 384, 384, 24
    $region9: #{tpu_custom_call.1} parent=1 // pred_fallthru
      _
    // Predicated region
    $region10: #{tpu_custom_call.1} parent=1 // pred_check
      _
    $region11: #{tpu_custom_call.1} parent=1 // pred_check_branch
      %41 = sbr.rel (0) target = $region13
    $region12: #{tpu_custom_call.1} parent=1 // pred_region
      %s43 = ssub.s32 96, 96
      %44 = vsyncadd [#allocation7], %s43
      %s45 = sshll.u32 [#allocation8], 4
      %s46 = int_to_ptr.vmem [resolvable:$true] %s45
      %51 = dma.hbm_to_vmem [thread:$0]  %s2, 96, %s46, [#allocation7], 48, 48, 3
    $region13: #{tpu_custom_call.1} parent=1 // pred_fallthru
      _
    // Predicated region
    $region14: #{tpu_custom_call.1} parent=1 // pred_check
      _
    $region15: #{tpu_custom_call.1} parent=1 // pred_check_branch
      %53 = sbr.rel (0) target = $region17
    $region16: #{tpu_custom_call.1} parent=1 // pred_region
      %s55 = ssub.s32 12288, 12288
      %56 = vsyncadd [#allocation10], %s55
      %s57 = sshll.u32 [#allocation9], 4
      %s58 = int_to_ptr.vmem [resolvable:$true] %s57
      %63 = dma.hbm_to_vmem [thread:$0]  %s3, 12288, %s58, [#allocation10], 384, 384, 24
    $region17: #{tpu_custom_call.1} parent=1 // pred_fallthru
      _
    // Predicated region
    $region18: #{tpu_custom_call.1} parent=1 // pred_check
      _
    $region19: #{tpu_custom_call.1} parent=1 // pred_check_branch
      %65 = sbr.rel (0) target = $region21
    $region20: #{tpu_custom_call.1} parent=1 // pred_region
      _
    $region21: #{tpu_custom_call.1} parent=1 // pred_fallthru
      _
    // Predicated region
    $region22: #{tpu_custom_call.1} parent=1 // pred_check
      _
    $region23: #{tpu_custom_call.1} parent=1 // pred_check_branch
      %67 = sbr.rel (0) target = $region25
    $region24: #{tpu_custom_call.1} parent=1 // pred_region
      %s69 = ssub.s32 4096, 4096
      %70 = vsyncadd [#allocation10], %s69
      %s71 = sshll.u32 [#allocation11], 4
      %s72 = int_to_ptr.vmem [resolvable:$true] %s71
      %77 = dma.hbm_to_vmem [thread:$0]  %s5, 4096, %s72, [#allocation10], 128, 128, 8
    $region25: #{tpu_custom_call.1} parent=1 // pred_fallthru
      _
    // Predicated region
    $region26: #{tpu_custom_call.1} parent=1 // pred_check
      _
    $region27: #{tpu_custom_call.1} parent=1 // pred_check_branch
      %79 = sbr.rel (0) target = $region29
    $region28: #{tpu_custom_call.1} parent=1 // pred_region
      _
    $region29: #{tpu_custom_call.1} parent=1 // pred_fallthru
      _
    // Predicated region
    $region30: #{tpu_custom_call.1} parent=1 // pred_check
      _
    $region31: #{tpu_custom_call.1} parent=1 // pred_check_branch
      %81 = sbr.rel (0) target = $region33
    $region32: #{tpu_custom_call.1} parent=1 // pred_region
      %82 = dma.done [#allocation4], 1024
    $region33: #{tpu_custom_call.1} parent=1 // pred_fallthru
      _
    // Predicated region
    $region34: #{tpu_custom_call.1} parent=1 // pred_check
      _
    $region35: #{tpu_custom_call.1} parent=1 // pred_check_branch
      %84 = sbr.rel (0) target = $region37
    $region36: #{tpu_custom_call.1} parent=1 // pred_region
      %85 = dma.done [#allocation7], 12288
    $region37: #{tpu_custom_call.1} parent=1 // pred_fallthru
      _
    // Predicated region
    $region38: #{tpu_custom_call.1} parent=1 // pred_check
      _
    $region39: #{tpu_custom_call.1} parent=1 // pred_check_branch
      %87 = sbr.rel (0) target = $region41
    $region40: #{tpu_custom_call.1} parent=1 // pred_region
      %88 = dma.done [#allocation7], 96
    $region41: #{tpu_custom_call.1} parent=1 // pred_fallthru
      _
    // Predicated region
    $region42: #{tpu_custom_call.1} parent=1 // pred_check
      _
    $region43: #{tpu_custom_call.1} parent=1 // pred_check_branch
      %90 = sbr.rel (0) target = $region45
    $region44: #{tpu_custom_call.1} parent=1 // pred_region
      %91 = dma.done [#allocation10], 12288
    $region45: #{tpu_custom_call.1} parent=1 // pred_fallthru
      _
    // Predicated region
    $region46: #{tpu_custom_call.1} parent=1 // pred_check
      _
    $region47: #{tpu_custom_call.1} parent=1 // pred_check_branch
      %93 = sbr.rel (0) target = $region49
    $region48: #{tpu_custom_call.1} parent=1 // pred_region
      %94 = dma.done [#allocation10], 4096
    $region49: #{tpu_custom_call.1} parent=1 // pred_fallthru
      _
    %v95 = vld [vmem:[#allocation3] sm:$0xff]
    %v96 = vld [vmem:[#allocation3 + $0x8] sm:$0xff]
    %v97 = vld [vmem:[#allocation3 + $0x10] sm:$0xff]
    %v98 = vld [vmem:[#allocation3 + $0x18] sm:$0xff]
    %v99 = vld [vmem:[#allocation3 + $0x20] sm:$0xff]
    %v100 = vld [vmem:[#allocation3 + $0x28] sm:$0xff]
    %v101 = vld [vmem:[#allocation3 + $0x30] sm:$0xff]
    %v102 = vld [vmem:[#allocation3 + $0x38] sm:$0xff]
    %v103 = vld [vmem:[#allocation6] sm:$0xff]
    %v104 = vld [vmem:[#allocation6 + $0x8] sm:$0xff]
    %v105 = vld [vmem:[#allocation6 + $0x10] sm:$0xff]
    %v106 = vld [vmem:[#allocation6 + $0x18] sm:$0xff]
    %v107 = vld [vmem:[#allocation6 + $0x20] sm:$0xff]
    %v108 = vld [vmem:[#allocation6 + $0x28] sm:$0xff]
    %v109 = vld [vmem:[#allocation6 + $0x30] sm:$0xff]
    %v110 = vld [vmem:[#allocation6 + $0x38] sm:$0xff]
    %v111 = vld [vmem:[#allocation6 + $0x40] sm:$0xff]
    %v112 = vld [vmem:[#allocation6 + $0x48] sm:$0xff]
    %v113 = vld [vmem:[#allocation6 + $0x50] sm:$0xff]
    %v114 = vld [vmem:[#allocation6 + $0x58] sm:$0xff]
    %v115 = vld [vmem:[#allocation6 + $0x60] sm:$0xff]
    %v116 = vld [vmem:[#allocation6 + $0x68] sm:$0xff]
    %v117 = vld [vmem:[#allocation6 + $0x70] sm:$0xff]
    %v118 = vld [vmem:[#allocation6 + $0x78] sm:$0xff]
    %v119 = vld [vmem:[#allocation6 + $0x80] sm:$0xff]
    %v120 = vld [vmem:[#allocation6 + $0x88] sm:$0xff]
    %v121 = vld [vmem:[#allocation6 + $0x90] sm:$0xff]
    %v122 = vld [vmem:[#allocation6 + $0x98] sm:$0xff]
    %v123 = vld [vmem:[#allocation6 + $0xa0] sm:$0xff]
    %v124 = vld [vmem:[#allocation6 + $0xa8] sm:$0xff]
    %v125 = vld [vmem:[#allocation6 + $0xb0] sm:$0xff]
    %v126 = vld [vmem:[#allocation6 + $0xb8] sm:$0xff]
    %v127 = vld [vmem:[#allocation6 + $0xc0] sm:$0xff]
    %v128 = vld [vmem:[#allocation6 + $0xc8] sm:$0xff]
    %v129 = vld [vmem:[#allocation6 + $0xd0] sm:$0xff]
    %v130 = vld [vmem:[#allocation6 + $0xd8] sm:$0xff]
    %v131 = vld [vmem:[#allocation6 + $0xe0] sm:$0xff]
    %v132 = vld [vmem:[#allocation6 + $0xe8] sm:$0xff]
    %v133 = vld [vmem:[#allocation6 + $0xf0] sm:$0xff]
    %v134 = vld [vmem:[#allocation6 + $0xf8] sm:$0xff]
    %v135 = vld [vmem:[#allocation6 + $0x100] sm:$0xff]
    %v136 = vld [vmem:[#allocation6 + $0x108] sm:$0xff]
    %v137 = vld [vmem:[#allocation6 + $0x110] sm:$0xff]
    %v138 = vld [vmem:[#allocation6 + $0x118] sm:$0xff]
    %v139 = vld [vmem:[#allocation6 + $0x120] sm:$0xff]
    %v140 = vld [vmem:[#allocation6 + $0x128] sm:$0xff]
    %v141 = vld [vmem:[#allocation6 + $0x130] sm:$0xff]
    %v142 = vld [vmem:[#allocation6 + $0x138] sm:$0xff]
    %v143 = vld [vmem:[#allocation6 + $0x140] sm:$0xff]
    %v144 = vld [vmem:[#allocation6 + $0x148] sm:$0xff]
    %v145 = vld [vmem:[#allocation6 + $0x150] sm:$0xff]
    %v146 = vld [vmem:[#allocation6 + $0x158] sm:$0xff]
    %v147 = vld [vmem:[#allocation6 + $0x160] sm:$0xff]
    %v148 = vld [vmem:[#allocation6 + $0x168] sm:$0xff]
    %v149 = vld [vmem:[#allocation6 + $0x170] sm:$0xff]
    %v150 = vld [vmem:[#allocation6 + $0x178] sm:$0xff]
    %v151 = vld [vmem:[#allocation8] sm:$0x7]
    %v153 = vlaneseq
    %v154 = vshrl.u32 %v153, 7
    %v155 = vsub.s32 0, %v154
    %v156 = vrot.slane %v151, %v155
    %v157 = vlaneseq
    %v158 = vshrl.u32 %v157, 7
    %v159 = vsub.s32 1, %v158
    %v160 = vrot.slane %v151, %v159
    %v161 = vlaneseq
    %v162 = vshrl.u32 %v161, 7
    %v163 = vsub.s32 2, %v162
    %v164 = vrot.slane %v151, %v163
    %168 = vmatprep.subr.mxu0 %v149
    %169 = vmatpush1.msra.mxu0 %v148
    %170 = vmatprep.subr.mxu0 %v146
    %171 = vmatpush1.msra.mxu0 %v145
    %172 = vmatprep.subr.mxu0 %v143
    %173 = vmatpush1.msra.mxu0 %v142
    %174 = vmatprep.subr.mxu0 %v140
    %175 = vmatpush1.msra.mxu0 %v139
    %176 = vmatprep.subr.mxu0 %v137
    %177 = vmatpush1.msra.mxu0 %v136
    %178 = vmatprep.subr.mxu0 %v134
    %179 = vmatpush1.msra.mxu0 %v133
    %180 = vmatprep.subr.mxu0 %v131
    %181 = vmatpush1.msra.mxu0 %v130
    %182 = vmatprep.subr.mxu0 %v128
    %183 = vmatpush1.msra.mxu0 %v127
    %184 = vmatprep.subr.mxu0 %v125
    %185 = vmatpush1.msra.mxu0 %v124
    %186 = vmatprep.subr.mxu0 %v122
    %187 = vmatpush1.msra.mxu0 %v121
    %188 = vmatprep.subr.mxu0 %v119
    %189 = vmatpush1.msra.mxu0 %v118
    %190 = vmatprep.subr.mxu0 %v116
    %191 = vmatpush1.msra.mxu0 %v115
    %192 = vmatprep.subr.mxu0 %v113
    %193 = vmatpush1.msra.mxu0 %v112
    %194 = vmatprep.subr.mxu0 %v110
    %195 = vmatpush1.msra.mxu0 %v109
    %196 = vmatprep.subr.mxu0 %v107
    %197 = vmatpush1.msra.mxu0 %v106
    %198 = vmatprep.subr.mxu0 %v104
    %199 = vmatpush1.msra.mxu0 %v103
    %200 = vmatprep.subr.mxu0 0.0
    %201 = vmatpush2.msra.mxu0 0.0
    %202 = vmatprep.subr.mxu0 0.0
    %203 = vmatpush2.msra.mxu0 0.0
    %204 = vmatprep.subr.mxu0 0.0
    %205 = vmatpush2.msra.mxu0 0.0
    %206 = vmatprep.subr.mxu0 0.0
    %207 = vmatpush2.msra.mxu0 0.0
    %208 = vmatprep.subr.mxu0 0.0
    %209 = vmatpush2.msra.mxu0 0.0
    %210 = vmatprep.subr.mxu0 0.0
    %211 = vmatpush2.msra.mxu0 0.0
    %212 = vmatprep.subr.mxu0 0.0
    %213 = vmatpush2.msra.mxu0 0.0
    %214 = vmatprep.subr.mxu0 0.0
    %215 = vmatpush2.msra.mxu0 0.0
    %216 = vmatprep.subr.mxu0 0.0
    %217 = vmatpush2.msra.mxu0 0.0
    %218 = vmatprep.subr.mxu0 0.0
    %219 = vmatpush2.msra.mxu0 0.0
    %220 = vmatprep.subr.mxu0 0.0
    %221 = vmatpush2.msra.mxu0 0.0
    %222 = vmatprep.subr.mxu0 0.0
    %223 = vmatpush2.msra.mxu0 0.0
    %224 = vmatprep.subr.mxu0 0.0
    %225 = vmatpush2.msra.mxu0 0.0
    %226 = vmatprep.subr.mxu0 0.0
    %227 = vmatpush2.msra.mxu0 0.0
    %228 = vmatprep.subr.mxu0 0.0
    %229 = vmatpush2.msra.mxu0 0.0
    %230 = vmatprep.subr.mxu0 0.0
    %231 = vmatpush2.msra.mxu0 0.0
    %232 = vmatprep.mubr.f32.mxu0 0.0
    %233 = vmatmul.mubr.f32.gmra.mxu0 %v95
    %v234 = vpop.f32.mrf.mxu0
    %v235 = vadd.f32 %v156, %v234
    %v236 = vpop.f32.mrf.mxu0
    %v237 = vadd.f32 %v160, %v236
    %238 = vmatprep.mubr.f32.mxu0 0.0
    %239 = vmatmul.mubr.f32.gmra.mxu0 %v96
    %v240 = vpop.f32.mrf.mxu0
    %v241 = vadd.f32 %v156, %v240
    %v242 = vpop.f32.mrf.mxu0
    %v243 = vadd.f32 %v160, %v242
    %244 = vmatprep.mubr.f32.mxu0 0.0
    %245 = vmatmul.mubr.f32.gmra.mxu0 %v97
    %v246 = vpop.f32.mrf.mxu0
    %v247 = vadd.f32 %v156, %v246
    %v248 = vpop.f32.mrf.mxu0
    %v249 = vadd.f32 %v160, %v248
    %250 = vmatprep.mubr.f32.mxu0 0.0
    %251 = vmatmul.mubr.f32.gmra.mxu0 %v98
    %v252 = vpop.f32.mrf.mxu0
    %v253 = vadd.f32 %v156, %v252
    %v254 = vpop.f32.mrf.mxu0
    %v255 = vadd.f32 %v160, %v254
    %256 = vmatprep.mubr.f32.mxu0 0.0
    %257 = vmatmul.mubr.f32.gmra.mxu0 %v99
    %v258 = vpop.f32.mrf.mxu0
    %v259 = vadd.f32 %v156, %v258
    %v260 = vpop.f32.mrf.mxu0
    %v261 = vadd.f32 %v160, %v260
    %262 = vmatprep.mubr.f32.mxu0 0.0
    %263 = vmatmul.mubr.f32.gmra.mxu0 %v100
    %v264 = vpop.f32.mrf.mxu0
    %v265 = vadd.f32 %v156, %v264
    %v266 = vpop.f32.mrf.mxu0
    %v267 = vadd.f32 %v160, %v266
    %268 = vmatprep.mubr.f32.mxu0 0.0
    %269 = vmatmul.mubr.f32.gmra.mxu0 %v101
    %v270 = vpop.f32.mrf.mxu0
    %v271 = vadd.f32 %v156, %v270
    %v272 = vpop.f32.mrf.mxu0
    %v273 = vadd.f32 %v160, %v272
    %274 = vmatprep.mubr.f32.mxu0 0.0
    %275 = vmatmul.mubr.f32.gmra.mxu0 %v102
    %v276 = vpop.f32.mrf.mxu0
    %v277 = vadd.f32 %v156, %v276
    %v278 = vpop.f32.mrf.mxu0
    %v279 = vadd.f32 %v160, %v278
    %280 = vdwg.mxu0
    %281 = vmatprep.subr.mxu0 0.0
    %282 = vmatpush1.msra.mxu0 %v150
    %283 = vmatprep.subr.mxu0 0.0
    %284 = vmatpush1.msra.mxu0 %v147
    %285 = vmatprep.subr.mxu0 0.0
    %286 = vmatpush1.msra.mxu0 %v144
    %287 = vmatprep.subr.mxu0 0.0
    %288 = vmatpush1.msra.mxu0 %v141
    %289 = vmatprep.subr.mxu0 0.0
    %290 = vmatpush1.msra.mxu0 %v138
    %291 = vmatprep.subr.mxu0 0.0
    %292 = vmatpush1.msra.mxu0 %v135
    %293 = vmatprep.subr.mxu0 0.0
    %294 = vmatpush1.msra.mxu0 %v132
    %295 = vmatprep.subr.mxu0 0.0
    %296 = vmatpush1.msra.mxu0 %v129
    %297 = vmatprep.subr.mxu0 0.0
    %298 = vmatpush1.msra.mxu0 %v126
    %299 = vmatprep.subr.mxu0 0.0
    %300 = vmatpush1.msra.mxu0 %v123
    %301 = vmatprep.subr.mxu0 0.0
    %302 = vmatpush1.msra.mxu0 %v120
    %303 = vmatprep.subr.mxu0 0.0
    %304 = vmatpush1.msra.mxu0 %v117
    %305 = vmatprep.subr.mxu0 0.0
    %306 = vmatpush1.msra.mxu0 %v114
    %307 = vmatprep.subr.mxu0 0.0
    %308 = vmatpush1.msra.mxu0 %v111
    %309 = vmatprep.subr.mxu0 0.0
    %310 = vmatpush1.msra.mxu0 %v108
    %311 = vmatprep.subr.mxu0 0.0
    %312 = vmatpush1.msra.mxu0 %v105
    %313 = vmatprep.subr.mxu0 0.0
    %314 = vmatpush2.msra.mxu0 0.0
    %315 = vmatprep.subr.mxu0 0.0
    %316 = vmatpush2.msra.mxu0 0.0
    %317 = vmatprep.subr.mxu0 0.0
    %318 = vmatpush2.msra.mxu0 0.0
    %319 = vmatprep.subr.mxu0 0.0
    %320 = vmatpush2.msra.mxu0 0.0
    %321 = vmatprep.subr.mxu0 0.0
    %322 = vmatpush2.msra.mxu0 0.0
    %323 = vmatprep.subr.mxu0 0.0
    %324 = vmatpush2.msra.mxu0 0.0
    %325 = vmatprep.subr.mxu0 0.0
    %326 = vmatpush2.msra.mxu0 0.0
    %327 = vmatprep.subr.mxu0 0.0
    %328 = vmatpush2.msra.mxu0 0.0
    %329 = vmatprep.subr.mxu0 0.0
    %330 = vmatpush2.msra.mxu0 0.0
    %331 = vmatprep.subr.mxu0 0.0
    %332 = vmatpush2.msra.mxu0 0.0
    %333 = vmatprep.subr.mxu0 0.0
    %334 = vmatpush2.msra.mxu0 0.0
    %335 = vmatprep.subr.mxu0 0.0
    %336 = vmatpush2.msra.mxu0 0.0
    %337 = vmatprep.subr.mxu0 0.0
    %338 = vmatpush2.msra.mxu0 0.0
    %339 = vmatprep.subr.mxu0 0.0
    %340 = vmatpush2.msra.mxu0 0.0
    %341 = vmatprep.subr.mxu0 0.0
    %342 = vmatpush2.msra.mxu0 0.0
    %343 = vmatprep.subr.mxu0 0.0
    %344 = vmatpush2.msra.mxu0 0.0
    %345 = vmatprep.mubr.f32.mxu0 0.0
    %346 = vmatmul.mubr.f32.gmra.mxu0 %v95
    %v347 = vpop.f32.mrf.mxu0
    %v348 = vadd.f32 %v164, %v347
    %v349 = vpop.f32.mrf.mxu0
    %350 = vmatprep.mubr.f32.mxu0 0.0
    %351 = vmatmul.mubr.f32.gmra.mxu0 %v96
    %v352 = vpop.f32.mrf.mxu0
    %v353 = vadd.f32 %v164, %v352
    %v354 = vpop.f32.mrf.mxu0
    %355 = vmatprep.mubr.f32.mxu0 0.0
    %356 = vmatmul.mubr.f32.gmra.mxu0 %v97
    %v357 = vpop.f32.mrf.mxu0
    %v358 = vadd.f32 %v164, %v357
    %v359 = vpop.f32.mrf.mxu0
    %360 = vmatprep.mubr.f32.mxu0 0.0
    %361 = vmatmul.mubr.f32.gmra.mxu0 %v98
    %v362 = vpop.f32.mrf.mxu0
    %v363 = vadd.f32 %v164, %v362
    %v364 = vpop.f32.mrf.mxu0
    %365 = vmatprep.mubr.f32.mxu0 0.0
    %366 = vmatmul.mubr.f32.gmra.mxu0 %v99
    %v367 = vpop.f32.mrf.mxu0
    %v368 = vadd.f32 %v164, %v367
    %v369 = vpop.f32.mrf.mxu0
    %370 = vmatprep.mubr.f32.mxu0 0.0
    %371 = vmatmul.mubr.f32.gmra.mxu0 %v100
    %v372 = vpop.f32.mrf.mxu0
    %v373 = vadd.f32 %v164, %v372
    %v374 = vpop.f32.mrf.mxu0
    %375 = vmatprep.mubr.f32.mxu0 0.0
    %376 = vmatmul.mubr.f32.gmra.mxu0 %v101
    %v377 = vpop.f32.mrf.mxu0
    %v378 = vadd.f32 %v164, %v377
    %v379 = vpop.f32.mrf.mxu0
    %380 = vmatprep.mubr.f32.mxu0 0.0
    %381 = vmatmul.mubr.f32.gmra.mxu0 %v102
    %v382 = vpop.f32.mrf.mxu0
    %v383 = vadd.f32 %v164, %v382
    %v384 = vpop.f32.mrf.mxu0
    %385 = vdwg.mxu0
    %386 = vst [vmem:[#allocation2] sm:$0xff] %v235
    %387 = vst [vmem:[#allocation2 + $0x8] sm:$0xff] %v237
    %388 = vst [vmem:[#allocation2 + $0x10] sm:$0xff] %v348
    %389 = vst [vmem:[#allocation2 + $0x18] sm:$0xff] %v241
    %390 = vst [vmem:[#allocation2 + $0x20] sm:$0xff] %v243
    %391 = vst [vmem:[#allocation2 + $0x28] sm:$0xff] %v353
    %392 = vst [vmem:[#allocation2 + $0x30] sm:$0xff] %v247
    %393 = vst [vmem:[#allocation2 + $0x38] sm:$0xff] %v249
    %394 = vst [vmem:[#allocation2 + $0x40] sm:$0xff] %v358
    %395 = vst [vmem:[#allocation2 + $0x48] sm:$0xff] %v253
    %396 = vst [vmem:[#allocation2 + $0x50] sm:$0xff] %v255
    %397 = vst [vmem:[#allocation2 + $0x58] sm:$0xff] %v363
    %398 = vst [vmem:[#allocation2 + $0x60] sm:$0xff] %v259
    %399 = vst [vmem:[#allocation2 + $0x68] sm:$0xff] %v261
    %400 = vst [vmem:[#allocation2 + $0x70] sm:$0xff] %v368
    %401 = vst [vmem:[#allocation2 + $0x78] sm:$0xff] %v265
    %402 = vst [vmem:[#allocation2 + $0x80] sm:$0xff] %v267
    %403 = vst [vmem:[#allocation2 + $0x88] sm:$0xff] %v373
    %404 = vst [vmem:[#allocation2 + $0x90] sm:$0xff] %v271
    %405 = vst [vmem:[#allocation2 + $0x98] sm:$0xff] %v273
    %406 = vst [vmem:[#allocation2 + $0xa0] sm:$0xff] %v378
    %407 = vst [vmem:[#allocation2 + $0xa8] sm:$0xff] %v277
    %408 = vst [vmem:[#allocation2 + $0xb0] sm:$0xff] %v279
    %409 = vst [vmem:[#allocation2 + $0xb8] sm:$0xff] %v383
    %s410 = scalar_lea.vmem [#allocation6], 384
    %v411 = vld [vmem:[%s410] sm:$0xff]
    %v412 = vld [vmem:[%s410 + $0x8] sm:$0xff]
    %v413 = vld [vmem:[%s410 + $0x10] sm:$0xff]
    %v414 = vld [vmem:[%s410 + $0x18] sm:$0xff]
    %v415 = vld [vmem:[%s410 + $0x20] sm:$0xff]
    %v416 = vld [vmem:[%s410 + $0x28] sm:$0xff]
    %v417 = vld [vmem:[%s410 + $0x30] sm:$0xff]
    %v418 = vld [vmem:[%s410 + $0x38] sm:$0xff]
    %v419 = vld [vmem:[%s410 + $0x40] sm:$0xff]
    %v420 = vld [vmem:[%s410 + $0x48] sm:$0xff]
    %v421 = vld [vmem:[%s410 + $0x50] sm:$0xff]
    %v422 = vld [vmem:[%s410 + $0x58] sm:$0xff]
    %v423 = vld [vmem:[%s410 + $0x60] sm:$0xff]
    %v424 = vld [vmem:[%s410 + $0x68] sm:$0xff]
    %v425 = vld [vmem:[%s410 + $0x70] sm:$0xff]
    %v426 = vld [vmem:[%s410 + $0x78] sm:$0xff]
    %v427 = vld [vmem:[%s410 + $0x80] sm:$0xff]
    %v428 = vld [vmem:[%s410 + $0x88] sm:$0xff]
    %v429 = vld [vmem:[%s410 + $0x90] sm:$0xff]
    %v430 = vld [vmem:[%s410 + $0x98] sm:$0xff]
    %v431 = vld [vmem:[%s410 + $0xa0] sm:$0xff]
    %v432 = vld [vmem:[%s410 + $0xa8] sm:$0xff]
    %v433 = vld [vmem:[%s410 + $0xb0] sm:$0xff]
    %v434 = vld [vmem:[%s410 + $0xb8] sm:$0xff]
    %v435 = vld [vmem:[%s410 + $0xc0] sm:$0xff]
    %v436 = vld [vmem:[%s410 + $0xc8] sm:$0xff]
    %v437 = vld [vmem:[%s410 + $0xd0] sm:$0xff]
    %v438 = vld [vmem:[%s410 + $0xd8] sm:$0xff]
    %v439 = vld [vmem:[%s410 + $0xe0] sm:$0xff]
    %v440 = vld [vmem:[%s410 + $0xe8] sm:$0xff]
    %v441 = vld [vmem:[%s410 + $0xf0] sm:$0xff]
    %v442 = vld [vmem:[%s410 + $0xf8] sm:$0xff]
    %v443 = vld [vmem:[%s410 + $0x100] sm:$0xff]
    %v444 = vld [vmem:[%s410 + $0x108] sm:$0xff]
    %v445 = vld [vmem:[%s410 + $0x110] sm:$0xff]
    %v446 = vld [vmem:[%s410 + $0x118] sm:$0xff]
    %v447 = vld [vmem:[%s410 + $0x120] sm:$0xff]
    %v448 = vld [vmem:[%s410 + $0x128] sm:$0xff]
    %v449 = vld [vmem:[%s410 + $0x130] sm:$0xff]
    %v450 = vld [vmem:[%s410 + $0x138] sm:$0xff]
    %v451 = vld [vmem:[%s410 + $0x140] sm:$0xff]
    %v452 = vld [vmem:[%s410 + $0x148] sm:$0xff]
    %v453 = vld [vmem:[%s410 + $0x150] sm:$0xff]
    %v454 = vld [vmem:[%s410 + $0x158] sm:$0xff]
    %v455 = vld [vmem:[%s410 + $0x160] sm:$0xff]
    %v456 = vld [vmem:[%s410 + $0x168] sm:$0xff]
    %v457 = vld [vmem:[%s410 + $0x170] sm:$0xff]
    %v458 = vld [vmem:[%s410 + $0x178] sm:$0xff]
    %s459 = scalar_lea.vmem [#allocation8], 3
    %v460 = vld [vmem:[%s459] sm:$0x7]
    %v462 = vlaneseq
    %v463 = vshrl.u32 %v462, 7
    %v464 = vsub.s32 0, %v463
    %v465 = vrot.slane %v460, %v464
    %v466 = vlaneseq
    %v467 = vshrl.u32 %v466, 7
    %v468 = vsub.s32 1, %v467
    %v469 = vrot.slane %v460, %v468
    %v470 = vlaneseq
    %v471 = vshrl.u32 %v470, 7
    %v472 = vsub.s32 2, %v471
    %v473 = vrot.slane %v460, %v472
    %477 = vmatprep.subr.mxu0 %v457
    %478 = vmatpush1.msra.mxu0 %v456
    %479 = vmatprep.subr.mxu0 %v454
    %480 = vmatpush1.msra.mxu0 %v453
    %481 = vmatprep.subr.mxu0 %v451
    %482 = vmatpush1.msra.mxu0 %v450
    %483 = vmatprep.subr.mxu0 %v448
    %484 = vmatpush1.msra.mxu0 %v447
    %485 = vmatprep.subr.mxu0 %v445
    %486 = vmatpush1.msra.mxu0 %v444
    %487 = vmatprep.subr.mxu0 %v442
    %488 = vmatpush1.msra.mxu0 %v441
    %489 = vmatprep.subr.mxu0 %v439
    %490 = vmatpush1.msra.mxu0 %v438
    %491 = vmatprep.subr.mxu0 %v436
    %492 = vmatpush1.msra.mxu0 %v435
    %493 = vmatprep.subr.mxu0 %v433
    %494 = vmatpush1.msra.mxu0 %v432
    %495 = vmatprep.subr.mxu0 %v430
    %496 = vmatpush1.msra.mxu0 %v429
    %497 = vmatprep.subr.mxu0 %v427
    %498 = vmatpush1.msra.mxu0 %v426
    %499 = vmatprep.subr.mxu0 %v424
    %500 = vmatpush1.msra.mxu0 %v423
    %501 = vmatprep.subr.mxu0 %v421
    %502 = vmatpush1.msra.mxu0 %v420
    %503 = vmatprep.subr.mxu0 %v418
    %504 = vmatpush1.msra.mxu0 %v417
    %505 = vmatprep.subr.mxu0 %v415
    %506 = vmatpush1.msra.mxu0 %v414
    %507 = vmatprep.subr.mxu0 %v412
    %508 = vmatpush1.msra.mxu0 %v411
    %509 = vmatprep.subr.mxu0 0.0
    %510 = vmatpush2.msra.mxu0 0.0
    %511 = vmatprep.subr.mxu0 0.0
    %512 = vmatpush2.msra.mxu0 0.0
    %513 = vmatprep.subr.mxu0 0.0
    %514 = vmatpush2.msra.mxu0 0.0
    %515 = vmatprep.subr.mxu0 0.0
    %516 = vmatpush2.msra.mxu0 0.0
    %517 = vmatprep.subr.mxu0 0.0
    %518 = vmatpush2.msra.mxu0 0.0
    %519 = vmatprep.subr.mxu0 0.0
    %520 = vmatpush2.msra.mxu0 0.0
    %521 = vmatprep.subr.mxu0 0.0
    %522 = vmatpush2.msra.mxu0 0.0
    %523 = vmatprep.subr.mxu0 0.0
    %524 = vmatpush2.msra.mxu0 0.0
    %525 = vmatprep.subr.mxu0 0.0
    %526 = vmatpush2.msra.mxu0 0.0
    %527 = vmatprep.subr.mxu0 0.0
    %528 = vmatpush2.msra.mxu0 0.0
    %529 = vmatprep.subr.mxu0 0.0
    %530 = vmatpush2.msra.mxu0 0.0
    %531 = vmatprep.subr.mxu0 0.0
    %532 = vmatpush2.msra.mxu0 0.0
    %533 = vmatprep.subr.mxu0 0.0
    %534 = vmatpush2.msra.mxu0 0.0
    %535 = vmatprep.subr.mxu0 0.0
    %536 = vmatpush2.msra.mxu0 0.0
    %537 = vmatprep.subr.mxu0 0.0
    %538 = vmatpush2.msra.mxu0 0.0
    %539 = vmatprep.subr.mxu0 0.0
    %540 = vmatpush2.msra.mxu0 0.0
    %541 = vmatprep.mubr.f32.mxu0 0.0
    %542 = vmatmul.mubr.f32.gmra.mxu0 %v95
    %v543 = vpop.f32.mrf.mxu0
    %v544 = vadd.f32 %v465, %v543
    %v545 = vpop.f32.mrf.mxu0
    %v546 = vadd.f32 %v469, %v545
    %547 = vmatprep.mubr.f32.mxu0 0.0
    %548 = vmatmul.mubr.f32.gmra.mxu0 %v96
    %v549 = vpop.f32.mrf.mxu0
    %v550 = vadd.f32 %v465, %v549
    %v551 = vpop.f32.mrf.mxu0
    %v552 = vadd.f32 %v469, %v551
    %553 = vmatprep.mubr.f32.mxu0 0.0
    %554 = vmatmul.mubr.f32.gmra.mxu0 %v97
    %v555 = vpop.f32.mrf.mxu0
    %v556 = vadd.f32 %v465, %v555
    %v557 = vpop.f32.mrf.mxu0
    %v558 = vadd.f32 %v469, %v557
    %559 = vmatprep.mubr.f32.mxu0 0.0
    %560 = vmatmul.mubr.f32.gmra.mxu0 %v98
    %v561 = vpop.f32.mrf.mxu0
    %v562 = vadd.f32 %v465, %v561
    %v563 = vpop.f32.mrf.mxu0
    %v564 = vadd.f32 %v469, %v563
    %565 = vmatprep.mubr.f32.mxu0 0.0
    %566 = vmatmul.mubr.f32.gmra.mxu0 %v99
    %v567 = vpop.f32.mrf.mxu0
    %v568 = vadd.f32 %v465, %v567
    %v569 = vpop.f32.mrf.mxu0
    %v570 = vadd.f32 %v469, %v569
    %571 = vmatprep.mubr.f32.mxu0 0.0
    %572 = vmatmul.mubr.f32.gmra.mxu0 %v100
    %v573 = vpop.f32.mrf.mxu0
    %v574 = vadd.f32 %v465, %v573
    %v575 = vpop.f32.mrf.mxu0
    %v576 = vadd.f32 %v469, %v575
    %577 = vmatprep.mubr.f32.mxu0 0.0
    %578 = vmatmul.mubr.f32.gmra.mxu0 %v101
    %v579 = vpop.f32.mrf.mxu0
    %v580 = vadd.f32 %v465, %v579
    %v581 = vpop.f32.mrf.mxu0
    %v582 = vadd.f32 %v469, %v581
    %583 = vmatprep.mubr.f32.mxu0 0.0
    %584 = vmatmul.mubr.f32.gmra.mxu0 %v102
    %v585 = vpop.f32.mrf.mxu0
    %v586 = vadd.f32 %v465, %v585
    %v587 = vpop.f32.mrf.mxu0
    %v588 = vadd.f32 %v469, %v587
    %589 = vdwg.mxu0
    %590 = vmatprep.subr.mxu0 0.0
    %591 = vmatpush1.msra.mxu0 %v458
    %592 = vmatprep.subr.mxu0 0.0
    %593 = vmatpush1.msra.mxu0 %v455
    %594 = vmatprep.subr.mxu0 0.0
    %595 = vmatpush1.msra.mxu0 %v452
    %596 = vmatprep.subr.mxu0 0.0
    %597 = vmatpush1.msra.mxu0 %v449
    %598 = vmatprep.subr.mxu0 0.0
    %599 = vmatpush1.msra.mxu0 %v446
    %600 = vmatprep.subr.mxu0 0.0
    %601 = vmatpush1.msra.mxu0 %v443
    %602 = vmatprep.subr.mxu0 0.0
    %603 = vmatpush1.msra.mxu0 %v440
    %604 = vmatprep.subr.mxu0 0.0
    %605 = vmatpush1.msra.mxu0 %v437
    %606 = vmatprep.subr.mxu0 0.0
    %607 = vmatpush1.msra.mxu0 %v434
    %608 = vmatprep.subr.mxu0 0.0
    %609 = vmatpush1.msra.mxu0 %v431
    %610 = vmatprep.subr.mxu0 0.0
    %611 = vmatpush1.msra.mxu0 %v428
    %612 = vmatprep.subr.mxu0 0.0
    %613 = vmatpush1.msra.mxu0 %v425
    %614 = vmatprep.subr.mxu0 0.0
    %615 = vmatpush1.msra.mxu0 %v422
    %616 = vmatprep.subr.mxu0 0.0
    %617 = vmatpush1.msra.mxu0 %v419
    %618 = vmatprep.subr.mxu0 0.0
    %619 = vmatpush1.msra.mxu0 %v416
    %620 = vmatprep.subr.mxu0 0.0
    %621 = vmatpush1.msra.mxu0 %v413
    %622 = vmatprep.subr.mxu0 0.0
    %623 = vmatpush2.msra.mxu0 0.0
    %624 = vmatprep.subr.mxu0 0.0
    %625 = vmatpush2.msra.mxu0 0.0
    %626 = vmatprep.subr.mxu0 0.0
    %627 = vmatpush2.msra.mxu0 0.0
    %628 = vmatprep.subr.mxu0 0.0
    %629 = vmatpush2.msra.mxu0 0.0
    %630 = vmatprep.subr.mxu0 0.0
    %631 = vmatpush2.msra.mxu0 0.0
    %632 = vmatprep.subr.mxu0 0.0
    %633 = vmatpush2.msra.mxu0 0.0
    %634 = vmatprep.subr.mxu0 0.0
    %635 = vmatpush2.msra.mxu0 0.0
    %636 = vmatprep.subr.mxu0 0.0
    %637 = vmatpush2.msra.mxu0 0.0
    %638 = vmatprep.subr.mxu0 0.0
    %639 = vmatpush2.msra.mxu0 0.0
    %640 = vmatprep.subr.mxu0 0.0
    %641 = vmatpush2.msra.mxu0 0.0
    %642 = vmatprep.subr.mxu0 0.0
    %643 = vmatpush2.msra.mxu0 0.0
    %644 = vmatprep.subr.mxu0 0.0
    %645 = vmatpush2.msra.mxu0 0.0
    %646 = vmatprep.subr.mxu0 0.0
    %647 = vmatpush2.msra.mxu0 0.0
    %648 = vmatprep.subr.mxu0 0.0
    %649 = vmatpush2.msra.mxu0 0.0
    %650 = vmatprep.subr.mxu0 0.0
    %651 = vmatpush2.msra.mxu0 0.0
    %652 = vmatprep.subr.mxu0 0.0
    %653 = vmatpush2.msra.mxu0 0.0
    %654 = vmatprep.mubr.f32.mxu0 0.0
    %655 = vmatmul.mubr.f32.gmra.mxu0 %v95
    %v656 = vpop.f32.mrf.mxu0
    %v657 = vadd.f32 %v473, %v656
    %v658 = vpop.f32.mrf.mxu0
    %659 = vmatprep.mubr.f32.mxu0 0.0
    %660 = vmatmul.mubr.f32.gmra.mxu0 %v96
    %v661 = vpop.f32.mrf.mxu0
    %v662 = vadd.f32 %v473, %v661
    %v663 = vpop.f32.mrf.mxu0
    %664 = vmatprep.mubr.f32.mxu0 0.0
    %665 = vmatmul.mubr.f32.gmra.mxu0 %v97
    %v666 = vpop.f32.mrf.mxu0
    %v667 = vadd.f32 %v473, %v666
    %v668 = vpop.f32.mrf.mxu0
    %669 = vmatprep.mubr.f32.mxu0 0.0
    %670 = vmatmul.mubr.f32.gmra.mxu0 %v98
    %v671 = vpop.f32.mrf.mxu0
    %v672 = vadd.f32 %v473, %v671
    %v673 = vpop.f32.mrf.mxu0
    %674 = vmatprep.mubr.f32.mxu0 0.0
    %675 = vmatmul.mubr.f32.gmra.mxu0 %v99
    %v676 = vpop.f32.mrf.mxu0
    %v677 = vadd.f32 %v473, %v676
    %v678 = vpop.f32.mrf.mxu0
    %679 = vmatprep.mubr.f32.mxu0 0.0
    %680 = vmatmul.mubr.f32.gmra.mxu0 %v100
    %v681 = vpop.f32.mrf.mxu0
    %v682 = vadd.f32 %v473, %v681
    %v683 = vpop.f32.mrf.mxu0
    %684 = vmatprep.mubr.f32.mxu0 0.0
    %685 = vmatmul.mubr.f32.gmra.mxu0 %v101
    %v686 = vpop.f32.mrf.mxu0
    %v687 = vadd.f32 %v473, %v686
    %v688 = vpop.f32.mrf.mxu0
    %689 = vmatprep.mubr.f32.mxu0 0.0
    %690 = vmatmul.mubr.f32.gmra.mxu0 %v102
    %v691 = vpop.f32.mrf.mxu0
    %v692 = vadd.f32 %v473, %v691
    %v693 = vpop.f32.mrf.mxu0
    %694 = vdwg.mxu0
    %s695 = scalar_lea.vmem [#allocation2], 192
    %696 = vst [vmem:[%s695] sm:$0xff] %v544
    %697 = vst [vmem:[%s695 + $0x8] sm:$0xff] %v546
    %698 = vst [vmem:[%s695 + $0x10] sm:$0xff] %v657
    %699 = vst [vmem:[%s695 + $0x18] sm:$0xff] %v550
    %700 = vst [vmem:[%s695 + $0x20] sm:$0xff] %v552
    %701 = vst [vmem:[%s695 + $0x28] sm:$0xff] %v662
    %702 = vst [vmem:[%s695 + $0x30] sm:$0xff] %v556
    %703 = vst [vmem:[%s695 + $0x38] sm:$0xff] %v558
    %704 = vst [vmem:[%s695 + $0x40] sm:$0xff] %v667
    %705 = vst [vmem:[%s695 + $0x48] sm:$0xff] %v562
    %706 = vst [vmem:[%s695 + $0x50] sm:$0xff] %v564
    %707 = vst [vmem:[%s695 + $0x58] sm:$0xff] %v672
    %708 = vst [vmem:[%s695 + $0x60] sm:$0xff] %v568
    %709 = vst [vmem:[%s695 + $0x68] sm:$0xff] %v570
    %710 = vst [vmem:[%s695 + $0x70] sm:$0xff] %v677
    %711 = vst [vmem:[%s695 + $0x78] sm:$0xff] %v574
    %712 = vst [vmem:[%s695 + $0x80] sm:$0xff] %v576
    %713 = vst [vmem:[%s695 + $0x88] sm:$0xff] %v682
    %714 = vst [vmem:[%s695 + $0x90] sm:$0xff] %v580
    %715 = vst [vmem:[%s695 + $0x98] sm:$0xff] %v582
    %716 = vst [vmem:[%s695 + $0xa0] sm:$0xff] %v687
    %717 = vst [vmem:[%s695 + $0xa8] sm:$0xff] %v586
    %718 = vst [vmem:[%s695 + $0xb0] sm:$0xff] %v588
    %719 = vst [vmem:[%s695 + $0xb8] sm:$0xff] %v692
    %v720 = vld [vmem:[%s4] sm:$0x1]
    %v722 = vlaneseq
    %v723 = vshrl.u32 %v722, 7
    %v724 = vsub.s32 0, %v723
    %v725 = vrot.slane %v720, %v724
    %s727 = scalar_lea.vmem %s4, 1
    %v728 = vld [vmem:[%s727] sm:$0x1]
    %v730 = vlaneseq
    %v731 = vshrl.u32 %v730, 7
    %v732 = vsub.s32 0, %v731
    %v733 = vrot.slane %v728, %v732
    %v735 = vld [vmem:[#allocation2] sm:$0xff]
    %v736 = vld [vmem:[#allocation2 + $0x8] sm:$0xff]
    %v737 = vld [vmem:[#allocation2 + $0x10] sm:$0xff]
    %v738 = vld [vmem:[#allocation9] sm:$0xff]
    %v739 = vld [vmem:[#allocation9 + $0x8] sm:$0xff]
    %v740 = vld [vmem:[#allocation9 + $0x10] sm:$0xff]
    %v741 = vld [vmem:[#allocation9 + $0x18] sm:$0xff]
    %v742 = vld [vmem:[#allocation9 + $0x20] sm:$0xff]
    %v743 = vld [vmem:[#allocation9 + $0x28] sm:$0xff]
    %v744 = vld [vmem:[#allocation9 + $0x30] sm:$0xff]
    %v745 = vld [vmem:[#allocation9 + $0x38] sm:$0xff]
    %v746 = vld [vmem:[#allocation9 + $0x40] sm:$0xff]
    %v747 = vld [vmem:[#allocation9 + $0x48] sm:$0xff]
    %v748 = vld [vmem:[#allocation9 + $0x50] sm:$0xff]
    %v749 = vld [vmem:[#allocation9 + $0x58] sm:$0xff]
    %v750 = vld [vmem:[#allocation9 + $0x60] sm:$0xff]
    %v751 = vld [vmem:[#allocation9 + $0x68] sm:$0xff]
    %v752 = vld [vmem:[#allocation9 + $0x70] sm:$0xff]
    %v753 = vld [vmem:[#allocation9 + $0x78] sm:$0xff]
    %v754 = vld [vmem:[#allocation9 + $0x80] sm:$0xff]
    %v755 = vld [vmem:[#allocation9 + $0x88] sm:$0xff]
    %v756 = vld [vmem:[#allocation9 + $0x90] sm:$0xff]
    %v757 = vld [vmem:[#allocation9 + $0x98] sm:$0xff]
    %v758 = vld [vmem:[#allocation9 + $0xa0] sm:$0xff]
    %v759 = vld [vmem:[#allocation9 + $0xa8] sm:$0xff]
    %v760 = vld [vmem:[#allocation9 + $0xb0] sm:$0xff]
    %v761 = vld [vmem:[#allocation9 + $0xb8] sm:$0xff]
    %v762 = vld [vmem:[#allocation9 + $0xc0] sm:$0xff]
    %v763 = vld [vmem:[#allocation9 + $0xc8] sm:$0xff]
    %v764 = vld [vmem:[#allocation9 + $0xd0] sm:$0xff]
    %v765 = vld [vmem:[#allocation9 + $0xd8] sm:$0xff]
    %v766 = vld [vmem:[#allocation9 + $0xe0] sm:$0xff]
    %v767 = vld [vmem:[#allocation9 + $0xe8] sm:$0xff]
    %v768 = vld [vmem:[#allocation9 + $0xf0] sm:$0xff]
    %v769 = vld [vmem:[#allocation9 + $0xf8] sm:$0xff]
    %v770 = vld [vmem:[#allocation9 + $0x100] sm:$0xff]
    %v771 = vld [vmem:[#allocation9 + $0x108] sm:$0xff]
    %v772 = vld [vmem:[#allocation9 + $0x110] sm:$0xff]
    %v773 = vld [vmem:[#allocation9 + $0x118] sm:$0xff]
    %v774 = vld [vmem:[#allocation9 + $0x120] sm:$0xff]
    %v775 = vld [vmem:[#allocation9 + $0x128] sm:$0xff]
    %v776 = vld [vmem:[#allocation9 + $0x130] sm:$0xff]
    %v777 = vld [vmem:[#allocation9 + $0x138] sm:$0xff]
    %v778 = vld [vmem:[#allocation9 + $0x140] sm:$0xff]
    %v779 = vld [vmem:[#allocation9 + $0x148] sm:$0xff]
    %v780 = vld [vmem:[#allocation9 + $0x150] sm:$0xff]
    %v781 = vld [vmem:[#allocation9 + $0x158] sm:$0xff]
    %v782 = vld [vmem:[#allocation9 + $0x160] sm:$0xff]
    %v783 = vld [vmem:[#allocation9 + $0x168] sm:$0xff]
    %v784 = vld [vmem:[#allocation9 + $0x170] sm:$0xff]
    %v785 = vld [vmem:[#allocation9 + $0x178] sm:$0xff]
    %786 = vmatprep.subr.mxu0 %v784
    %787 = vmatpush1.msra.mxu0 %v783
    %788 = vmatprep.subr.mxu0 %v781
    %789 = vmatpush1.msra.mxu0 %v780
    %790 = vmatprep.subr.mxu0 %v778
    %791 = vmatpush1.msra.mxu0 %v777
    %792 = vmatprep.subr.mxu0 %v775
    %793 = vmatpush1.msra.mxu0 %v774
    %794 = vmatprep.subr.mxu0 %v772
    %795 = vmatpush1.msra.mxu0 %v771
    %796 = vmatprep.subr.mxu0 %v769
    %797 = vmatpush1.msra.mxu0 %v768
    %798 = vmatprep.subr.mxu0 %v766
    %799 = vmatpush1.msra.mxu0 %v765
    %800 = vmatprep.subr.mxu0 %v763
    %801 = vmatpush1.msra.mxu0 %v762
    %802 = vmatprep.subr.mxu0 %v760
    %803 = vmatpush1.msra.mxu0 %v759
    %804 = vmatprep.subr.mxu0 %v757
    %805 = vmatpush1.msra.mxu0 %v756
    %806 = vmatprep.subr.mxu0 %v754
    %807 = vmatpush1.msra.mxu0 %v753
    %808 = vmatprep.subr.mxu0 %v751
    %809 = vmatpush1.msra.mxu0 %v750
    %810 = vmatprep.subr.mxu0 %v748
    %811 = vmatpush1.msra.mxu0 %v747
    %812 = vmatprep.subr.mxu0 %v745
    %813 = vmatpush1.msra.mxu0 %v744
    %814 = vmatprep.subr.mxu0 %v742
    %815 = vmatpush1.msra.mxu0 %v741
    %816 = vmatprep.subr.mxu0 %v739
    %817 = vmatpush1.msra.mxu0 %v738
    %818 = vmatprep.subr.mxu0 0.0
    %819 = vmatpush2.msra.mxu0 0.0
    %820 = vmatprep.subr.mxu0 0.0
    %821 = vmatpush2.msra.mxu0 0.0
    %822 = vmatprep.subr.mxu0 0.0
    %823 = vmatpush2.msra.mxu0 0.0
    %824 = vmatprep.subr.mxu0 0.0
    %825 = vmatpush2.msra.mxu0 0.0
    %826 = vmatprep.subr.mxu0 0.0
    %827 = vmatpush2.msra.mxu0 0.0
    %828 = vmatprep.subr.mxu0 0.0
    %829 = vmatpush2.msra.mxu0 0.0
    %830 = vmatprep.subr.mxu0 0.0
    %831 = vmatpush2.msra.mxu0 0.0
    %832 = vmatprep.subr.mxu0 0.0
    %833 = vmatpush2.msra.mxu0 0.0
    %834 = vmatprep.subr.mxu0 0.0
    %835 = vmatpush2.msra.mxu0 0.0
    %836 = vmatprep.subr.mxu0 0.0
    %837 = vmatpush2.msra.mxu0 0.0
    %838 = vmatprep.subr.mxu0 0.0
    %839 = vmatpush2.msra.mxu0 0.0
    %840 = vmatprep.subr.mxu0 0.0
    %841 = vmatpush2.msra.mxu0 0.0
    %842 = vmatprep.subr.mxu0 0.0
    %843 = vmatpush2.msra.mxu0 0.0
    %844 = vmatprep.subr.mxu0 0.0
    %845 = vmatpush2.msra.mxu0 0.0
    %846 = vmatprep.subr.mxu0 0.0
    %847 = vmatpush2.msra.mxu0 0.0
    %848 = vmatprep.subr.mxu0 0.0
    %849 = vmatpush2.msra.mxu0 0.0
    %850 = vmatprep.mubr.f32.mxu0 0.0
    %851 = vmatmul.mubr.f32.gmra.mxu0 0.0
    %v852 = vpop.f32.mrf.mxu0
    %v853 = vadd.f32 0.0, %v852
    %v854 = vpop.f32.mrf.mxu0
    %v855 = vadd.f32 0.0, %v854
    %856 = vdwg.mxu0
    %857 = vmatprep.subr.mxu0 0.0
    %858 = vmatpush1.msra.mxu0 %v785
    %859 = vmatprep.subr.mxu0 0.0
    %860 = vmatpush1.msra.mxu0 %v782
    %861 = vmatprep.subr.mxu0 0.0
    %862 = vmatpush1.msra.mxu0 %v779
    %863 = vmatprep.subr.mxu0 0.0
    %864 = vmatpush1.msra.mxu0 %v776
    %865 = vmatprep.subr.mxu0 0.0
    %866 = vmatpush1.msra.mxu0 %v773
    %867 = vmatprep.subr.mxu0 0.0
    %868 = vmatpush1.msra.mxu0 %v770
    %869 = vmatprep.subr.mxu0 0.0
    %870 = vmatpush1.msra.mxu0 %v767
    %871 = vmatprep.subr.mxu0 0.0
    %872 = vmatpush1.msra.mxu0 %v764
    %873 = vmatprep.subr.mxu0 0.0
    %874 = vmatpush1.msra.mxu0 %v761
    %875 = vmatprep.subr.mxu0 0.0
    %876 = vmatpush1.msra.mxu0 %v758
    %877 = vmatprep.subr.mxu0 0.0
    %878 = vmatpush1.msra.mxu0 %v755
    %879 = vmatprep.subr.mxu0 0.0
    %880 = vmatpush1.msra.mxu0 %v752
    %881 = vmatprep.subr.mxu0 0.0
    %882 = vmatpush1.msra.mxu0 %v749
    %883 = vmatprep.subr.mxu0 0.0
    %884 = vmatpush1.msra.mxu0 %v746
    %885 = vmatprep.subr.mxu0 0.0
    %886 = vmatpush1.msra.mxu0 %v743
    %887 = vmatprep.subr.mxu0 0.0
    %888 = vmatpush1.msra.mxu0 %v740
    %889 = vmatprep.subr.mxu0 0.0
    %890 = vmatpush2.msra.mxu0 0.0
    %891 = vmatprep.subr.mxu0 0.0
    %892 = vmatpush2.msra.mxu0 0.0
    %893 = vmatprep.subr.mxu0 0.0
    %894 = vmatpush2.msra.mxu0 0.0
    %895 = vmatprep.subr.mxu0 0.0
    %896 = vmatpush2.msra.mxu0 0.0
    %897 = vmatprep.subr.mxu0 0.0
    %898 = vmatpush2.msra.mxu0 0.0
    %899 = vmatprep.subr.mxu0 0.0
    %900 = vmatpush2.msra.mxu0 0.0
    %901 = vmatprep.subr.mxu0 0.0
    %902 = vmatpush2.msra.mxu0 0.0
    %903 = vmatprep.subr.mxu0 0.0
    %904 = vmatpush2.msra.mxu0 0.0
    %905 = vmatprep.subr.mxu0 0.0
    %906 = vmatpush2.msra.mxu0 0.0
    %907 = vmatprep.subr.mxu0 0.0
    %908 = vmatpush2.msra.mxu0 0.0
    %909 = vmatprep.subr.mxu0 0.0
    %910 = vmatpush2.msra.mxu0 0.0
    %911 = vmatprep.subr.mxu0 0.0
    %912 = vmatpush2.msra.mxu0 0.0
    %913 = vmatprep.subr.mxu0 0.0
    %914 = vmatpush2.msra.mxu0 0.0
    %915 = vmatprep.subr.mxu0 0.0
    %916 = vmatpush2.msra.mxu0 0.0
    %917 = vmatprep.subr.mxu0 0.0
    %918 = vmatpush2.msra.mxu0 0.0
    %919 = vmatprep.subr.mxu0 0.0
    %920 = vmatpush2.msra.mxu0 0.0
    %921 = vmatprep.mubr.f32.mxu0 0.0
    %922 = vmatmul.mubr.f32.gmra.mxu0 0.0
    %v923 = vpop.f32.mrf.mxu0
    %v924 = vadd.f32 0.0, %v923
    %v925 = vpop.f32.mrf.mxu0
    %926 = vdwg.mxu0
    %v927 = vadd.f32 %v735, %v853
    %v928 = vxor.u32 %v927, 2147483648
    %v929 = vmul.f32 %v928, 1.442695
    %v930 = vpow.pop %v929
    %v931 = vadd.f32 %v930, 1.0
    %v932 = vrcp.pop %v931
    %v933 = vmul.f32 1.0, %v932
    %v934 = vadd.f32 %v736, %v855
    %v935 = vxor.u32 %v934, 2147483648
    %v936 = vmul.f32 %v935, 1.442695
    %v937 = vpow.pop %v936
    %v938 = vadd.f32 %v937, 1.0
    %v939 = vrcp.pop %v938
    %v940 = vmul.f32 1.0, %v939
    %v941 = vadd.f32 %v924, %v725
    %v942 = vmul.f32 %v933, %v941
    %v943 = vadd.f32 %v737, %v942
    %v944 = vtanh.pop %v943
    %v945 = vsub.f32 1.0, %v940
    %v946 = vmul.f32 %v945, %v944
    %v947 = vmul.f32 %v940, 0.0
    %v948 = vadd.f32 %v946, %v947
    %s949 = scalar_lea.vmem %s695, 168 [#allocation2]
    %v950 = vld [vmem:[%s949] sm:$0xff]
    %v951 = vld [vmem:[%s949 + $0x8] sm:$0xff]
    %v952 = vld [vmem:[%s949 + $0x10] sm:$0xff]
    %s953 = scalar_lea.vmem [#allocation9], 384
    %v954 = vld [vmem:[%s953] sm:$0xff]
    %v955 = vld [vmem:[%s953 + $0x8] sm:$0xff]
    %v956 = vld [vmem:[%s953 + $0x10] sm:$0xff]
    %v957 = vld [vmem:[%s953 + $0x18] sm:$0xff]
    %v958 = vld [vmem:[%s953 + $0x20] sm:$0xff]
    %v959 = vld [vmem:[%s953 + $0x28] sm:$0xff]
    %v960 = vld [vmem:[%s953 + $0x30] sm:$0xff]
    %v961 = vld [vmem:[%s953 + $0x38] sm:$0xff]
    %v962 = vld [vmem:[%s953 + $0x40] sm:$0xff]
    %v963 = vld [vmem:[%s953 + $0x48] sm:$0xff]
    %v964 = vld [vmem:[%s953 + $0x50] sm:$0xff]
    %v965 = vld [vmem:[%s953 + $0x58] sm:$0xff]
    %v966 = vld [vmem:[%s953 + $0x60] sm:$0xff]
    %v967 = vld [vmem:[%s953 + $0x68] sm:$0xff]
    %v968 = vld [vmem:[%s953 + $0x70] sm:$0xff]
    %v969 = vld [vmem:[%s953 + $0x78] sm:$0xff]
    %v970 = vld [vmem:[%s953 + $0x80] sm:$0xff]
    %v971 = vld [vmem:[%s953 + $0x88] sm:$0xff]
    %v972 = vld [vmem:[%s953 + $0x90] sm:$0xff]
    %v973 = vld [vmem:[%s953 + $0x98] sm:$0xff]
    %v974 = vld [vmem:[%s953 + $0xa0] sm:$0xff]
    %v975 = vld [vmem:[%s953 + $0xa8] sm:$0xff]
    %v976 = vld [vmem:[%s953 + $0xb0] sm:$0xff]
    %v977 = vld [vmem:[%s953 + $0xb8] sm:$0xff]
    %v978 = vld [vmem:[%s953 + $0xc0] sm:$0xff]
    %v979 = vld [vmem:[%s953 + $0xc8] sm:$0xff]
    %v980 = vld [vmem:[%s953 + $0xd0] sm:$0xff]
    %v981 = vld [vmem:[%s953 + $0xd8] sm:$0xff]
    %v982 = vld [vmem:[%s953 + $0xe0] sm:$0xff]
    %v983 = vld [vmem:[%s953 + $0xe8] sm:$0xff]
    %v984 = vld [vmem:[%s953 + $0xf0] sm:$0xff]
    %v985 = vld [vmem:[%s953 + $0xf8] sm:$0xff]
    %v986 = vld [vmem:[%s953 + $0x100] sm:$0xff]
    %v987 = vld [vmem:[%s953 + $0x108] sm:$0xff]
    %v988 = vld [vmem:[%s953 + $0x110] sm:$0xff]
    %v989 = vld [vmem:[%s953 + $0x118] sm:$0xff]
    %v990 = vld [vmem:[%s953 + $0x120] sm:$0xff]
    %v991 = vld [vmem:[%s953 + $0x128] sm:$0xff]
    %v992 = vld [vmem:[%s953 + $0x130] sm:$0xff]
    %v993 = vld [vmem:[%s953 + $0x138] sm:$0xff]
    %v994 = vld [vmem:[%s953 + $0x140] sm:$0xff]
    %v995 = vld [vmem:[%s953 + $0x148] sm:$0xff]
    %v996 = vld [vmem:[%s953 + $0x150] sm:$0xff]
    %v997 = vld [vmem:[%s953 + $0x158] sm:$0xff]
    %v998 = vld [vmem:[%s953 + $0x160] sm:$0xff]
    %v999 = vld [vmem:[%s953 + $0x168] sm:$0xff]
    %v1000 = vld [vmem:[%s953 + $0x170] sm:$0xff]
    %v1001 = vld [vmem:[%s953 + $0x178] sm:$0xff]
    %1002 = vmatprep.subr.mxu0 %v1000
    %1003 = vmatpush1.msra.mxu0 %v999
    %1004 = vmatprep.subr.mxu0 %v997
    %1005 = vmatpush1.msra.mxu0 %v996
    %1006 = vmatprep.subr.mxu0 %v994
    %1007 = vmatpush1.msra.mxu0 %v993
    %1008 = vmatprep.subr.mxu0 %v991
    %1009 = vmatpush1.msra.mxu0 %v990
    %1010 = vmatprep.subr.mxu0 %v988
    %1011 = vmatpush1.msra.mxu0 %v987
    %1012 = vmatprep.subr.mxu0 %v985
    %1013 = vmatpush1.msra.mxu0 %v984
    %1014 = vmatprep.subr.mxu0 %v982
    %1015 = vmatpush1.msra.mxu0 %v981
    %1016 = vmatprep.subr.mxu0 %v979
    %1017 = vmatpush1.msra.mxu0 %v978
    %1018 = vmatprep.subr.mxu0 %v976
    %1019 = vmatpush1.msra.mxu0 %v975
    %1020 = vmatprep.subr.mxu0 %v973
    %1021 = vmatpush1.msra.mxu0 %v972
    %1022 = vmatprep.subr.mxu0 %v970
    %1023 = vmatpush1.msra.mxu0 %v969
    %1024 = vmatprep.subr.mxu0 %v967
    %1025 = vmatpush1.msra.mxu0 %v966
    %1026 = vmatprep.subr.mxu0 %v964
    %1027 = vmatpush1.msra.mxu0 %v963
    %1028 = vmatprep.subr.mxu0 %v961
    %1029 = vmatpush1.msra.mxu0 %v960
    %1030 = vmatprep.subr.mxu0 %v958
    %1031 = vmatpush1.msra.mxu0 %v957
    %1032 = vmatprep.subr.mxu0 %v955
    %1033 = vmatpush1.msra.mxu0 %v954
    %1034 = vmatprep.subr.mxu0 0.0
    %1035 = vmatpush2.msra.mxu0 0.0
    %1036 = vmatprep.subr.mxu0 0.0
    %1037 = vmatpush2.msra.mxu0 0.0
    %1038 = vmatprep.subr.mxu0 0.0
    %1039 = vmatpush2.msra.mxu0 0.0
    %1040 = vmatprep.subr.mxu0 0.0
    %1041 = vmatpush2.msra.mxu0 0.0
    %1042 = vmatprep.subr.mxu0 0.0
    %1043 = vmatpush2.msra.mxu0 0.0
    %1044 = vmatprep.subr.mxu0 0.0
    %1045 = vmatpush2.msra.mxu0 0.0
    %1046 = vmatprep.subr.mxu0 0.0
    %1047 = vmatpush2.msra.mxu0 0.0
    %1048 = vmatprep.subr.mxu0 0.0
    %1049 = vmatpush2.msra.mxu0 0.0
    %1050 = vmatprep.subr.mxu0 0.0
    %1051 = vmatpush2.msra.mxu0 0.0
    %1052 = vmatprep.subr.mxu0 0.0
    %1053 = vmatpush2.msra.mxu0 0.0
    %1054 = vmatprep.subr.mxu0 0.0
    %1055 = vmatpush2.msra.mxu0 0.0
    %1056 = vmatprep.subr.mxu0 0.0
    %1057 = vmatpush2.msra.mxu0 0.0
    %1058 = vmatprep.subr.mxu0 0.0
    %1059 = vmatpush2.msra.mxu0 0.0
    %1060 = vmatprep.subr.mxu0 0.0
    %1061 = vmatpush2.msra.mxu0 0.0
    %1062 = vmatprep.subr.mxu0 0.0
    %1063 = vmatpush2.msra.mxu0 0.0
    %1064 = vmatprep.subr.mxu0 0.0
    %1065 = vmatpush2.msra.mxu0 0.0
    %1066 = vmatprep.mubr.f32.mxu0 0.0
    %1067 = vmatmul.mubr.f32.gmra.mxu0 0.0
    %v1068 = vpop.f32.mrf.mxu0
    %v1069 = vadd.f32 0.0, %v1068
    %v1070 = vpop.f32.mrf.mxu0
    %v1071 = vadd.f32 0.0, %v1070
    %1072 = vdwg.mxu0
    %1073 = vmatprep.subr.mxu0 0.0
    %1074 = vmatpush1.msra.mxu0 %v1001
    %1075 = vmatprep.subr.mxu0 0.0
    %1076 = vmatpush1.msra.mxu0 %v998
    %1077 = vmatprep.subr.mxu0 0.0
    %1078 = vmatpush1.msra.mxu0 %v995
    %1079 = vmatprep.subr.mxu0 0.0
    %1080 = vmatpush1.msra.mxu0 %v992
    %1081 = vmatprep.subr.mxu0 0.0
    %1082 = vmatpush1.msra.mxu0 %v989
    %1083 = vmatprep.subr.mxu0 0.0
    %1084 = vmatpush1.msra.mxu0 %v986
    %1085 = vmatprep.subr.mxu0 0.0
    %1086 = vmatpush1.msra.mxu0 %v983
    %1087 = vmatprep.subr.mxu0 0.0
    %1088 = vmatpush1.msra.mxu0 %v980
    %1089 = vmatprep.subr.mxu0 0.0
    %1090 = vmatpush1.msra.mxu0 %v977
    %1091 = vmatprep.subr.mxu0 0.0
    %1092 = vmatpush1.msra.mxu0 %v974
    %1093 = vmatprep.subr.mxu0 0.0
    %1094 = vmatpush1.msra.mxu0 %v971
    %1095 = vmatprep.subr.mxu0 0.0
    %1096 = vmatpush1.msra.mxu0 %v968
    %1097 = vmatprep.subr.mxu0 0.0
    %1098 = vmatpush1.msra.mxu0 %v965
    %1099 = vmatprep.subr.mxu0 0.0
    %1100 = vmatpush1.msra.mxu0 %v962
    %1101 = vmatprep.subr.mxu0 0.0
    %1102 = vmatpush1.msra.mxu0 %v959
    %1103 = vmatprep.subr.mxu0 0.0
    %1104 = vmatpush1.msra.mxu0 %v956
    %1105 = vmatprep.subr.mxu0 0.0
    %1106 = vmatpush2.msra.mxu0 0.0
    %1107 = vmatprep.subr.mxu0 0.0
    %1108 = vmatpush2.msra.mxu0 0.0
    %1109 = vmatprep.subr.mxu0 0.0
    %1110 = vmatpush2.msra.mxu0 0.0
    %1111 = vmatprep.subr.mxu0 0.0
    %1112 = vmatpush2.msra.mxu0 0.0
    %1113 = vmatprep.subr.mxu0 0.0
    %1114 = vmatpush2.msra.mxu0 0.0
    %1115 = vmatprep.subr.mxu0 0.0
    %1116 = vmatpush2.msra.mxu0 0.0
    %1117 = vmatprep.subr.mxu0 0.0
    %1118 = vmatpush2.msra.mxu0 0.0
    %1119 = vmatprep.subr.mxu0 0.0
    %1120 = vmatpush2.msra.mxu0 0.0
    %1121 = vmatprep.subr.mxu0 0.0
    %1122 = vmatpush2.msra.mxu0 0.0
    %1123 = vmatprep.subr.mxu0 0.0
    %1124 = vmatpush2.msra.mxu0 0.0
    %1125 = vmatprep.subr.mxu0 0.0
    %1126 = vmatpush2.msra.mxu0 0.0
    %1127 = vmatprep.subr.mxu0 0.0
    %1128 = vmatpush2.msra.mxu0 0.0
    %1129 = vmatprep.subr.mxu0 0.0
    %1130 = vmatpush2.msra.mxu0 0.0
    %1131 = vmatprep.subr.mxu0 0.0
    %1132 = vmatpush2.msra.mxu0 0.0
    %1133 = vmatprep.subr.mxu0 0.0
    %1134 = vmatpush2.msra.mxu0 0.0
    %1135 = vmatprep.subr.mxu0 0.0
    %1136 = vmatpush2.msra.mxu0 0.0
    %1137 = vmatprep.mubr.f32.mxu0 0.0
    %1138 = vmatmul.mubr.f32.gmra.mxu0 0.0
    %v1139 = vpop.f32.mrf.mxu0
    %v1140 = vadd.f32 0.0, %v1139
    %v1141 = vpop.f32.mrf.mxu0
    %1142 = vdwg.mxu0
    %v1143 = vadd.f32 %v950, %v1069
    %v1144 = vxor.u32 %v1143, 2147483648
    %v1145 = vmul.f32 %v1144, 1.442695
    %v1146 = vpow.pop %v1145
    %v1147 = vadd.f32 %v1146, 1.0
    %v1148 = vrcp.pop %v1147
    %v1149 = vmul.f32 1.0, %v1148
    %v1150 = vadd.f32 %v951, %v1071
    %v1151 = vxor.u32 %v1150, 2147483648
    %v1152 = vmul.f32 %v1151, 1.442695
    %v1153 = vpow.pop %v1152
    %v1154 = vadd.f32 %v1153, 1.0
    %v1155 = vrcp.pop %v1154
    %v1156 = vmul.f32 1.0, %v1155
    %v1157 = vadd.f32 %v1140, %v733
    %v1158 = vmul.f32 %v1149, %v1157
    %v1159 = vadd.f32 %v952, %v1158
    %v1160 = vtanh.pop %v1159
    %v1161 = vsub.f32 1.0, %v1156
    %v1162 = vmul.f32 %v1161, %v1160
    %v1163 = vmul.f32 %v1156, 0.0
    %v1164 = vadd.f32 %v1162, %v1163
    %s1165 = scalar_lea.vmem [#allocation2], 24
    %v1166 = vld [vmem:[%s1165] sm:$0xff]
    %v1167 = vld [vmem:[%s1165 + $0x8] sm:$0xff]
    %v1168 = vld [vmem:[%s1165 + $0x10] sm:$0xff]
    %1169 = vmatprep.subr.mxu0 %v784
    %1170 = vmatpush1.msra.mxu0 %v783
    %1171 = vmatprep.subr.mxu0 %v781
    %1172 = vmatpush1.msra.mxu0 %v780
    %1173 = vmatprep.subr.mxu0 %v778
    %1174 = vmatpush1.msra.mxu0 %v777
    %1175 = vmatprep.subr.mxu0 %v775
    %1176 = vmatpush1.msra.mxu0 %v774
    %1177 = vmatprep.subr.mxu0 %v772
    %1178 = vmatpush1.msra.mxu0 %v771
    %1179 = vmatprep.subr.mxu0 %v769
    %1180 = vmatpush1.msra.mxu0 %v768
    %1181 = vmatprep.subr.mxu0 %v766
    %1182 = vmatpush1.msra.mxu0 %v765
    %1183 = vmatprep.subr.mxu0 %v763
    %1184 = vmatpush1.msra.mxu0 %v762
    %1185 = vmatprep.subr.mxu0 %v760
    %1186 = vmatpush1.msra.mxu0 %v759
    %1187 = vmatprep.subr.mxu0 %v757
    %1188 = vmatpush1.msra.mxu0 %v756
    %1189 = vmatprep.subr.mxu0 %v754
    %1190 = vmatpush1.msra.mxu0 %v753
    %1191 = vmatprep.subr.mxu0 %v751
    %1192 = vmatpush1.msra.mxu0 %v750
    %1193 = vmatprep.subr.mxu0 %v748
    %1194 = vmatpush1.msra.mxu0 %v747
    %1195 = vmatprep.subr.mxu0 %v745
    %1196 = vmatpush1.msra.mxu0 %v744
    %1197 = vmatprep.subr.mxu0 %v742
    %1198 = vmatpush1.msra.mxu0 %v741
    %1199 = vmatprep.subr.mxu0 %v739
    %1200 = vmatpush1.msra.mxu0 %v738
    %1201 = vmatprep.subr.mxu0 0.0
    %1202 = vmatpush2.msra.mxu0 0.0
    %1203 = vmatprep.subr.mxu0 0.0
    %1204 = vmatpush2.msra.mxu0 0.0
    %1205 = vmatprep.subr.mxu0 0.0
    %1206 = vmatpush2.msra.mxu0 0.0
    %1207 = vmatprep.subr.mxu0 0.0
    %1208 = vmatpush2.msra.mxu0 0.0
    %1209 = vmatprep.subr.mxu0 0.0
    %1210 = vmatpush2.msra.mxu0 0.0
    %1211 = vmatprep.subr.mxu0 0.0
    %1212 = vmatpush2.msra.mxu0 0.0
    %1213 = vmatprep.subr.mxu0 0.0
    %1214 = vmatpush2.msra.mxu0 0.0
    %1215 = vmatprep.subr.mxu0 0.0
    %1216 = vmatpush2.msra.mxu0 0.0
    %1217 = vmatprep.subr.mxu0 0.0
    %1218 = vmatpush2.msra.mxu0 0.0
    %1219 = vmatprep.subr.mxu0 0.0
    %1220 = vmatpush2.msra.mxu0 0.0
    %1221 = vmatprep.subr.mxu0 0.0
    %1222 = vmatpush2.msra.mxu0 0.0
    %1223 = vmatprep.subr.mxu0 0.0
    %1224 = vmatpush2.msra.mxu0 0.0
    %1225 = vmatprep.subr.mxu0 0.0
    %1226 = vmatpush2.msra.mxu0 0.0
    %1227 = vmatprep.subr.mxu0 0.0
    %1228 = vmatpush2.msra.mxu0 0.0
    %1229 = vmatprep.subr.mxu0 0.0
    %1230 = vmatpush2.msra.mxu0 0.0
    %1231 = vmatprep.subr.mxu0 0.0
    %1232 = vmatpush2.msra.mxu0 0.0
    %1233 = vmatprep.mubr.f32.mxu0 0.0
    %1234 = vmatmul.mubr.f32.gmra.mxu0 %v948
    %v1235 = vpop.f32.mrf.mxu0
    %v1236 = vadd.f32 0.0, %v1235
    %v1237 = vpop.f32.mrf.mxu0
    %v1238 = vadd.f32 0.0, %v1237
    %1239 = vdwg.mxu0
    %1240 = vmatprep.subr.mxu0 0.0
    %1241 = vmatpush1.msra.mxu0 %v785
    %1242 = vmatprep.subr.mxu0 0.0
    %1243 = vmatpush1.msra.mxu0 %v782
    %1244 = vmatprep.subr.mxu0 0.0
    %1245 = vmatpush1.msra.mxu0 %v779
    %1246 = vmatprep.subr.mxu0 0.0
    %1247 = vmatpush1.msra.mxu0 %v776
    %1248 = vmatprep.subr.mxu0 0.0
    %1249 = vmatpush1.msra.mxu0 %v773
    %1250 = vmatprep.subr.mxu0 0.0
    %1251 = vmatpush1.msra.mxu0 %v770
    %1252 = vmatprep.subr.mxu0 0.0
    %1253 = vmatpush1.msra.mxu0 %v767
    %1254 = vmatprep.subr.mxu0 0.0
    %1255 = vmatpush1.msra.mxu0 %v764
    %1256 = vmatprep.subr.mxu0 0.0
    %1257 = vmatpush1.msra.mxu0 %v761
    %1258 = vmatprep.subr.mxu0 0.0
    %1259 = vmatpush1.msra.mxu0 %v758
    %1260 = vmatprep.subr.mxu0 0.0
    %1261 = vmatpush1.msra.mxu0 %v755
    %1262 = vmatprep.subr.mxu0 0.0
    %1263 = vmatpush1.msra.mxu0 %v752
    %1264 = vmatprep.subr.mxu0 0.0
    %1265 = vmatpush1.msra.mxu0 %v749
    %1266 = vmatprep.subr.mxu0 0.0
    %1267 = vmatpush1.msra.mxu0 %v746
    %1268 = vmatprep.subr.mxu0 0.0
    %1269 = vmatpush1.msra.mxu0 %v743
    %1270 = vmatprep.subr.mxu0 0.0
    %1271 = vmatpush1.msra.mxu0 %v740
    %1272 = vmatprep.subr.mxu0 0.0
    %1273 = vmatpush2.msra.mxu0 0.0
    %1274 = vmatprep.subr.mxu0 0.0
    %1275 = vmatpush2.msra.mxu0 0.0
    %1276 = vmatprep.subr.mxu0 0.0
    %1277 = vmatpush2.msra.mxu0 0.0
    %1278 = vmatprep.subr.mxu0 0.0
    %1279 = vmatpush2.msra.mxu0 0.0
    %1280 = vmatprep.subr.mxu0 0.0
    %1281 = vmatpush2.msra.mxu0 0.0
    %1282 = vmatprep.subr.mxu0 0.0
    %1283 = vmatpush2.msra.mxu0 0.0
    %1284 = vmatprep.subr.mxu0 0.0
    %1285 = vmatpush2.msra.mxu0 0.0
    %1286 = vmatprep.subr.mxu0 0.0
    %1287 = vmatpush2.msra.mxu0 0.0
    %1288 = vmatprep.subr.mxu0 0.0
    %1289 = vmatpush2.msra.mxu0 0.0
    %1290 = vmatprep.subr.mxu0 0.0
    %1291 = vmatpush2.msra.mxu0 0.0
    %1292 = vmatprep.subr.mxu0 0.0
    %1293 = vmatpush2.msra.mxu0 0.0
    %1294 = vmatprep.subr.mxu0 0.0
    %1295 = vmatpush2.msra.mxu0 0.0
    %1296 = vmatprep.subr.mxu0 0.0
    %1297 = vmatpush2.msra.mxu0 0.0
    %1298 = vmatprep.subr.mxu0 0.0
    %1299 = vmatpush2.msra.mxu0 0.0
    %1300 = vmatprep.subr.mxu0 0.0
    %1301 = vmatpush2.msra.mxu0 0.0
    %1302 = vmatprep.subr.mxu0 0.0
    %1303 = vmatpush2.msra.mxu0 0.0
    %1304 = vmatprep.mubr.f32.mxu0 0.0
    %1305 = vmatmul.mubr.f32.gmra.mxu0 %v948
    %v1306 = vpop.f32.mrf.mxu0
    %v1307 = vadd.f32 0.0, %v1306
    %v1308 = vpop.f32.mrf.mxu0
    %1309 = vdwg.mxu0
    %v1310 = vadd.f32 %v1166, %v1236
    %v1311 = vxor.u32 %v1310, 2147483648
    %v1312 = vmul.f32 %v1311, 1.442695
    %v1313 = vpow.pop %v1312
    %v1314 = vadd.f32 %v1313, 1.0
    %v1315 = vrcp.pop %v1314
    %v1316 = vmul.f32 1.0, %v1315
    %v1317 = vadd.f32 %v1167, %v1238
    %v1318 = vxor.u32 %v1317, 2147483648
    %v1319 = vmul.f32 %v1318, 1.442695
    %v1320 = vpow.pop %v1319
    %v1321 = vadd.f32 %v1320, 1.0
    %v1322 = vrcp.pop %v1321
    %v1323 = vmul.f32 1.0, %v1322
    %v1324 = vadd.f32 %v1307, %v725
    %v1325 = vmul.f32 %v1316, %v1324
    %v1326 = vadd.f32 %v1168, %v1325
    %v1327 = vtanh.pop %v1326
    %v1328 = vsub.f32 1.0, %v1323
    %v1329 = vmul.f32 %v1328, %v1327
    %v1330 = vmul.f32 %v1323, %v948
    %v1331 = vadd.f32 %v1329, %v1330
    %s1332 = scalar_lea.vmem %s695, 144 [#allocation2]
    %v1333 = vld [vmem:[%s1332] sm:$0xff]
    %v1334 = vld [vmem:[%s1332 + $0x8] sm:$0xff]
    %v1335 = vld [vmem:[%s1332 + $0x10] sm:$0xff]
    %1336 = vmatprep.subr.mxu0 %v1000
    %1337 = vmatpush1.msra.mxu0 %v999
    %1338 = vmatprep.subr.mxu0 %v997
    %1339 = vmatpush1.msra.mxu0 %v996
    %1340 = vmatprep.subr.mxu0 %v994
    %1341 = vmatpush1.msra.mxu0 %v993
    %1342 = vmatprep.subr.mxu0 %v991
    %1343 = vmatpush1.msra.mxu0 %v990
    %1344 = vmatprep.subr.mxu0 %v988
    %1345 = vmatpush1.msra.mxu0 %v987
    %1346 = vmatprep.subr.mxu0 %v985
    %1347 = vmatpush1.msra.mxu0 %v984
    %1348 = vmatprep.subr.mxu0 %v982
    %1349 = vmatpush1.msra.mxu0 %v981
    %1350 = vmatprep.subr.mxu0 %v979
    %1351 = vmatpush1.msra.mxu0 %v978
    %1352 = vmatprep.subr.mxu0 %v976
    %1353 = vmatpush1.msra.mxu0 %v975
    %1354 = vmatprep.subr.mxu0 %v973
    %1355 = vmatpush1.msra.mxu0 %v972
    %1356 = vmatprep.subr.mxu0 %v970
    %1357 = vmatpush1.msra.mxu0 %v969
    %1358 = vmatprep.subr.mxu0 %v967
    %1359 = vmatpush1.msra.mxu0 %v966
    %1360 = vmatprep.subr.mxu0 %v964
    %1361 = vmatpush1.msra.mxu0 %v963
    %1362 = vmatprep.subr.mxu0 %v961
    %1363 = vmatpush1.msra.mxu0 %v960
    %1364 = vmatprep.subr.mxu0 %v958
    %1365 = vmatpush1.msra.mxu0 %v957
    %1366 = vmatprep.subr.mxu0 %v955
    %1367 = vmatpush1.msra.mxu0 %v954
    %1368 = vmatprep.subr.mxu0 0.0
    %1369 = vmatpush2.msra.mxu0 0.0
    %1370 = vmatprep.subr.mxu0 0.0
    %1371 = vmatpush2.msra.mxu0 0.0
    %1372 = vmatprep.subr.mxu0 0.0
    %1373 = vmatpush2.msra.mxu0 0.0
    %1374 = vmatprep.subr.mxu0 0.0
    %1375 = vmatpush2.msra.mxu0 0.0
    %1376 = vmatprep.subr.mxu0 0.0
    %1377 = vmatpush2.msra.mxu0 0.0
    %1378 = vmatprep.subr.mxu0 0.0
    %1379 = vmatpush2.msra.mxu0 0.0
    %1380 = vmatprep.subr.mxu0 0.0
    %1381 = vmatpush2.msra.mxu0 0.0
    %1382 = vmatprep.subr.mxu0 0.0
    %1383 = vmatpush2.msra.mxu0 0.0
    %1384 = vmatprep.subr.mxu0 0.0
    %1385 = vmatpush2.msra.mxu0 0.0
    %1386 = vmatprep.subr.mxu0 0.0
    %1387 = vmatpush2.msra.mxu0 0.0
    %1388 = vmatprep.subr.mxu0 0.0
    %1389 = vmatpush2.msra.mxu0 0.0
    %1390 = vmatprep.subr.mxu0 0.0
    %1391 = vmatpush2.msra.mxu0 0.0
    %1392 = vmatprep.subr.mxu0 0.0
    %1393 = vmatpush2.msra.mxu0 0.0
    %1394 = vmatprep.subr.mxu0 0.0
    %1395 = vmatpush2.msra.mxu0 0.0
    %1396 = vmatprep.subr.mxu0 0.0
    %1397 = vmatpush2.msra.mxu0 0.0
    %1398 = vmatprep.subr.mxu0 0.0
    %1399 = vmatpush2.msra.mxu0 0.0
    %1400 = vmatprep.mubr.f32.mxu0 0.0
    %1401 = vmatmul.mubr.f32.gmra.mxu0 %v1164
    %v1402 = vpop.f32.mrf.mxu0
    %v1403 = vadd.f32 0.0, %v1402
    %v1404 = vpop.f32.mrf.mxu0
    %v1405 = vadd.f32 0.0, %v1404
    %1406 = vdwg.mxu0
    %1407 = vmatprep.subr.mxu0 0.0
    %1408 = vmatpush1.msra.mxu0 %v1001
    %1409 = vmatprep.subr.mxu0 0.0
    %1410 = vmatpush1.msra.mxu0 %v998
    %1411 = vmatprep.subr.mxu0 0.0
    %1412 = vmatpush1.msra.mxu0 %v995
    %1413 = vmatprep.subr.mxu0 0.0
    %1414 = vmatpush1.msra.mxu0 %v992
    %1415 = vmatprep.subr.mxu0 0.0
    %1416 = vmatpush1.msra.mxu0 %v989
    %1417 = vmatprep.subr.mxu0 0.0
    %1418 = vmatpush1.msra.mxu0 %v986
    %1419 = vmatprep.subr.mxu0 0.0
    %1420 = vmatpush1.msra.mxu0 %v983
    %1421 = vmatprep.subr.mxu0 0.0
    %1422 = vmatpush1.msra.mxu0 %v980
    %1423 = vmatprep.subr.mxu0 0.0
    %1424 = vmatpush1.msra.mxu0 %v977
    %1425 = vmatprep.subr.mxu0 0.0
    %1426 = vmatpush1.msra.mxu0 %v974
    %1427 = vmatprep.subr.mxu0 0.0
    %1428 = vmatpush1.msra.mxu0 %v971
    %1429 = vmatprep.subr.mxu0 0.0
    %1430 = vmatpush1.msra.mxu0 %v968
    %1431 = vmatprep.subr.mxu0 0.0
    %1432 = vmatpush1.msra.mxu0 %v965
    %1433 = vmatprep.subr.mxu0 0.0
    %1434 = vmatpush1.msra.mxu0 %v962
    %1435 = vmatprep.subr.mxu0 0.0
    %1436 = vmatpush1.msra.mxu0 %v959
    %1437 = vmatprep.subr.mxu0 0.0
    %1438 = vmatpush1.msra.mxu0 %v956
    %1439 = vmatprep.subr.mxu0 0.0
    %1440 = vmatpush2.msra.mxu0 0.0
    %1441 = vmatprep.subr.mxu0 0.0
    %1442 = vmatpush2.msra.mxu0 0.0
    %1443 = vmatprep.subr.mxu0 0.0
    %1444 = vmatpush2.msra.mxu0 0.0
    %1445 = vmatprep.subr.mxu0 0.0
    %1446 = vmatpush2.msra.mxu0 0.0
    %1447 = vmatprep.subr.mxu0 0.0
    %1448 = vmatpush2.msra.mxu0 0.0
    %1449 = vmatprep.subr.mxu0 0.0
    %1450 = vmatpush2.msra.mxu0 0.0
    %1451 = vmatprep.subr.mxu0 0.0
    %1452 = vmatpush2.msra.mxu0 0.0
    %1453 = vmatprep.subr.mxu0 0.0
    %1454 = vmatpush2.msra.mxu0 0.0
    %1455 = vmatprep.subr.mxu0 0.0
    %1456 = vmatpush2.msra.mxu0 0.0
    %1457 = vmatprep.subr.mxu0 0.0
    %1458 = vmatpush2.msra.mxu0 0.0
    %1459 = vmatprep.subr.mxu0 0.0
    %1460 = vmatpush2.msra.mxu0 0.0
    %1461 = vmatprep.subr.mxu0 0.0
    %1462 = vmatpush2.msra.mxu0 0.0
    %1463 = vmatprep.subr.mxu0 0.0
    %1464 = vmatpush2.msra.mxu0 0.0
    %1465 = vmatprep.subr.mxu0 0.0
    %1466 = vmatpush2.msra.mxu0 0.0
    %1467 = vmatprep.subr.mxu0 0.0
    %1468 = vmatpush2.msra.mxu0 0.0
    %1469 = vmatprep.subr.mxu0 0.0
    %1470 = vmatpush2.msra.mxu0 0.0
    %1471 = vmatprep.mubr.f32.mxu0 0.0
    %1472 = vmatmul.mubr.f32.gmra.mxu0 %v1164
    %v1473 = vpop.f32.mrf.mxu0
    %v1474 = vadd.f32 0.0, %v1473
    %v1475 = vpop.f32.mrf.mxu0
    %1476 = vdwg.mxu0
    %v1477 = vadd.f32 %v1333, %v1403
    %v1478 = vxor.u32 %v1477, 2147483648
    %v1479 = vmul.f32 %v1478, 1.442695
    %v1480 = vpow.pop %v1479
    %v1481 = vadd.f32 %v1480, 1.0
    %v1482 = vrcp.pop %v1481
    %v1483 = vmul.f32 1.0, %v1482
    %v1484 = vadd.f32 %v1334, %v1405
    %v1485 = vxor.u32 %v1484, 2147483648
    %v1486 = vmul.f32 %v1485, 1.442695
    %v1487 = vpow.pop %v1486
    %v1488 = vadd.f32 %v1487, 1.0
    %v1489 = vrcp.pop %v1488
    %v1490 = vmul.f32 1.0, %v1489
    %v1491 = vadd.f32 %v1474, %v733
    %v1492 = vmul.f32 %v1483, %v1491
    %v1493 = vadd.f32 %v1335, %v1492
    %v1494 = vtanh.pop %v1493
    %v1495 = vsub.f32 1.0, %v1490
    %v1496 = vmul.f32 %v1495, %v1494
    %v1497 = vmul.f32 %v1490, %v1164
    %v1498 = vadd.f32 %v1496, %v1497
    %s1499 = scalar_lea.vmem [#allocation2], 48
    %v1500 = vld [vmem:[%s1499] sm:$0xff]
    %v1501 = vld [vmem:[%s1499 + $0x8] sm:$0xff]
    %v1502 = vld [vmem:[%s1499 + $0x10] sm:$0xff]
    %1503 = vmatprep.subr.mxu0 %v784
    %1504 = vmatpush1.msra.mxu0 %v783
    %1505 = vmatprep.subr.mxu0 %v781
    %1506 = vmatpush1.msra.mxu0 %v780
    %1507 = vmatprep.subr.mxu0 %v778
    %1508 = vmatpush1.msra.mxu0 %v777
    %1509 = vmatprep.subr.mxu0 %v775
    %1510 = vmatpush1.msra.mxu0 %v774
    %1511 = vmatprep.subr.mxu0 %v772
    %1512 = vmatpush1.msra.mxu0 %v771
    %1513 = vmatprep.subr.mxu0 %v769
    %1514 = vmatpush1.msra.mxu0 %v768
    %1515 = vmatprep.subr.mxu0 %v766
    %1516 = vmatpush1.msra.mxu0 %v765
    %1517 = vmatprep.subr.mxu0 %v763
    %1518 = vmatpush1.msra.mxu0 %v762
    %1519 = vmatprep.subr.mxu0 %v760
    %1520 = vmatpush1.msra.mxu0 %v759
    %1521 = vmatprep.subr.mxu0 %v757
    %1522 = vmatpush1.msra.mxu0 %v756
    %1523 = vmatprep.subr.mxu0 %v754
    %1524 = vmatpush1.msra.mxu0 %v753
    %1525 = vmatprep.subr.mxu0 %v751
    %1526 = vmatpush1.msra.mxu0 %v750
    %1527 = vmatprep.subr.mxu0 %v748
    %1528 = vmatpush1.msra.mxu0 %v747
    %1529 = vmatprep.subr.mxu0 %v745
    %1530 = vmatpush1.msra.mxu0 %v744
    %1531 = vmatprep.subr.mxu0 %v742
    %1532 = vmatpush1.msra.mxu0 %v741
    %1533 = vmatprep.subr.mxu0 %v739
    %1534 = vmatpush1.msra.mxu0 %v738
    %1535 = vmatprep.subr.mxu0 0.0
    %1536 = vmatpush2.msra.mxu0 0.0
    %1537 = vmatprep.subr.mxu0 0.0
    %1538 = vmatpush2.msra.mxu0 0.0
    %1539 = vmatprep.subr.mxu0 0.0
    %1540 = vmatpush2.msra.mxu0 0.0
    %1541 = vmatprep.subr.mxu0 0.0
    %1542 = vmatpush2.msra.mxu0 0.0
    %1543 = vmatprep.subr.mxu0 0.0
    %1544 = vmatpush2.msra.mxu0 0.0
    %1545 = vmatprep.subr.mxu0 0.0
    %1546 = vmatpush2.msra.mxu0 0.0
    %1547 = vmatprep.subr.mxu0 0.0
    %1548 = vmatpush2.msra.mxu0 0.0
    %1549 = vmatprep.subr.mxu0 0.0
    %1550 = vmatpush2.msra.mxu0 0.0
    %1551 = vmatprep.subr.mxu0 0.0
    %1552 = vmatpush2.msra.mxu0 0.0
    %1553 = vmatprep.subr.mxu0 0.0
    %1554 = vmatpush2.msra.mxu0 0.0
    %1555 = vmatprep.subr.mxu0 0.0
    %1556 = vmatpush2.msra.mxu0 0.0
    %1557 = vmatprep.subr.mxu0 0.0
    %1558 = vmatpush2.msra.mxu0 0.0
    %1559 = vmatprep.subr.mxu0 0.0
    %1560 = vmatpush2.msra.mxu0 0.0
    %1561 = vmatprep.subr.mxu0 0.0
    %1562 = vmatpush2.msra.mxu0 0.0
    %1563 = vmatprep.subr.mxu0 0.0
    %1564 = vmatpush2.msra.mxu0 0.0
    %1565 = vmatprep.subr.mxu0 0.0
    %1566 = vmatpush2.msra.mxu0 0.0
    %1567 = vmatprep.mubr.f32.mxu0 0.0
    %1568 = vmatmul.mubr.f32.gmra.mxu0 %v1331
    %v1569 = vpop.f32.mrf.mxu0
    %v1570 = vadd.f32 0.0, %v1569
    %v1571 = vpop.f32.mrf.mxu0
    %v1572 = vadd.f32 0.0, %v1571
    %1573 = vdwg.mxu0
    %1574 = vmatprep.subr.mxu0 0.0
    %1575 = vmatpush1.msra.mxu0 %v785
    %1576 = vmatprep.subr.mxu0 0.0
    %1577 = vmatpush1.msra.mxu0 %v782
    %1578 = vmatprep.subr.mxu0 0.0
    %1579 = vmatpush1.msra.mxu0 %v779
    %1580 = vmatprep.subr.mxu0 0.0
    %1581 = vmatpush1.msra.mxu0 %v776
    %1582 = vmatprep.subr.mxu0 0.0
    %1583 = vmatpush1.msra.mxu0 %v773
    %1584 = vmatprep.subr.mxu0 0.0
    %1585 = vmatpush1.msra.mxu0 %v770
    %1586 = vmatprep.subr.mxu0 0.0
    %1587 = vmatpush1.msra.mxu0 %v767
    %1588 = vmatprep.subr.mxu0 0.0
    %1589 = vmatpush1.msra.mxu0 %v764
    %1590 = vmatprep.subr.mxu0 0.0
    %1591 = vmatpush1.msra.mxu0 %v761
    %1592 = vmatprep.subr.mxu0 0.0
    %1593 = vmatpush1.msra.mxu0 %v758
    %1594 = vmatprep.subr.mxu0 0.0
    %1595 = vmatpush1.msra.mxu0 %v755
    %1596 = vmatprep.subr.mxu0 0.0
    %1597 = vmatpush1.msra.mxu0 %v752
    %1598 = vmatprep.subr.mxu0 0.0
    %1599 = vmatpush1.msra.mxu0 %v749
    %1600 = vmatprep.subr.mxu0 0.0
    %1601 = vmatpush1.msra.mxu0 %v746
    %1602 = vmatprep.subr.mxu0 0.0
    %1603 = vmatpush1.msra.mxu0 %v743
    %1604 = vmatprep.subr.mxu0 0.0
    %1605 = vmatpush1.msra.mxu0 %v740
    %1606 = vmatprep.subr.mxu0 0.0
    %1607 = vmatpush2.msra.mxu0 0.0
    %1608 = vmatprep.subr.mxu0 0.0
    %1609 = vmatpush2.msra.mxu0 0.0
    %1610 = vmatprep.subr.mxu0 0.0
    %1611 = vmatpush2.msra.mxu0 0.0
    %1612 = vmatprep.subr.mxu0 0.0
    %1613 = vmatpush2.msra.mxu0 0.0
    %1614 = vmatprep.subr.mxu0 0.0
    %1615 = vmatpush2.msra.mxu0 0.0
    %1616 = vmatprep.subr.mxu0 0.0
    %1617 = vmatpush2.msra.mxu0 0.0
    %1618 = vmatprep.subr.mxu0 0.0
    %1619 = vmatpush2.msra.mxu0 0.0
    %1620 = vmatprep.subr.mxu0 0.0
    %1621 = vmatpush2.msra.mxu0 0.0
    %1622 = vmatprep.subr.mxu0 0.0
    %1623 = vmatpush2.msra.mxu0 0.0
    %1624 = vmatprep.subr.mxu0 0.0
    %1625 = vmatpush2.msra.mxu0 0.0
    %1626 = vmatprep.subr.mxu0 0.0
    %1627 = vmatpush2.msra.mxu0 0.0
    %1628 = vmatprep.subr.mxu0 0.0
    %1629 = vmatpush2.msra.mxu0 0.0
    %1630 = vmatprep.subr.mxu0 0.0
    %1631 = vmatpush2.msra.mxu0 0.0
    %1632 = vmatprep.subr.mxu0 0.0
    %1633 = vmatpush2.msra.mxu0 0.0
    %1634 = vmatprep.subr.mxu0 0.0
    %1635 = vmatpush2.msra.mxu0 0.0
    %1636 = vmatprep.subr.mxu0 0.0
    %1637 = vmatpush2.msra.mxu0 0.0
    %1638 = vmatprep.mubr.f32.mxu0 0.0
    %1639 = vmatmul.mubr.f32.gmra.mxu0 %v1331
    %v1640 = vpop.f32.mrf.mxu0
    %v1641 = vadd.f32 0.0, %v1640
    %v1642 = vpop.f32.mrf.mxu0
    %1643 = vdwg.mxu0
    %v1644 = vadd.f32 %v1500, %v1570
    %v1645 = vxor.u32 %v1644, 2147483648
    %v1646 = vmul.f32 %v1645, 1.442695
    %v1647 = vpow.pop %v1646
    %v1648 = vadd.f32 %v1647, 1.0
    %v1649 = vrcp.pop %v1648
    %v1650 = vmul.f32 1.0, %v1649
    %v1651 = vadd.f32 %v1501, %v1572
    %v1652 = vxor.u32 %v1651, 2147483648
    %v1653 = vmul.f32 %v1652, 1.442695
    %v1654 = vpow.pop %v1653
    %v1655 = vadd.f32 %v1654, 1.0
    %v1656 = vrcp.pop %v1655
    %v1657 = vmul.f32 1.0, %v1656
    %v1658 = vadd.f32 %v1641, %v725
    %v1659 = vmul.f32 %v1650, %v1658
    %v1660 = vadd.f32 %v1502, %v1659
    %v1661 = vtanh.pop %v1660
    %v1662 = vsub.f32 1.0, %v1657
    %v1663 = vmul.f32 %v1662, %v1661
    %v1664 = vmul.f32 %v1657, %v1331
    %v1665 = vadd.f32 %v1663, %v1664
    %s1666 = scalar_lea.vmem %s695, 120 [#allocation2]
    %v1667 = vld [vmem:[%s1666] sm:$0xff]
    %v1668 = vld [vmem:[%s1666 + $0x8] sm:$0xff]
    %v1669 = vld [vmem:[%s1666 + $0x10] sm:$0xff]
    %1670 = vmatprep.subr.mxu0 %v1000
    %1671 = vmatpush1.msra.mxu0 %v999
    %1672 = vmatprep.subr.mxu0 %v997
    %1673 = vmatpush1.msra.mxu0 %v996
    %1674 = vmatprep.subr.mxu0 %v994
    %1675 = vmatpush1.msra.mxu0 %v993
    %1676 = vmatprep.subr.mxu0 %v991
    %1677 = vmatpush1.msra.mxu0 %v990
    %1678 = vmatprep.subr.mxu0 %v988
    %1679 = vmatpush1.msra.mxu0 %v987
    %1680 = vmatprep.subr.mxu0 %v985
    %1681 = vmatpush1.msra.mxu0 %v984
    %1682 = vmatprep.subr.mxu0 %v982
    %1683 = vmatpush1.msra.mxu0 %v981
    %1684 = vmatprep.subr.mxu0 %v979
    %1685 = vmatpush1.msra.mxu0 %v978
    %1686 = vmatprep.subr.mxu0 %v976
    %1687 = vmatpush1.msra.mxu0 %v975
    %1688 = vmatprep.subr.mxu0 %v973
    %1689 = vmatpush1.msra.mxu0 %v972
    %1690 = vmatprep.subr.mxu0 %v970
    %1691 = vmatpush1.msra.mxu0 %v969
    %1692 = vmatprep.subr.mxu0 %v967
    %1693 = vmatpush1.msra.mxu0 %v966
    %1694 = vmatprep.subr.mxu0 %v964
    %1695 = vmatpush1.msra.mxu0 %v963
    %1696 = vmatprep.subr.mxu0 %v961
    %1697 = vmatpush1.msra.mxu0 %v960
    %1698 = vmatprep.subr.mxu0 %v958
    %1699 = vmatpush1.msra.mxu0 %v957
    %1700 = vmatprep.subr.mxu0 %v955
    %1701 = vmatpush1.msra.mxu0 %v954
    %1702 = vmatprep.subr.mxu0 0.0
    %1703 = vmatpush2.msra.mxu0 0.0
    %1704 = vmatprep.subr.mxu0 0.0
    %1705 = vmatpush2.msra.mxu0 0.0
    %1706 = vmatprep.subr.mxu0 0.0
    %1707 = vmatpush2.msra.mxu0 0.0
    %1708 = vmatprep.subr.mxu0 0.0
    %1709 = vmatpush2.msra.mxu0 0.0
    %1710 = vmatprep.subr.mxu0 0.0
    %1711 = vmatpush2.msra.mxu0 0.0
    %1712 = vmatprep.subr.mxu0 0.0
    %1713 = vmatpush2.msra.mxu0 0.0
    %1714 = vmatprep.subr.mxu0 0.0
    %1715 = vmatpush2.msra.mxu0 0.0
    %1716 = vmatprep.subr.mxu0 0.0
    %1717 = vmatpush2.msra.mxu0 0.0
    %1718 = vmatprep.subr.mxu0 0.0
    %1719 = vmatpush2.msra.mxu0 0.0
    %1720 = vmatprep.subr.mxu0 0.0
    %1721 = vmatpush2.msra.mxu0 0.0
    %1722 = vmatprep.subr.mxu0 0.0
    %1723 = vmatpush2.msra.mxu0 0.0
    %1724 = vmatprep.subr.mxu0 0.0
    %1725 = vmatpush2.msra.mxu0 0.0
    %1726 = vmatprep.subr.mxu0 0.0
    %1727 = vmatpush2.msra.mxu0 0.0
    %1728 = vmatprep.subr.mxu0 0.0
    %1729 = vmatpush2.msra.mxu0 0.0
    %1730 = vmatprep.subr.mxu0 0.0
    %1731 = vmatpush2.msra.mxu0 0.0
    %1732 = vmatprep.subr.mxu0 0.0
    %1733 = vmatpush2.msra.mxu0 0.0
    %1734 = vmatprep.mubr.f32.mxu0 0.0
    %1735 = vmatmul.mubr.f32.gmra.mxu0 %v1498
    %v1736 = vpop.f32.mrf.mxu0
    %v1737 = vadd.f32 0.0, %v1736
    %v1738 = vpop.f32.mrf.mxu0
    %v1739 = vadd.f32 0.0, %v1738
    %1740 = vdwg.mxu0
    %1741 = vmatprep.subr.mxu0 0.0
    %1742 = vmatpush1.msra.mxu0 %v1001
    %1743 = vmatprep.subr.mxu0 0.0
    %1744 = vmatpush1.msra.mxu0 %v998
    %1745 = vmatprep.subr.mxu0 0.0
    %1746 = vmatpush1.msra.mxu0 %v995
    %1747 = vmatprep.subr.mxu0 0.0
    %1748 = vmatpush1.msra.mxu0 %v992
    %1749 = vmatprep.subr.mxu0 0.0
    %1750 = vmatpush1.msra.mxu0 %v989
    %1751 = vmatprep.subr.mxu0 0.0
    %1752 = vmatpush1.msra.mxu0 %v986
    %1753 = vmatprep.subr.mxu0 0.0
    %1754 = vmatpush1.msra.mxu0 %v983
    %1755 = vmatprep.subr.mxu0 0.0
    %1756 = vmatpush1.msra.mxu0 %v980
    %1757 = vmatprep.subr.mxu0 0.0
    %1758 = vmatpush1.msra.mxu0 %v977
    %1759 = vmatprep.subr.mxu0 0.0
    %1760 = vmatpush1.msra.mxu0 %v974
    %1761 = vmatprep.subr.mxu0 0.0
    %1762 = vmatpush1.msra.mxu0 %v971
    %1763 = vmatprep.subr.mxu0 0.0
    %1764 = vmatpush1.msra.mxu0 %v968
    %1765 = vmatprep.subr.mxu0 0.0
    %1766 = vmatpush1.msra.mxu0 %v965
    %1767 = vmatprep.subr.mxu0 0.0
    %1768 = vmatpush1.msra.mxu0 %v962
    %1769 = vmatprep.subr.mxu0 0.0
    %1770 = vmatpush1.msra.mxu0 %v959
    %1771 = vmatprep.subr.mxu0 0.0
    %1772 = vmatpush1.msra.mxu0 %v956
    %1773 = vmatprep.subr.mxu0 0.0
    %1774 = vmatpush2.msra.mxu0 0.0
    %1775 = vmatprep.subr.mxu0 0.0
    %1776 = vmatpush2.msra.mxu0 0.0
    %1777 = vmatprep.subr.mxu0 0.0
    %1778 = vmatpush2.msra.mxu0 0.0
    %1779 = vmatprep.subr.mxu0 0.0
    %1780 = vmatpush2.msra.mxu0 0.0
    %1781 = vmatprep.subr.mxu0 0.0
    %1782 = vmatpush2.msra.mxu0 0.0
    %1783 = vmatprep.subr.mxu0 0.0
    %1784 = vmatpush2.msra.mxu0 0.0
    %1785 = vmatprep.subr.mxu0 0.0
    %1786 = vmatpush2.msra.mxu0 0.0
    %1787 = vmatprep.subr.mxu0 0.0
    %1788 = vmatpush2.msra.mxu0 0.0
    %1789 = vmatprep.subr.mxu0 0.0
    %1790 = vmatpush2.msra.mxu0 0.0
    %1791 = vmatprep.subr.mxu0 0.0
    %1792 = vmatpush2.msra.mxu0 0.0
    %1793 = vmatprep.subr.mxu0 0.0
    %1794 = vmatpush2.msra.mxu0 0.0
    %1795 = vmatprep.subr.mxu0 0.0
    %1796 = vmatpush2.msra.mxu0 0.0
    %1797 = vmatprep.subr.mxu0 0.0
    %1798 = vmatpush2.msra.mxu0 0.0
    %1799 = vmatprep.subr.mxu0 0.0
    %1800 = vmatpush2.msra.mxu0 0.0
    %1801 = vmatprep.subr.mxu0 0.0
    %1802 = vmatpush2.msra.mxu0 0.0
    %1803 = vmatprep.subr.mxu0 0.0
    %1804 = vmatpush2.msra.mxu0 0.0
    %1805 = vmatprep.mubr.f32.mxu0 0.0
    %1806 = vmatmul.mubr.f32.gmra.mxu0 %v1498
    %v1807 = vpop.f32.mrf.mxu0
    %v1808 = vadd.f32 0.0, %v1807
    %v1809 = vpop.f32.mrf.mxu0
    %1810 = vdwg.mxu0
    %v1811 = vadd.f32 %v1667, %v1737
    %v1812 = vxor.u32 %v1811, 2147483648
    %v1813 = vmul.f32 %v1812, 1.442695
    %v1814 = vpow.pop %v1813
    %v1815 = vadd.f32 %v1814, 1.0
    %v1816 = vrcp.pop %v1815
    %v1817 = vmul.f32 1.0, %v1816
    %v1818 = vadd.f32 %v1668, %v1739
    %v1819 = vxor.u32 %v1818, 2147483648
    %v1820 = vmul.f32 %v1819, 1.442695
    %v1821 = vpow.pop %v1820
    %v1822 = vadd.f32 %v1821, 1.0
    %v1823 = vrcp.pop %v1822
    %v1824 = vmul.f32 1.0, %v1823
    %v1825 = vadd.f32 %v1808, %v733
    %v1826 = vmul.f32 %v1817, %v1825
    %v1827 = vadd.f32 %v1669, %v1826
    %v1828 = vtanh.pop %v1827
    %v1829 = vsub.f32 1.0, %v1824
    %v1830 = vmul.f32 %v1829, %v1828
    %v1831 = vmul.f32 %v1824, %v1498
    %v1832 = vadd.f32 %v1830, %v1831
    %s1833 = scalar_lea.vmem [#allocation2], 72
    %v1834 = vld [vmem:[%s1833] sm:$0xff]
    %v1835 = vld [vmem:[%s1833 + $0x8] sm:$0xff]
    %v1836 = vld [vmem:[%s1833 + $0x10] sm:$0xff]
    %1837 = vmatprep.subr.mxu0 %v784
    %1838 = vmatpush1.msra.mxu0 %v783
    %1839 = vmatprep.subr.mxu0 %v781
    %1840 = vmatpush1.msra.mxu0 %v780
    %1841 = vmatprep.subr.mxu0 %v778
    %1842 = vmatpush1.msra.mxu0 %v777
    %1843 = vmatprep.subr.mxu0 %v775
    %1844 = vmatpush1.msra.mxu0 %v774
    %1845 = vmatprep.subr.mxu0 %v772
    %1846 = vmatpush1.msra.mxu0 %v771
    %1847 = vmatprep.subr.mxu0 %v769
    %1848 = vmatpush1.msra.mxu0 %v768
    %1849 = vmatprep.subr.mxu0 %v766
    %1850 = vmatpush1.msra.mxu0 %v765
    %1851 = vmatprep.subr.mxu0 %v763
    %1852 = vmatpush1.msra.mxu0 %v762
    %1853 = vmatprep.subr.mxu0 %v760
    %1854 = vmatpush1.msra.mxu0 %v759
    %1855 = vmatprep.subr.mxu0 %v757
    %1856 = vmatpush1.msra.mxu0 %v756
    %1857 = vmatprep.subr.mxu0 %v754
    %1858 = vmatpush1.msra.mxu0 %v753
    %1859 = vmatprep.subr.mxu0 %v751
    %1860 = vmatpush1.msra.mxu0 %v750
    %1861 = vmatprep.subr.mxu0 %v748
    %1862 = vmatpush1.msra.mxu0 %v747
    %1863 = vmatprep.subr.mxu0 %v745
    %1864 = vmatpush1.msra.mxu0 %v744
    %1865 = vmatprep.subr.mxu0 %v742
    %1866 = vmatpush1.msra.mxu0 %v741
    %1867 = vmatprep.subr.mxu0 %v739
    %1868 = vmatpush1.msra.mxu0 %v738
    %1869 = vmatprep.subr.mxu0 0.0
    %1870 = vmatpush2.msra.mxu0 0.0
    %1871 = vmatprep.subr.mxu0 0.0
    %1872 = vmatpush2.msra.mxu0 0.0
    %1873 = vmatprep.subr.mxu0 0.0
    %1874 = vmatpush2.msra.mxu0 0.0
    %1875 = vmatprep.subr.mxu0 0.0
    %1876 = vmatpush2.msra.mxu0 0.0
    %1877 = vmatprep.subr.mxu0 0.0
    %1878 = vmatpush2.msra.mxu0 0.0
    %1879 = vmatprep.subr.mxu0 0.0
    %1880 = vmatpush2.msra.mxu0 0.0
    %1881 = vmatprep.subr.mxu0 0.0
    %1882 = vmatpush2.msra.mxu0 0.0
    %1883 = vmatprep.subr.mxu0 0.0
    %1884 = vmatpush2.msra.mxu0 0.0
    %1885 = vmatprep.subr.mxu0 0.0
    %1886 = vmatpush2.msra.mxu0 0.0
    %1887 = vmatprep.subr.mxu0 0.0
    %1888 = vmatpush2.msra.mxu0 0.0
    %1889 = vmatprep.subr.mxu0 0.0
    %1890 = vmatpush2.msra.mxu0 0.0
    %1891 = vmatprep.subr.mxu0 0.0
    %1892 = vmatpush2.msra.mxu0 0.0
    %1893 = vmatprep.subr.mxu0 0.0
    %1894 = vmatpush2.msra.mxu0 0.0
    %1895 = vmatprep.subr.mxu0 0.0
    %1896 = vmatpush2.msra.mxu0 0.0
    %1897 = vmatprep.subr.mxu0 0.0
    %1898 = vmatpush2.msra.mxu0 0.0
    %1899 = vmatprep.subr.mxu0 0.0
    %1900 = vmatpush2.msra.mxu0 0.0
    %1901 = vmatprep.mubr.f32.mxu0 0.0
    %1902 = vmatmul.mubr.f32.gmra.mxu0 %v1665
    %v1903 = vpop.f32.mrf.mxu0
    %v1904 = vadd.f32 0.0, %v1903
    %v1905 = vpop.f32.mrf.mxu0
    %v1906 = vadd.f32 0.0, %v1905
    %1907 = vdwg.mxu0
    %1908 = vmatprep.subr.mxu0 0.0
    %1909 = vmatpush1.msra.mxu0 %v785
    %1910 = vmatprep.subr.mxu0 0.0
    %1911 = vmatpush1.msra.mxu0 %v782
    %1912 = vmatprep.subr.mxu0 0.0
    %1913 = vmatpush1.msra.mxu0 %v779
    %1914 = vmatprep.subr.mxu0 0.0
    %1915 = vmatpush1.msra.mxu0 %v776
    %1916 = vmatprep.subr.mxu0 0.0
    %1917 = vmatpush1.msra.mxu0 %v773
    %1918 = vmatprep.subr.mxu0 0.0
    %1919 = vmatpush1.msra.mxu0 %v770
    %1920 = vmatprep.subr.mxu0 0.0
    %1921 = vmatpush1.msra.mxu0 %v767
    %1922 = vmatprep.subr.mxu0 0.0
    %1923 = vmatpush1.msra.mxu0 %v764
    %1924 = vmatprep.subr.mxu0 0.0
    %1925 = vmatpush1.msra.mxu0 %v761
    %1926 = vmatprep.subr.mxu0 0.0
    %1927 = vmatpush1.msra.mxu0 %v758
    %1928 = vmatprep.subr.mxu0 0.0
    %1929 = vmatpush1.msra.mxu0 %v755
    %1930 = vmatprep.subr.mxu0 0.0
    %1931 = vmatpush1.msra.mxu0 %v752
    %1932 = vmatprep.subr.mxu0 0.0
    %1933 = vmatpush1.msra.mxu0 %v749
    %1934 = vmatprep.subr.mxu0 0.0
    %1935 = vmatpush1.msra.mxu0 %v746
    %1936 = vmatprep.subr.mxu0 0.0
    %1937 = vmatpush1.msra.mxu0 %v743
    %1938 = vmatprep.subr.mxu0 0.0
    %1939 = vmatpush1.msra.mxu0 %v740
    %1940 = vmatprep.subr.mxu0 0.0
    %1941 = vmatpush2.msra.mxu0 0.0
    %1942 = vmatprep.subr.mxu0 0.0
    %1943 = vmatpush2.msra.mxu0 0.0
    %1944 = vmatprep.subr.mxu0 0.0
    %1945 = vmatpush2.msra.mxu0 0.0
    %1946 = vmatprep.subr.mxu0 0.0
    %1947 = vmatpush2.msra.mxu0 0.0
    %1948 = vmatprep.subr.mxu0 0.0
    %1949 = vmatpush2.msra.mxu0 0.0
    %1950 = vmatprep.subr.mxu0 0.0
    %1951 = vmatpush2.msra.mxu0 0.0
    %1952 = vmatprep.subr.mxu0 0.0
    %1953 = vmatpush2.msra.mxu0 0.0
    %1954 = vmatprep.subr.mxu0 0.0
    %1955 = vmatpush2.msra.mxu0 0.0
    %1956 = vmatprep.subr.mxu0 0.0
    %1957 = vmatpush2.msra.mxu0 0.0
    %1958 = vmatprep.subr.mxu0 0.0
    %1959 = vmatpush2.msra.mxu0 0.0
    %1960 = vmatprep.subr.mxu0 0.0
    %1961 = vmatpush2.msra.mxu0 0.0
    %1962 = vmatprep.subr.mxu0 0.0
    %1963 = vmatpush2.msra.mxu0 0.0
    %1964 = vmatprep.subr.mxu0 0.0
    %1965 = vmatpush2.msra.mxu0 0.0
    %1966 = vmatprep.subr.mxu0 0.0
    %1967 = vmatpush2.msra.mxu0 0.0
    %1968 = vmatprep.subr.mxu0 0.0
    %1969 = vmatpush2.msra.mxu0 0.0
    %1970 = vmatprep.subr.mxu0 0.0
    %1971 = vmatpush2.msra.mxu0 0.0
    %1972 = vmatprep.mubr.f32.mxu0 0.0
    %1973 = vmatmul.mubr.f32.gmra.mxu0 %v1665
    %v1974 = vpop.f32.mrf.mxu0
    %v1975 = vadd.f32 0.0, %v1974
    %v1976 = vpop.f32.mrf.mxu0
    %1977 = vdwg.mxu0
    %v1978 = vadd.f32 %v1834, %v1904
    %v1979 = vxor.u32 %v1978, 2147483648
    %v1980 = vmul.f32 %v1979, 1.442695
    %v1981 = vpow.pop %v1980
    %v1982 = vadd.f32 %v1981, 1.0
    %v1983 = vrcp.pop %v1982
    %v1984 = vmul.f32 1.0, %v1983
    %v1985 = vadd.f32 %v1835, %v1906
    %v1986 = vxor.u32 %v1985, 2147483648
    %v1987 = vmul.f32 %v1986, 1.442695
    %v1988 = vpow.pop %v1987
    %v1989 = vadd.f32 %v1988, 1.0
    %v1990 = vrcp.pop %v1989
    %v1991 = vmul.f32 1.0, %v1990
    %v1992 = vadd.f32 %v1975, %v725
    %v1993 = vmul.f32 %v1984, %v1992
    %v1994 = vadd.f32 %v1836, %v1993
    %v1995 = vtanh.pop %v1994
    %v1996 = vsub.f32 1.0, %v1991
    %v1997 = vmul.f32 %v1996, %v1995
    %v1998 = vmul.f32 %v1991, %v1665
    %v1999 = vadd.f32 %v1997, %v1998
    %s2000 = scalar_lea.vmem %s695, 96 [#allocation2]
    %v2001 = vld [vmem:[%s2000] sm:$0xff]
    %v2002 = vld [vmem:[%s2000 + $0x8] sm:$0xff]
    %v2003 = vld [vmem:[%s2000 + $0x10] sm:$0xff]
    %2004 = vmatprep.subr.mxu0 %v1000
    %2005 = vmatpush1.msra.mxu0 %v999
    %2006 = vmatprep.subr.mxu0 %v997
    %2007 = vmatpush1.msra.mxu0 %v996
    %2008 = vmatprep.subr.mxu0 %v994
    %2009 = vmatpush1.msra.mxu0 %v993
    %2010 = vmatprep.subr.mxu0 %v991
    %2011 = vmatpush1.msra.mxu0 %v990
    %2012 = vmatprep.subr.mxu0 %v988
    %2013 = vmatpush1.msra.mxu0 %v987
    %2014 = vmatprep.subr.mxu0 %v985
    %2015 = vmatpush1.msra.mxu0 %v984
    %2016 = vmatprep.subr.mxu0 %v982
    %2017 = vmatpush1.msra.mxu0 %v981
    %2018 = vmatprep.subr.mxu0 %v979
    %2019 = vmatpush1.msra.mxu0 %v978
    %2020 = vmatprep.subr.mxu0 %v976
    %2021 = vmatpush1.msra.mxu0 %v975
    %2022 = vmatprep.subr.mxu0 %v973
    %2023 = vmatpush1.msra.mxu0 %v972
    %2024 = vmatprep.subr.mxu0 %v970
    %2025 = vmatpush1.msra.mxu0 %v969
    %2026 = vmatprep.subr.mxu0 %v967
    %2027 = vmatpush1.msra.mxu0 %v966
    %2028 = vmatprep.subr.mxu0 %v964
    %2029 = vmatpush1.msra.mxu0 %v963
    %2030 = vmatprep.subr.mxu0 %v961
    %2031 = vmatpush1.msra.mxu0 %v960
    %2032 = vmatprep.subr.mxu0 %v958
    %2033 = vmatpush1.msra.mxu0 %v957
    %2034 = vmatprep.subr.mxu0 %v955
    %2035 = vmatpush1.msra.mxu0 %v954
    %2036 = vmatprep.subr.mxu0 0.0
    %2037 = vmatpush2.msra.mxu0 0.0
    %2038 = vmatprep.subr.mxu0 0.0
    %2039 = vmatpush2.msra.mxu0 0.0
    %2040 = vmatprep.subr.mxu0 0.0
    %2041 = vmatpush2.msra.mxu0 0.0
    %2042 = vmatprep.subr.mxu0 0.0
    %2043 = vmatpush2.msra.mxu0 0.0
    %2044 = vmatprep.subr.mxu0 0.0
    %2045 = vmatpush2.msra.mxu0 0.0
    %2046 = vmatprep.subr.mxu0 0.0
    %2047 = vmatpush2.msra.mxu0 0.0
    %2048 = vmatprep.subr.mxu0 0.0
    %2049 = vmatpush2.msra.mxu0 0.0
    %2050 = vmatprep.subr.mxu0 0.0
    %2051 = vmatpush2.msra.mxu0 0.0
    %2052 = vmatprep.subr.mxu0 0.0
    %2053 = vmatpush2.msra.mxu0 0.0
    %2054 = vmatprep.subr.mxu0 0.0
    %2055 = vmatpush2.msra.mxu0 0.0
    %2056 = vmatprep.subr.mxu0 0.0
    %2057 = vmatpush2.msra.mxu0 0.0
    %2058 = vmatprep.subr.mxu0 0.0
    %2059 = vmatpush2.msra.mxu0 0.0
    %2060 = vmatprep.subr.mxu0 0.0
    %2061 = vmatpush2.msra.mxu0 0.0
    %2062 = vmatprep.subr.mxu0 0.0
    %2063 = vmatpush2.msra.mxu0 0.0
    %2064 = vmatprep.subr.mxu0 0.0
    %2065 = vmatpush2.msra.mxu0 0.0
    %2066 = vmatprep.subr.mxu0 0.0
    %2067 = vmatpush2.msra.mxu0 0.0
    %2068 = vmatprep.mubr.f32.mxu0 0.0
    %2069 = vmatmul.mubr.f32.gmra.mxu0 %v1832
    %v2070 = vpop.f32.mrf.mxu0
    %v2071 = vadd.f32 0.0, %v2070
    %v2072 = vpop.f32.mrf.mxu0
    %v2073 = vadd.f32 0.0, %v2072
    %2074 = vdwg.mxu0
    %2075 = vmatprep.subr.mxu0 0.0
    %2076 = vmatpush1.msra.mxu0 %v1001
    %2077 = vmatprep.subr.mxu0 0.0
    %2078 = vmatpush1.msra.mxu0 %v998
    %2079 = vmatprep.subr.mxu0 0.0
    %2080 = vmatpush1.msra.mxu0 %v995
    %2081 = vmatprep.subr.mxu0 0.0
    %2082 = vmatpush1.msra.mxu0 %v992
    %2083 = vmatprep.subr.mxu0 0.0
    %2084 = vmatpush1.msra.mxu0 %v989
    %2085 = vmatprep.subr.mxu0 0.0
    %2086 = vmatpush1.msra.mxu0 %v986
    %2087 = vmatprep.subr.mxu0 0.0
    %2088 = vmatpush1.msra.mxu0 %v983
    %2089 = vmatprep.subr.mxu0 0.0
    %2090 = vmatpush1.msra.mxu0 %v980
    %2091 = vmatprep.subr.mxu0 0.0
    %2092 = vmatpush1.msra.mxu0 %v977
    %2093 = vmatprep.subr.mxu0 0.0
    %2094 = vmatpush1.msra.mxu0 %v974
    %2095 = vmatprep.subr.mxu0 0.0
    %2096 = vmatpush1.msra.mxu0 %v971
    %2097 = vmatprep.subr.mxu0 0.0
    %2098 = vmatpush1.msra.mxu0 %v968
    %2099 = vmatprep.subr.mxu0 0.0
    %2100 = vmatpush1.msra.mxu0 %v965
    %2101 = vmatprep.subr.mxu0 0.0
    %2102 = vmatpush1.msra.mxu0 %v962
    %2103 = vmatprep.subr.mxu0 0.0
    %2104 = vmatpush1.msra.mxu0 %v959
    %2105 = vmatprep.subr.mxu0 0.0
    %2106 = vmatpush1.msra.mxu0 %v956
    %2107 = vmatprep.subr.mxu0 0.0
    %2108 = vmatpush2.msra.mxu0 0.0
    %2109 = vmatprep.subr.mxu0 0.0
    %2110 = vmatpush2.msra.mxu0 0.0
    %2111 = vmatprep.subr.mxu0 0.0
    %2112 = vmatpush2.msra.mxu0 0.0
    %2113 = vmatprep.subr.mxu0 0.0
    %2114 = vmatpush2.msra.mxu0 0.0
    %2115 = vmatprep.subr.mxu0 0.0
    %2116 = vmatpush2.msra.mxu0 0.0
    %2117 = vmatprep.subr.mxu0 0.0
    %2118 = vmatpush2.msra.mxu0 0.0
    %2119 = vmatprep.subr.mxu0 0.0
    %2120 = vmatpush2.msra.mxu0 0.0
    %2121 = vmatprep.subr.mxu0 0.0
    %2122 = vmatpush2.msra.mxu0 0.0
    %2123 = vmatprep.subr.mxu0 0.0
    %2124 = vmatpush2.msra.mxu0 0.0
    %2125 = vmatprep.subr.mxu0 0.0
    %2126 = vmatpush2.msra.mxu0 0.0
    %2127 = vmatprep.subr.mxu0 0.0
    %2128 = vmatpush2.msra.mxu0 0.0
    %2129 = vmatprep.subr.mxu0 0.0
    %2130 = vmatpush2.msra.mxu0 0.0
    %2131 = vmatprep.subr.mxu0 0.0
    %2132 = vmatpush2.msra.mxu0 0.0
    %2133 = vmatprep.subr.mxu0 0.0
    %2134 = vmatpush2.msra.mxu0 0.0
    %2135 = vmatprep.subr.mxu0 0.0
    %2136 = vmatpush2.msra.mxu0 0.0
    %2137 = vmatprep.subr.mxu0 0.0
    %2138 = vmatpush2.msra.mxu0 0.0
    %2139 = vmatprep.mubr.f32.mxu0 0.0
    %2140 = vmatmul.mubr.f32.gmra.mxu0 %v1832
    %v2141 = vpop.f32.mrf.mxu0
    %v2142 = vadd.f32 0.0, %v2141
    %v2143 = vpop.f32.mrf.mxu0
    %2144 = vdwg.mxu0
    %v2145 = vadd.f32 %v2001, %v2071
    %v2146 = vxor.u32 %v2145, 2147483648
    %v2147 = vmul.f32 %v2146, 1.442695
    %v2148 = vpow.pop %v2147
    %v2149 = vadd.f32 %v2148, 1.0
    %v2150 = vrcp.pop %v2149
    %v2151 = vmul.f32 1.0, %v2150
    %v2152 = vadd.f32 %v2002, %v2073
    %v2153 = vxor.u32 %v2152, 2147483648
    %v2154 = vmul.f32 %v2153, 1.442695
    %v2155 = vpow.pop %v2154
    %v2156 = vadd.f32 %v2155, 1.0
    %v2157 = vrcp.pop %v2156
    %v2158 = vmul.f32 1.0, %v2157
    %v2159 = vadd.f32 %v2142, %v733
    %v2160 = vmul.f32 %v2151, %v2159
    %v2161 = vadd.f32 %v2003, %v2160
    %v2162 = vtanh.pop %v2161
    %v2163 = vsub.f32 1.0, %v2158
    %v2164 = vmul.f32 %v2163, %v2162
    %v2165 = vmul.f32 %v2158, %v1832
    %v2166 = vadd.f32 %v2164, %v2165
    %s2167 = scalar_lea.vmem [#allocation2], 96
    %v2168 = vld [vmem:[%s2167] sm:$0xff]
    %v2169 = vld [vmem:[%s2167 + $0x8] sm:$0xff]
    %v2170 = vld [vmem:[%s2167 + $0x10] sm:$0xff]
    %2171 = vmatprep.subr.mxu0 %v784
    %2172 = vmatpush1.msra.mxu0 %v783
    %2173 = vmatprep.subr.mxu0 %v781
    %2174 = vmatpush1.msra.mxu0 %v780
    %2175 = vmatprep.subr.mxu0 %v778
    %2176 = vmatpush1.msra.mxu0 %v777
    %2177 = vmatprep.subr.mxu0 %v775
    %2178 = vmatpush1.msra.mxu0 %v774
    %2179 = vmatprep.subr.mxu0 %v772
    %2180 = vmatpush1.msra.mxu0 %v771
    %2181 = vmatprep.subr.mxu0 %v769
    %2182 = vmatpush1.msra.mxu0 %v768
    %2183 = vmatprep.subr.mxu0 %v766
    %2184 = vmatpush1.msra.mxu0 %v765
    %2185 = vmatprep.subr.mxu0 %v763
    %2186 = vmatpush1.msra.mxu0 %v762
    %2187 = vmatprep.subr.mxu0 %v760
    %2188 = vmatpush1.msra.mxu0 %v759
    %2189 = vmatprep.subr.mxu0 %v757
    %2190 = vmatpush1.msra.mxu0 %v756
    %2191 = vmatprep.subr.mxu0 %v754
    %2192 = vmatpush1.msra.mxu0 %v753
    %2193 = vmatprep.subr.mxu0 %v751
    %2194 = vmatpush1.msra.mxu0 %v750
    %2195 = vmatprep.subr.mxu0 %v748
    %2196 = vmatpush1.msra.mxu0 %v747
    %2197 = vmatprep.subr.mxu0 %v745
    %2198 = vmatpush1.msra.mxu0 %v744
    %2199 = vmatprep.subr.mxu0 %v742
    %2200 = vmatpush1.msra.mxu0 %v741
    %2201 = vmatprep.subr.mxu0 %v739
    %2202 = vmatpush1.msra.mxu0 %v738
    %2203 = vmatprep.subr.mxu0 0.0
    %2204 = vmatpush2.msra.mxu0 0.0
    %2205 = vmatprep.subr.mxu0 0.0
    %2206 = vmatpush2.msra.mxu0 0.0
    %2207 = vmatprep.subr.mxu0 0.0
    %2208 = vmatpush2.msra.mxu0 0.0
    %2209 = vmatprep.subr.mxu0 0.0
    %2210 = vmatpush2.msra.mxu0 0.0
    %2211 = vmatprep.subr.mxu0 0.0
    %2212 = vmatpush2.msra.mxu0 0.0
    %2213 = vmatprep.subr.mxu0 0.0
    %2214 = vmatpush2.msra.mxu0 0.0
    %2215 = vmatprep.subr.mxu0 0.0
    %2216 = vmatpush2.msra.mxu0 0.0
    %2217 = vmatprep.subr.mxu0 0.0
    %2218 = vmatpush2.msra.mxu0 0.0
    %2219 = vmatprep.subr.mxu0 0.0
    %2220 = vmatpush2.msra.mxu0 0.0
    %2221 = vmatprep.subr.mxu0 0.0
    %2222 = vmatpush2.msra.mxu0 0.0
    %2223 = vmatprep.subr.mxu0 0.0
    %2224 = vmatpush2.msra.mxu0 0.0
    %2225 = vmatprep.subr.mxu0 0.0
    %2226 = vmatpush2.msra.mxu0 0.0
    %2227 = vmatprep.subr.mxu0 0.0
    %2228 = vmatpush2.msra.mxu0 0.0
    %2229 = vmatprep.subr.mxu0 0.0
    %2230 = vmatpush2.msra.mxu0 0.0
    %2231 = vmatprep.subr.mxu0 0.0
    %2232 = vmatpush2.msra.mxu0 0.0
    %2233 = vmatprep.subr.mxu0 0.0
    %2234 = vmatpush2.msra.mxu0 0.0
    %2235 = vmatprep.mubr.f32.mxu0 0.0
    %2236 = vmatmul.mubr.f32.gmra.mxu0 %v1999
    %v2237 = vpop.f32.mrf.mxu0
    %v2238 = vadd.f32 0.0, %v2237
    %v2239 = vpop.f32.mrf.mxu0
    %v2240 = vadd.f32 0.0, %v2239
    %2241 = vdwg.mxu0
    %2242 = vmatprep.subr.mxu0 0.0
    %2243 = vmatpush1.msra.mxu0 %v785
    %2244 = vmatprep.subr.mxu0 0.0
    %2245 = vmatpush1.msra.mxu0 %v782
    %2246 = vmatprep.subr.mxu0 0.0
    %2247 = vmatpush1.msra.mxu0 %v779
    %2248 = vmatprep.subr.mxu0 0.0
    %2249 = vmatpush1.msra.mxu0 %v776
    %2250 = vmatprep.subr.mxu0 0.0
    %2251 = vmatpush1.msra.mxu0 %v773
    %2252 = vmatprep.subr.mxu0 0.0
    %2253 = vmatpush1.msra.mxu0 %v770
    %2254 = vmatprep.subr.mxu0 0.0
    %2255 = vmatpush1.msra.mxu0 %v767
    %2256 = vmatprep.subr.mxu0 0.0
    %2257 = vmatpush1.msra.mxu0 %v764
    %2258 = vmatprep.subr.mxu0 0.0
    %2259 = vmatpush1.msra.mxu0 %v761
    %2260 = vmatprep.subr.mxu0 0.0
    %2261 = vmatpush1.msra.mxu0 %v758
    %2262 = vmatprep.subr.mxu0 0.0
    %2263 = vmatpush1.msra.mxu0 %v755
    %2264 = vmatprep.subr.mxu0 0.0
    %2265 = vmatpush1.msra.mxu0 %v752
    %2266 = vmatprep.subr.mxu0 0.0
    %2267 = vmatpush1.msra.mxu0 %v749
    %2268 = vmatprep.subr.mxu0 0.0
    %2269 = vmatpush1.msra.mxu0 %v746
    %2270 = vmatprep.subr.mxu0 0.0
    %2271 = vmatpush1.msra.mxu0 %v743
    %2272 = vmatprep.subr.mxu0 0.0
    %2273 = vmatpush1.msra.mxu0 %v740
    %2274 = vmatprep.subr.mxu0 0.0
    %2275 = vmatpush2.msra.mxu0 0.0
    %2276 = vmatprep.subr.mxu0 0.0
    %2277 = vmatpush2.msra.mxu0 0.0
    %2278 = vmatprep.subr.mxu0 0.0
    %2279 = vmatpush2.msra.mxu0 0.0
    %2280 = vmatprep.subr.mxu0 0.0
    %2281 = vmatpush2.msra.mxu0 0.0
    %2282 = vmatprep.subr.mxu0 0.0
    %2283 = vmatpush2.msra.mxu0 0.0
    %2284 = vmatprep.subr.mxu0 0.0
    %2285 = vmatpush2.msra.mxu0 0.0
    %2286 = vmatprep.subr.mxu0 0.0
    %2287 = vmatpush2.msra.mxu0 0.0
    %2288 = vmatprep.subr.mxu0 0.0
    %2289 = vmatpush2.msra.mxu0 0.0
    %2290 = vmatprep.subr.mxu0 0.0
    %2291 = vmatpush2.msra.mxu0 0.0
    %2292 = vmatprep.subr.mxu0 0.0
    %2293 = vmatpush2.msra.mxu0 0.0
    %2294 = vmatprep.subr.mxu0 0.0
    %2295 = vmatpush2.msra.mxu0 0.0
    %2296 = vmatprep.subr.mxu0 0.0
    %2297 = vmatpush2.msra.mxu0 0.0
    %2298 = vmatprep.subr.mxu0 0.0
    %2299 = vmatpush2.msra.mxu0 0.0
    %2300 = vmatprep.subr.mxu0 0.0
    %2301 = vmatpush2.msra.mxu0 0.0
    %2302 = vmatprep.subr.mxu0 0.0
    %2303 = vmatpush2.msra.mxu0 0.0
    %2304 = vmatprep.subr.mxu0 0.0
    %2305 = vmatpush2.msra.mxu0 0.0
    %2306 = vmatprep.mubr.f32.mxu0 0.0
    %2307 = vmatmul.mubr.f32.gmra.mxu0 %v1999
    %v2308 = vpop.f32.mrf.mxu0
    %v2309 = vadd.f32 0.0, %v2308
    %v2310 = vpop.f32.mrf.mxu0
    %2311 = vdwg.mxu0
    %v2312 = vadd.f32 %v2168, %v2238
    %v2313 = vxor.u32 %v2312, 2147483648
    %v2314 = vmul.f32 %v2313, 1.442695
    %v2315 = vpow.pop %v2314
    %v2316 = vadd.f32 %v2315, 1.0
    %v2317 = vrcp.pop %v2316
    %v2318 = vmul.f32 1.0, %v2317
    %v2319 = vadd.f32 %v2169, %v2240
    %v2320 = vxor.u32 %v2319, 2147483648
    %v2321 = vmul.f32 %v2320, 1.442695
    %v2322 = vpow.pop %v2321
    %v2323 = vadd.f32 %v2322, 1.0
    %v2324 = vrcp.pop %v2323
    %v2325 = vmul.f32 1.0, %v2324
    %v2326 = vadd.f32 %v2309, %v725
    %v2327 = vmul.f32 %v2318, %v2326
    %v2328 = vadd.f32 %v2170, %v2327
    %v2329 = vtanh.pop %v2328
    %v2330 = vsub.f32 1.0, %v2325
    %v2331 = vmul.f32 %v2330, %v2329
    %v2332 = vmul.f32 %v2325, %v1999
    %v2333 = vadd.f32 %v2331, %v2332
    %s2334 = scalar_lea.vmem %s695, 72 [#allocation2]
    %v2335 = vld [vmem:[%s2334] sm:$0xff]
    %v2336 = vld [vmem:[%s2334 + $0x8] sm:$0xff]
    %v2337 = vld [vmem:[%s2334 + $0x10] sm:$0xff]
    %2338 = vmatprep.subr.mxu0 %v1000
    %2339 = vmatpush1.msra.mxu0 %v999
    %2340 = vmatprep.subr.mxu0 %v997
    %2341 = vmatpush1.msra.mxu0 %v996
    %2342 = vmatprep.subr.mxu0 %v994
    %2343 = vmatpush1.msra.mxu0 %v993
    %2344 = vmatprep.subr.mxu0 %v991
    %2345 = vmatpush1.msra.mxu0 %v990
    %2346 = vmatprep.subr.mxu0 %v988
    %2347 = vmatpush1.msra.mxu0 %v987
    %2348 = vmatprep.subr.mxu0 %v985
    %2349 = vmatpush1.msra.mxu0 %v984
    %2350 = vmatprep.subr.mxu0 %v982
    %2351 = vmatpush1.msra.mxu0 %v981
    %2352 = vmatprep.subr.mxu0 %v979
    %2353 = vmatpush1.msra.mxu0 %v978
    %2354 = vmatprep.subr.mxu0 %v976
    %2355 = vmatpush1.msra.mxu0 %v975
    %2356 = vmatprep.subr.mxu0 %v973
    %2357 = vmatpush1.msra.mxu0 %v972
    %2358 = vmatprep.subr.mxu0 %v970
    %2359 = vmatpush1.msra.mxu0 %v969
    %2360 = vmatprep.subr.mxu0 %v967
    %2361 = vmatpush1.msra.mxu0 %v966
    %2362 = vmatprep.subr.mxu0 %v964
    %2363 = vmatpush1.msra.mxu0 %v963
    %2364 = vmatprep.subr.mxu0 %v961
    %2365 = vmatpush1.msra.mxu0 %v960
    %2366 = vmatprep.subr.mxu0 %v958
    %2367 = vmatpush1.msra.mxu0 %v957
    %2368 = vmatprep.subr.mxu0 %v955
    %2369 = vmatpush1.msra.mxu0 %v954
    %2370 = vmatprep.subr.mxu0 0.0
    %2371 = vmatpush2.msra.mxu0 0.0
    %2372 = vmatprep.subr.mxu0 0.0
    %2373 = vmatpush2.msra.mxu0 0.0
    %2374 = vmatprep.subr.mxu0 0.0
    %2375 = vmatpush2.msra.mxu0 0.0
    %2376 = vmatprep.subr.mxu0 0.0
    %2377 = vmatpush2.msra.mxu0 0.0
    %2378 = vmatprep.subr.mxu0 0.0
    %2379 = vmatpush2.msra.mxu0 0.0
    %2380 = vmatprep.subr.mxu0 0.0
    %2381 = vmatpush2.msra.mxu0 0.0
    %2382 = vmatprep.subr.mxu0 0.0
    %2383 = vmatpush2.msra.mxu0 0.0
    %2384 = vmatprep.subr.mxu0 0.0
    %2385 = vmatpush2.msra.mxu0 0.0
    %2386 = vmatprep.subr.mxu0 0.0
    %2387 = vmatpush2.msra.mxu0 0.0
    %2388 = vmatprep.subr.mxu0 0.0
    %2389 = vmatpush2.msra.mxu0 0.0
    %2390 = vmatprep.subr.mxu0 0.0
    %2391 = vmatpush2.msra.mxu0 0.0
    %2392 = vmatprep.subr.mxu0 0.0
    %2393 = vmatpush2.msra.mxu0 0.0
    %2394 = vmatprep.subr.mxu0 0.0
    %2395 = vmatpush2.msra.mxu0 0.0
    %2396 = vmatprep.subr.mxu0 0.0
    %2397 = vmatpush2.msra.mxu0 0.0
    %2398 = vmatprep.subr.mxu0 0.0
    %2399 = vmatpush2.msra.mxu0 0.0
    %2400 = vmatprep.subr.mxu0 0.0
    %2401 = vmatpush2.msra.mxu0 0.0
    %2402 = vmatprep.mubr.f32.mxu0 0.0
    %2403 = vmatmul.mubr.f32.gmra.mxu0 %v2166
    %v2404 = vpop.f32.mrf.mxu0
    %v2405 = vadd.f32 0.0, %v2404
    %v2406 = vpop.f32.mrf.mxu0
    %v2407 = vadd.f32 0.0, %v2406
    %2408 = vdwg.mxu0
    %2409 = vmatprep.subr.mxu0 0.0
    %2410 = vmatpush1.msra.mxu0 %v1001
    %2411 = vmatprep.subr.mxu0 0.0
    %2412 = vmatpush1.msra.mxu0 %v998
    %2413 = vmatprep.subr.mxu0 0.0
    %2414 = vmatpush1.msra.mxu0 %v995
    %2415 = vmatprep.subr.mxu0 0.0
    %2416 = vmatpush1.msra.mxu0 %v992
    %2417 = vmatprep.subr.mxu0 0.0
    %2418 = vmatpush1.msra.mxu0 %v989
    %2419 = vmatprep.subr.mxu0 0.0
    %2420 = vmatpush1.msra.mxu0 %v986
    %2421 = vmatprep.subr.mxu0 0.0
    %2422 = vmatpush1.msra.mxu0 %v983
    %2423 = vmatprep.subr.mxu0 0.0
    %2424 = vmatpush1.msra.mxu0 %v980
    %2425 = vmatprep.subr.mxu0 0.0
    %2426 = vmatpush1.msra.mxu0 %v977
    %2427 = vmatprep.subr.mxu0 0.0
    %2428 = vmatpush1.msra.mxu0 %v974
    %2429 = vmatprep.subr.mxu0 0.0
    %2430 = vmatpush1.msra.mxu0 %v971
    %2431 = vmatprep.subr.mxu0 0.0
    %2432 = vmatpush1.msra.mxu0 %v968
    %2433 = vmatprep.subr.mxu0 0.0
    %2434 = vmatpush1.msra.mxu0 %v965
    %2435 = vmatprep.subr.mxu0 0.0
    %2436 = vmatpush1.msra.mxu0 %v962
    %2437 = vmatprep.subr.mxu0 0.0
    %2438 = vmatpush1.msra.mxu0 %v959
    %2439 = vmatprep.subr.mxu0 0.0
    %2440 = vmatpush1.msra.mxu0 %v956
    %2441 = vmatprep.subr.mxu0 0.0
    %2442 = vmatpush2.msra.mxu0 0.0
    %2443 = vmatprep.subr.mxu0 0.0
    %2444 = vmatpush2.msra.mxu0 0.0
    %2445 = vmatprep.subr.mxu0 0.0
    %2446 = vmatpush2.msra.mxu0 0.0
    %2447 = vmatprep.subr.mxu0 0.0
    %2448 = vmatpush2.msra.mxu0 0.0
    %2449 = vmatprep.subr.mxu0 0.0
    %2450 = vmatpush2.msra.mxu0 0.0
    %2451 = vmatprep.subr.mxu0 0.0
    %2452 = vmatpush2.msra.mxu0 0.0
    %2453 = vmatprep.subr.mxu0 0.0
    %2454 = vmatpush2.msra.mxu0 0.0
    %2455 = vmatprep.subr.mxu0 0.0
    %2456 = vmatpush2.msra.mxu0 0.0
    %2457 = vmatprep.subr.mxu0 0.0
    %2458 = vmatpush2.msra.mxu0 0.0
    %2459 = vmatprep.subr.mxu0 0.0
    %2460 = vmatpush2.msra.mxu0 0.0
    %2461 = vmatprep.subr.mxu0 0.0
    %2462 = vmatpush2.msra.mxu0 0.0
    %2463 = vmatprep.subr.mxu0 0.0
    %2464 = vmatpush2.msra.mxu0 0.0
    %2465 = vmatprep.subr.mxu0 0.0
    %2466 = vmatpush2.msra.mxu0 0.0
    %2467 = vmatprep.subr.mxu0 0.0
    %2468 = vmatpush2.msra.mxu0 0.0
    %2469 = vmatprep.subr.mxu0 0.0
    %2470 = vmatpush2.msra.mxu0 0.0
    %2471 = vmatprep.subr.mxu0 0.0
    %2472 = vmatpush2.msra.mxu0 0.0
    %2473 = vmatprep.mubr.f32.mxu0 0.0
    %2474 = vmatmul.mubr.f32.gmra.mxu0 %v2166
    %v2475 = vpop.f32.mrf.mxu0
    %v2476 = vadd.f32 0.0, %v2475
    %v2477 = vpop.f32.mrf.mxu0
    %2478 = vdwg.mxu0
    %v2479 = vadd.f32 %v2335, %v2405
    %v2480 = vxor.u32 %v2479, 2147483648
    %v2481 = vmul.f32 %v2480, 1.442695
    %v2482 = vpow.pop %v2481
    %v2483 = vadd.f32 %v2482, 1.0
    %v2484 = vrcp.pop %v2483
    %v2485 = vmul.f32 1.0, %v2484
    %v2486 = vadd.f32 %v2336, %v2407
    %v2487 = vxor.u32 %v2486, 2147483648
    %v2488 = vmul.f32 %v2487, 1.442695
    %v2489 = vpow.pop %v2488
    %v2490 = vadd.f32 %v2489, 1.0
    %v2491 = vrcp.pop %v2490
    %v2492 = vmul.f32 1.0, %v2491
    %v2493 = vadd.f32 %v2476, %v733
    %v2494 = vmul.f32 %v2485, %v2493
    %v2495 = vadd.f32 %v2337, %v2494
    %v2496 = vtanh.pop %v2495
    %v2497 = vsub.f32 1.0, %v2492
    %v2498 = vmul.f32 %v2497, %v2496
    %v2499 = vmul.f32 %v2492, %v2166
    %v2500 = vadd.f32 %v2498, %v2499
    %s2501 = scalar_lea.vmem [#allocation2], 120
    %v2502 = vld [vmem:[%s2501] sm:$0xff]
    %v2503 = vld [vmem:[%s2501 + $0x8] sm:$0xff]
    %v2504 = vld [vmem:[%s2501 + $0x10] sm:$0xff]
    %2505 = vmatprep.subr.mxu0 %v784
    %2506 = vmatpush1.msra.mxu0 %v783
    %2507 = vmatprep.subr.mxu0 %v781
    %2508 = vmatpush1.msra.mxu0 %v780
    %2509 = vmatprep.subr.mxu0 %v778
    %2510 = vmatpush1.msra.mxu0 %v777
    %2511 = vmatprep.subr.mxu0 %v775
    %2512 = vmatpush1.msra.mxu0 %v774
    %2513 = vmatprep.subr.mxu0 %v772
    %2514 = vmatpush1.msra.mxu0 %v771
    %2515 = vmatprep.subr.mxu0 %v769
    %2516 = vmatpush1.msra.mxu0 %v768
    %2517 = vmatprep.subr.mxu0 %v766
    %2518 = vmatpush1.msra.mxu0 %v765
    %2519 = vmatprep.subr.mxu0 %v763
    %2520 = vmatpush1.msra.mxu0 %v762
    %2521 = vmatprep.subr.mxu0 %v760
    %2522 = vmatpush1.msra.mxu0 %v759
    %2523 = vmatprep.subr.mxu0 %v757
    %2524 = vmatpush1.msra.mxu0 %v756
    %2525 = vmatprep.subr.mxu0 %v754
    %2526 = vmatpush1.msra.mxu0 %v753
    %2527 = vmatprep.subr.mxu0 %v751
    %2528 = vmatpush1.msra.mxu0 %v750
    %2529 = vmatprep.subr.mxu0 %v748
    %2530 = vmatpush1.msra.mxu0 %v747
    %2531 = vmatprep.subr.mxu0 %v745
    %2532 = vmatpush1.msra.mxu0 %v744
    %2533 = vmatprep.subr.mxu0 %v742
    %2534 = vmatpush1.msra.mxu0 %v741
    %2535 = vmatprep.subr.mxu0 %v739
    %2536 = vmatpush1.msra.mxu0 %v738
    %2537 = vmatprep.subr.mxu0 0.0
    %2538 = vmatpush2.msra.mxu0 0.0
    %2539 = vmatprep.subr.mxu0 0.0
    %2540 = vmatpush2.msra.mxu0 0.0
    %2541 = vmatprep.subr.mxu0 0.0
    %2542 = vmatpush2.msra.mxu0 0.0
    %2543 = vmatprep.subr.mxu0 0.0
    %2544 = vmatpush2.msra.mxu0 0.0
    %2545 = vmatprep.subr.mxu0 0.0
    %2546 = vmatpush2.msra.mxu0 0.0
    %2547 = vmatprep.subr.mxu0 0.0
    %2548 = vmatpush2.msra.mxu0 0.0
    %2549 = vmatprep.subr.mxu0 0.0
    %2550 = vmatpush2.msra.mxu0 0.0
    %2551 = vmatprep.subr.mxu0 0.0
    %2552 = vmatpush2.msra.mxu0 0.0
    %2553 = vmatprep.subr.mxu0 0.0
    %2554 = vmatpush2.msra.mxu0 0.0
    %2555 = vmatprep.subr.mxu0 0.0
    %2556 = vmatpush2.msra.mxu0 0.0
    %2557 = vmatprep.subr.mxu0 0.0
    %2558 = vmatpush2.msra.mxu0 0.0
    %2559 = vmatprep.subr.mxu0 0.0
    %2560 = vmatpush2.msra.mxu0 0.0
    %2561 = vmatprep.subr.mxu0 0.0
    %2562 = vmatpush2.msra.mxu0 0.0
    %2563 = vmatprep.subr.mxu0 0.0
    %2564 = vmatpush2.msra.mxu0 0.0
    %2565 = vmatprep.subr.mxu0 0.0
    %2566 = vmatpush2.msra.mxu0 0.0
    %2567 = vmatprep.subr.mxu0 0.0
    %2568 = vmatpush2.msra.mxu0 0.0
    %2569 = vmatprep.mubr.f32.mxu0 0.0
    %2570 = vmatmul.mubr.f32.gmra.mxu0 %v2333
    %v2571 = vpop.f32.mrf.mxu0
    %v2572 = vadd.f32 0.0, %v2571
    %v2573 = vpop.f32.mrf.mxu0
    %v2574 = vadd.f32 0.0, %v2573
    %2575 = vdwg.mxu0
    %2576 = vmatprep.subr.mxu0 0.0
    %2577 = vmatpush1.msra.mxu0 %v785
    %2578 = vmatprep.subr.mxu0 0.0
    %2579 = vmatpush1.msra.mxu0 %v782
    %2580 = vmatprep.subr.mxu0 0.0
    %2581 = vmatpush1.msra.mxu0 %v779
    %2582 = vmatprep.subr.mxu0 0.0
    %2583 = vmatpush1.msra.mxu0 %v776
    %2584 = vmatprep.subr.mxu0 0.0
    %2585 = vmatpush1.msra.mxu0 %v773
    %2586 = vmatprep.subr.mxu0 0.0
    %2587 = vmatpush1.msra.mxu0 %v770
    %2588 = vmatprep.subr.mxu0 0.0
    %2589 = vmatpush1.msra.mxu0 %v767
    %2590 = vmatprep.subr.mxu0 0.0
    %2591 = vmatpush1.msra.mxu0 %v764
    %2592 = vmatprep.subr.mxu0 0.0
    %2593 = vmatpush1.msra.mxu0 %v761
    %2594 = vmatprep.subr.mxu0 0.0
    %2595 = vmatpush1.msra.mxu0 %v758
    %2596 = vmatprep.subr.mxu0 0.0
    %2597 = vmatpush1.msra.mxu0 %v755
    %2598 = vmatprep.subr.mxu0 0.0
    %2599 = vmatpush1.msra.mxu0 %v752
    %2600 = vmatprep.subr.mxu0 0.0
    %2601 = vmatpush1.msra.mxu0 %v749
    %2602 = vmatprep.subr.mxu0 0.0
    %2603 = vmatpush1.msra.mxu0 %v746
    %2604 = vmatprep.subr.mxu0 0.0
    %2605 = vmatpush1.msra.mxu0 %v743
    %2606 = vmatprep.subr.mxu0 0.0
    %2607 = vmatpush1.msra.mxu0 %v740
    %2608 = vmatprep.subr.mxu0 0.0
    %2609 = vmatpush2.msra.mxu0 0.0
    %2610 = vmatprep.subr.mxu0 0.0
    %2611 = vmatpush2.msra.mxu0 0.0
    %2612 = vmatprep.subr.mxu0 0.0
    %2613 = vmatpush2.msra.mxu0 0.0
    %2614 = vmatprep.subr.mxu0 0.0
    %2615 = vmatpush2.msra.mxu0 0.0
    %2616 = vmatprep.subr.mxu0 0.0
    %2617 = vmatpush2.msra.mxu0 0.0
    %2618 = vmatprep.subr.mxu0 0.0
    %2619 = vmatpush2.msra.mxu0 0.0
    %2620 = vmatprep.subr.mxu0 0.0
    %2621 = vmatpush2.msra.mxu0 0.0
    %2622 = vmatprep.subr.mxu0 0.0
    %2623 = vmatpush2.msra.mxu0 0.0
    %2624 = vmatprep.subr.mxu0 0.0
    %2625 = vmatpush2.msra.mxu0 0.0
    %2626 = vmatprep.subr.mxu0 0.0
    %2627 = vmatpush2.msra.mxu0 0.0
    %2628 = vmatprep.subr.mxu0 0.0
    %2629 = vmatpush2.msra.mxu0 0.0
    %2630 = vmatprep.subr.mxu0 0.0
    %2631 = vmatpush2.msra.mxu0 0.0
    %2632 = vmatprep.subr.mxu0 0.0
    %2633 = vmatpush2.msra.mxu0 0.0
    %2634 = vmatprep.subr.mxu0 0.0
    %2635 = vmatpush2.msra.mxu0 0.0
    %2636 = vmatprep.subr.mxu0 0.0
    %2637 = vmatpush2.msra.mxu0 0.0
    %2638 = vmatprep.subr.mxu0 0.0
    %2639 = vmatpush2.msra.mxu0 0.0
    %2640 = vmatprep.mubr.f32.mxu0 0.0
    %2641 = vmatmul.mubr.f32.gmra.mxu0 %v2333
    %v2642 = vpop.f32.mrf.mxu0
    %v2643 = vadd.f32 0.0, %v2642
    %v2644 = vpop.f32.mrf.mxu0
    %2645 = vdwg.mxu0
    %v2646 = vadd.f32 %v2502, %v2572
    %v2647 = vxor.u32 %v2646, 2147483648
    %v2648 = vmul.f32 %v2647, 1.442695
    %v2649 = vpow.pop %v2648
    %v2650 = vadd.f32 %v2649, 1.0
    %v2651 = vrcp.pop %v2650
    %v2652 = vmul.f32 1.0, %v2651
    %v2653 = vadd.f32 %v2503, %v2574
    %v2654 = vxor.u32 %v2653, 2147483648
    %v2655 = vmul.f32 %v2654, 1.442695
    %v2656 = vpow.pop %v2655
    %v2657 = vadd.f32 %v2656, 1.0
    %v2658 = vrcp.pop %v2657
    %v2659 = vmul.f32 1.0, %v2658
    %v2660 = vadd.f32 %v2643, %v725
    %v2661 = vmul.f32 %v2652, %v2660
    %v2662 = vadd.f32 %v2504, %v2661
    %v2663 = vtanh.pop %v2662
    %v2664 = vsub.f32 1.0, %v2659
    %v2665 = vmul.f32 %v2664, %v2663
    %v2666 = vmul.f32 %v2659, %v2333
    %v2667 = vadd.f32 %v2665, %v2666
    %s2668 = scalar_lea.vmem %s695, 48 [#allocation2]
    %v2669 = vld [vmem:[%s2668] sm:$0xff]
    %v2670 = vld [vmem:[%s2668 + $0x8] sm:$0xff]
    %v2671 = vld [vmem:[%s2668 + $0x10] sm:$0xff]
    %2672 = vmatprep.subr.mxu0 %v1000
    %2673 = vmatpush1.msra.mxu0 %v999
    %2674 = vmatprep.subr.mxu0 %v997
    %2675 = vmatpush1.msra.mxu0 %v996
    %2676 = vmatprep.subr.mxu0 %v994
    %2677 = vmatpush1.msra.mxu0 %v993
    %2678 = vmatprep.subr.mxu0 %v991
    %2679 = vmatpush1.msra.mxu0 %v990
    %2680 = vmatprep.subr.mxu0 %v988
    %2681 = vmatpush1.msra.mxu0 %v987
    %2682 = vmatprep.subr.mxu0 %v985
    %2683 = vmatpush1.msra.mxu0 %v984
    %2684 = vmatprep.subr.mxu0 %v982
    %2685 = vmatpush1.msra.mxu0 %v981
    %2686 = vmatprep.subr.mxu0 %v979
    %2687 = vmatpush1.msra.mxu0 %v978
    %2688 = vmatprep.subr.mxu0 %v976
    %2689 = vmatpush1.msra.mxu0 %v975
    %2690 = vmatprep.subr.mxu0 %v973
    %2691 = vmatpush1.msra.mxu0 %v972
    %2692 = vmatprep.subr.mxu0 %v970
    %2693 = vmatpush1.msra.mxu0 %v969
    %2694 = vmatprep.subr.mxu0 %v967
    %2695 = vmatpush1.msra.mxu0 %v966
    %2696 = vmatprep.subr.mxu0 %v964
    %2697 = vmatpush1.msra.mxu0 %v963
    %2698 = vmatprep.subr.mxu0 %v961
    %2699 = vmatpush1.msra.mxu0 %v960
    %2700 = vmatprep.subr.mxu0 %v958
    %2701 = vmatpush1.msra.mxu0 %v957
    %2702 = vmatprep.subr.mxu0 %v955
    %2703 = vmatpush1.msra.mxu0 %v954
    %2704 = vmatprep.subr.mxu0 0.0
    %2705 = vmatpush2.msra.mxu0 0.0
    %2706 = vmatprep.subr.mxu0 0.0
    %2707 = vmatpush2.msra.mxu0 0.0
    %2708 = vmatprep.subr.mxu0 0.0
    %2709 = vmatpush2.msra.mxu0 0.0
    %2710 = vmatprep.subr.mxu0 0.0
    %2711 = vmatpush2.msra.mxu0 0.0
    %2712 = vmatprep.subr.mxu0 0.0
    %2713 = vmatpush2.msra.mxu0 0.0
    %2714 = vmatprep.subr.mxu0 0.0
    %2715 = vmatpush2.msra.mxu0 0.0
    %2716 = vmatprep.subr.mxu0 0.0
    %2717 = vmatpush2.msra.mxu0 0.0
    %2718 = vmatprep.subr.mxu0 0.0
    %2719 = vmatpush2.msra.mxu0 0.0
    %2720 = vmatprep.subr.mxu0 0.0
    %2721 = vmatpush2.msra.mxu0 0.0
    %2722 = vmatprep.subr.mxu0 0.0
    %2723 = vmatpush2.msra.mxu0 0.0
    %2724 = vmatprep.subr.mxu0 0.0
    %2725 = vmatpush2.msra.mxu0 0.0
    %2726 = vmatprep.subr.mxu0 0.0
    %2727 = vmatpush2.msra.mxu0 0.0
    %2728 = vmatprep.subr.mxu0 0.0
    %2729 = vmatpush2.msra.mxu0 0.0
    %2730 = vmatprep.subr.mxu0 0.0
    %2731 = vmatpush2.msra.mxu0 0.0
    %2732 = vmatprep.subr.mxu0 0.0
    %2733 = vmatpush2.msra.mxu0 0.0
    %2734 = vmatprep.subr.mxu0 0.0
    %2735 = vmatpush2.msra.mxu0 0.0
    %2736 = vmatprep.mubr.f32.mxu0 0.0
    %2737 = vmatmul.mubr.f32.gmra.mxu0 %v2500
    %v2738 = vpop.f32.mrf.mxu0
    %v2739 = vadd.f32 0.0, %v2738
    %v2740 = vpop.f32.mrf.mxu0
    %v2741 = vadd.f32 0.0, %v2740
    %2742 = vdwg.mxu0
    %2743 = vmatprep.subr.mxu0 0.0
    %2744 = vmatpush1.msra.mxu0 %v1001
    %2745 = vmatprep.subr.mxu0 0.0
    %2746 = vmatpush1.msra.mxu0 %v998
    %2747 = vmatprep.subr.mxu0 0.0
    %2748 = vmatpush1.msra.mxu0 %v995
    %2749 = vmatprep.subr.mxu0 0.0
    %2750 = vmatpush1.msra.mxu0 %v992
    %2751 = vmatprep.subr.mxu0 0.0
    %2752 = vmatpush1.msra.mxu0 %v989
    %2753 = vmatprep.subr.mxu0 0.0
    %2754 = vmatpush1.msra.mxu0 %v986
    %2755 = vmatprep.subr.mxu0 0.0
    %2756 = vmatpush1.msra.mxu0 %v983
    %2757 = vmatprep.subr.mxu0 0.0
    %2758 = vmatpush1.msra.mxu0 %v980
    %2759 = vmatprep.subr.mxu0 0.0
    %2760 = vmatpush1.msra.mxu0 %v977
    %2761 = vmatprep.subr.mxu0 0.0
    %2762 = vmatpush1.msra.mxu0 %v974
    %2763 = vmatprep.subr.mxu0 0.0
    %2764 = vmatpush1.msra.mxu0 %v971
    %2765 = vmatprep.subr.mxu0 0.0
    %2766 = vmatpush1.msra.mxu0 %v968
    %2767 = vmatprep.subr.mxu0 0.0
    %2768 = vmatpush1.msra.mxu0 %v965
    %2769 = vmatprep.subr.mxu0 0.0
    %2770 = vmatpush1.msra.mxu0 %v962
    %2771 = vmatprep.subr.mxu0 0.0
    %2772 = vmatpush1.msra.mxu0 %v959
    %2773 = vmatprep.subr.mxu0 0.0
    %2774 = vmatpush1.msra.mxu0 %v956
    %2775 = vmatprep.subr.mxu0 0.0
    %2776 = vmatpush2.msra.mxu0 0.0
    %2777 = vmatprep.subr.mxu0 0.0
    %2778 = vmatpush2.msra.mxu0 0.0
    %2779 = vmatprep.subr.mxu0 0.0
    %2780 = vmatpush2.msra.mxu0 0.0
    %2781 = vmatprep.subr.mxu0 0.0
    %2782 = vmatpush2.msra.mxu0 0.0
    %2783 = vmatprep.subr.mxu0 0.0
    %2784 = vmatpush2.msra.mxu0 0.0
    %2785 = vmatprep.subr.mxu0 0.0
    %2786 = vmatpush2.msra.mxu0 0.0
    %2787 = vmatprep.subr.mxu0 0.0
    %2788 = vmatpush2.msra.mxu0 0.0
    %2789 = vmatprep.subr.mxu0 0.0
    %2790 = vmatpush2.msra.mxu0 0.0
    %2791 = vmatprep.subr.mxu0 0.0
    %2792 = vmatpush2.msra.mxu0 0.0
    %2793 = vmatprep.subr.mxu0 0.0
    %2794 = vmatpush2.msra.mxu0 0.0
    %2795 = vmatprep.subr.mxu0 0.0
    %2796 = vmatpush2.msra.mxu0 0.0
    %2797 = vmatprep.subr.mxu0 0.0
    %2798 = vmatpush2.msra.mxu0 0.0
    %2799 = vmatprep.subr.mxu0 0.0
    %2800 = vmatpush2.msra.mxu0 0.0
    %2801 = vmatprep.subr.mxu0 0.0
    %2802 = vmatpush2.msra.mxu0 0.0
    %2803 = vmatprep.subr.mxu0 0.0
    %2804 = vmatpush2.msra.mxu0 0.0
    %2805 = vmatprep.subr.mxu0 0.0
    %2806 = vmatpush2.msra.mxu0 0.0
    %2807 = vmatprep.mubr.f32.mxu0 0.0
    %2808 = vmatmul.mubr.f32.gmra.mxu0 %v2500
    %v2809 = vpop.f32.mrf.mxu0
    %v2810 = vadd.f32 0.0, %v2809
    %v2811 = vpop.f32.mrf.mxu0
    %2812 = vdwg.mxu0
    %v2813 = vadd.f32 %v2669, %v2739
    %v2814 = vxor.u32 %v2813, 2147483648
    %v2815 = vmul.f32 %v2814, 1.442695
    %v2816 = vpow.pop %v2815
    %v2817 = vadd.f32 %v2816, 1.0
    %v2818 = vrcp.pop %v2817
    %v2819 = vmul.f32 1.0, %v2818
    %v2820 = vadd.f32 %v2670, %v2741
    %v2821 = vxor.u32 %v2820, 2147483648
    %v2822 = vmul.f32 %v2821, 1.442695
    %v2823 = vpow.pop %v2822
    %v2824 = vadd.f32 %v2823, 1.0
    %v2825 = vrcp.pop %v2824
    %v2826 = vmul.f32 1.0, %v2825
    %v2827 = vadd.f32 %v2810, %v733
    %v2828 = vmul.f32 %v2819, %v2827
    %v2829 = vadd.f32 %v2671, %v2828
    %v2830 = vtanh.pop %v2829
    %v2831 = vsub.f32 1.0, %v2826
    %v2832 = vmul.f32 %v2831, %v2830
    %v2833 = vmul.f32 %v2826, %v2500
    %v2834 = vadd.f32 %v2832, %v2833
    %s2835 = scalar_lea.vmem [#allocation2], 144
    %v2836 = vld [vmem:[%s2835] sm:$0xff]
    %v2837 = vld [vmem:[%s2835 + $0x8] sm:$0xff]
    %v2838 = vld [vmem:[%s2835 + $0x10] sm:$0xff]
    %2839 = vmatprep.subr.mxu0 %v784
    %2840 = vmatpush1.msra.mxu0 %v783
    %2841 = vmatprep.subr.mxu0 %v781
    %2842 = vmatpush1.msra.mxu0 %v780
    %2843 = vmatprep.subr.mxu0 %v778
    %2844 = vmatpush1.msra.mxu0 %v777
    %2845 = vmatprep.subr.mxu0 %v775
    %2846 = vmatpush1.msra.mxu0 %v774
    %2847 = vmatprep.subr.mxu0 %v772
    %2848 = vmatpush1.msra.mxu0 %v771
    %2849 = vmatprep.subr.mxu0 %v769
    %2850 = vmatpush1.msra.mxu0 %v768
    %2851 = vmatprep.subr.mxu0 %v766
    %2852 = vmatpush1.msra.mxu0 %v765
    %2853 = vmatprep.subr.mxu0 %v763
    %2854 = vmatpush1.msra.mxu0 %v762
    %2855 = vmatprep.subr.mxu0 %v760
    %2856 = vmatpush1.msra.mxu0 %v759
    %2857 = vmatprep.subr.mxu0 %v757
    %2858 = vmatpush1.msra.mxu0 %v756
    %2859 = vmatprep.subr.mxu0 %v754
    %2860 = vmatpush1.msra.mxu0 %v753
    %2861 = vmatprep.subr.mxu0 %v751
    %2862 = vmatpush1.msra.mxu0 %v750
    %2863 = vmatprep.subr.mxu0 %v748
    %2864 = vmatpush1.msra.mxu0 %v747
    %2865 = vmatprep.subr.mxu0 %v745
    %2866 = vmatpush1.msra.mxu0 %v744
    %2867 = vmatprep.subr.mxu0 %v742
    %2868 = vmatpush1.msra.mxu0 %v741
    %2869 = vmatprep.subr.mxu0 %v739
    %2870 = vmatpush1.msra.mxu0 %v738
    %2871 = vmatprep.subr.mxu0 0.0
    %2872 = vmatpush2.msra.mxu0 0.0
    %2873 = vmatprep.subr.mxu0 0.0
    %2874 = vmatpush2.msra.mxu0 0.0
    %2875 = vmatprep.subr.mxu0 0.0
    %2876 = vmatpush2.msra.mxu0 0.0
    %2877 = vmatprep.subr.mxu0 0.0
    %2878 = vmatpush2.msra.mxu0 0.0
    %2879 = vmatprep.subr.mxu0 0.0
    %2880 = vmatpush2.msra.mxu0 0.0
    %2881 = vmatprep.subr.mxu0 0.0
    %2882 = vmatpush2.msra.mxu0 0.0
    %2883 = vmatprep.subr.mxu0 0.0
    %2884 = vmatpush2.msra.mxu0 0.0
    %2885 = vmatprep.subr.mxu0 0.0
    %2886 = vmatpush2.msra.mxu0 0.0
    %2887 = vmatprep.subr.mxu0 0.0
    %2888 = vmatpush2.msra.mxu0 0.0
    %2889 = vmatprep.subr.mxu0 0.0
    %2890 = vmatpush2.msra.mxu0 0.0
    %2891 = vmatprep.subr.mxu0 0.0
    %2892 = vmatpush2.msra.mxu0 0.0
    %2893 = vmatprep.subr.mxu0 0.0
    %2894 = vmatpush2.msra.mxu0 0.0
    %2895 = vmatprep.subr.mxu0 0.0
    %2896 = vmatpush2.msra.mxu0 0.0
    %2897 = vmatprep.subr.mxu0 0.0
    %2898 = vmatpush2.msra.mxu0 0.0
    %2899 = vmatprep.subr.mxu0 0.0
    %2900 = vmatpush2.msra.mxu0 0.0
    %2901 = vmatprep.subr.mxu0 0.0
    %2902 = vmatpush2.msra.mxu0 0.0
    %2903 = vmatprep.mubr.f32.mxu0 0.0
    %2904 = vmatmul.mubr.f32.gmra.mxu0 %v2667
    %v2905 = vpop.f32.mrf.mxu0
    %v2906 = vadd.f32 0.0, %v2905
    %v2907 = vpop.f32.mrf.mxu0
    %v2908 = vadd.f32 0.0, %v2907
    %2909 = vdwg.mxu0
    %2910 = vmatprep.subr.mxu0 0.0
    %2911 = vmatpush1.msra.mxu0 %v785
    %2912 = vmatprep.subr.mxu0 0.0
    %2913 = vmatpush1.msra.mxu0 %v782
    %2914 = vmatprep.subr.mxu0 0.0
    %2915 = vmatpush1.msra.mxu0 %v779
    %2916 = vmatprep.subr.mxu0 0.0
    %2917 = vmatpush1.msra.mxu0 %v776
    %2918 = vmatprep.subr.mxu0 0.0
    %2919 = vmatpush1.msra.mxu0 %v773
    %2920 = vmatprep.subr.mxu0 0.0
    %2921 = vmatpush1.msra.mxu0 %v770
    %2922 = vmatprep.subr.mxu0 0.0
    %2923 = vmatpush1.msra.mxu0 %v767
    %2924 = vmatprep.subr.mxu0 0.0
    %2925 = vmatpush1.msra.mxu0 %v764
    %2926 = vmatprep.subr.mxu0 0.0
    %2927 = vmatpush1.msra.mxu0 %v761
    %2928 = vmatprep.subr.mxu0 0.0
    %2929 = vmatpush1.msra.mxu0 %v758
    %2930 = vmatprep.subr.mxu0 0.0
    %2931 = vmatpush1.msra.mxu0 %v755
    %2932 = vmatprep.subr.mxu0 0.0
    %2933 = vmatpush1.msra.mxu0 %v752
    %2934 = vmatprep.subr.mxu0 0.0
    %2935 = vmatpush1.msra.mxu0 %v749
    %2936 = vmatprep.subr.mxu0 0.0
    %2937 = vmatpush1.msra.mxu0 %v746
    %2938 = vmatprep.subr.mxu0 0.0
    %2939 = vmatpush1.msra.mxu0 %v743
    %2940 = vmatprep.subr.mxu0 0.0
    %2941 = vmatpush1.msra.mxu0 %v740
    %2942 = vmatprep.subr.mxu0 0.0
    %2943 = vmatpush2.msra.mxu0 0.0
    %2944 = vmatprep.subr.mxu0 0.0
    %2945 = vmatpush2.msra.mxu0 0.0
    %2946 = vmatprep.subr.mxu0 0.0
    %2947 = vmatpush2.msra.mxu0 0.0
    %2948 = vmatprep.subr.mxu0 0.0
    %2949 = vmatpush2.msra.mxu0 0.0
    %2950 = vmatprep.subr.mxu0 0.0
    %2951 = vmatpush2.msra.mxu0 0.0
    %2952 = vmatprep.subr.mxu0 0.0
    %2953 = vmatpush2.msra.mxu0 0.0
    %2954 = vmatprep.subr.mxu0 0.0
    %2955 = vmatpush2.msra.mxu0 0.0
    %2956 = vmatprep.subr.mxu0 0.0
    %2957 = vmatpush2.msra.mxu0 0.0
    %2958 = vmatprep.subr.mxu0 0.0
    %2959 = vmatpush2.msra.mxu0 0.0
    %2960 = vmatprep.subr.mxu0 0.0
    %2961 = vmatpush2.msra.mxu0 0.0
    %2962 = vmatprep.subr.mxu0 0.0
    %2963 = vmatpush2.msra.mxu0 0.0
    %2964 = vmatprep.subr.mxu0 0.0
    %2965 = vmatpush2.msra.mxu0 0.0
    %2966 = vmatprep.subr.mxu0 0.0
    %2967 = vmatpush2.msra.mxu0 0.0
    %2968 = vmatprep.subr.mxu0 0.0
    %2969 = vmatpush2.msra.mxu0 0.0
    %2970 = vmatprep.subr.mxu0 0.0
    %2971 = vmatpush2.msra.mxu0 0.0
    %2972 = vmatprep.subr.mxu0 0.0
    %2973 = vmatpush2.msra.mxu0 0.0
    %2974 = vmatprep.mubr.f32.mxu0 0.0
    %2975 = vmatmul.mubr.f32.gmra.mxu0 %v2667
    %v2976 = vpop.f32.mrf.mxu0
    %v2977 = vadd.f32 0.0, %v2976
    %v2978 = vpop.f32.mrf.mxu0
    %2979 = vdwg.mxu0
    %v2980 = vadd.f32 %v2836, %v2906
    %v2981 = vxor.u32 %v2980, 2147483648
    %v2982 = vmul.f32 %v2981, 1.442695
    %v2983 = vpow.pop %v2982
    %v2984 = vadd.f32 %v2983, 1.0
    %v2985 = vrcp.pop %v2984
    %v2986 = vmul.f32 1.0, %v2985
    %v2987 = vadd.f32 %v2837, %v2908
    %v2988 = vxor.u32 %v2987, 2147483648
    %v2989 = vmul.f32 %v2988, 1.442695
    %v2990 = vpow.pop %v2989
    %v2991 = vadd.f32 %v2990, 1.0
    %v2992 = vrcp.pop %v2991
    %v2993 = vmul.f32 1.0, %v2992
    %v2994 = vadd.f32 %v2977, %v725
    %v2995 = vmul.f32 %v2986, %v2994
    %v2996 = vadd.f32 %v2838, %v2995
    %v2997 = vtanh.pop %v2996
    %v2998 = vsub.f32 1.0, %v2993
    %v2999 = vmul.f32 %v2998, %v2997
    %v3000 = vmul.f32 %v2993, %v2667
    %v3001 = vadd.f32 %v2999, %v3000
    %s3002 = scalar_lea.vmem %s695, 24 [#allocation2]
    %v3003 = vld [vmem:[%s3002] sm:$0xff]
    %v3004 = vld [vmem:[%s3002 + $0x8] sm:$0xff]
    %v3005 = vld [vmem:[%s3002 + $0x10] sm:$0xff]
    %3006 = vmatprep.subr.mxu0 %v1000
    %3007 = vmatpush1.msra.mxu0 %v999
    %3008 = vmatprep.subr.mxu0 %v997
    %3009 = vmatpush1.msra.mxu0 %v996
    %3010 = vmatprep.subr.mxu0 %v994
    %3011 = vmatpush1.msra.mxu0 %v993
    %3012 = vmatprep.subr.mxu0 %v991
    %3013 = vmatpush1.msra.mxu0 %v990
    %3014 = vmatprep.subr.mxu0 %v988
    %3015 = vmatpush1.msra.mxu0 %v987
    %3016 = vmatprep.subr.mxu0 %v985
    %3017 = vmatpush1.msra.mxu0 %v984
    %3018 = vmatprep.subr.mxu0 %v982
    %3019 = vmatpush1.msra.mxu0 %v981
    %3020 = vmatprep.subr.mxu0 %v979
    %3021 = vmatpush1.msra.mxu0 %v978
    %3022 = vmatprep.subr.mxu0 %v976
    %3023 = vmatpush1.msra.mxu0 %v975
    %3024 = vmatprep.subr.mxu0 %v973
    %3025 = vmatpush1.msra.mxu0 %v972
    %3026 = vmatprep.subr.mxu0 %v970
    %3027 = vmatpush1.msra.mxu0 %v969
    %3028 = vmatprep.subr.mxu0 %v967
    %3029 = vmatpush1.msra.mxu0 %v966
    %3030 = vmatprep.subr.mxu0 %v964
    %3031 = vmatpush1.msra.mxu0 %v963
    %3032 = vmatprep.subr.mxu0 %v961
    %3033 = vmatpush1.msra.mxu0 %v960
    %3034 = vmatprep.subr.mxu0 %v958
    %3035 = vmatpush1.msra.mxu0 %v957
    %3036 = vmatprep.subr.mxu0 %v955
    %3037 = vmatpush1.msra.mxu0 %v954
    %3038 = vmatprep.subr.mxu0 0.0
    %3039 = vmatpush2.msra.mxu0 0.0
    %3040 = vmatprep.subr.mxu0 0.0
    %3041 = vmatpush2.msra.mxu0 0.0
    %3042 = vmatprep.subr.mxu0 0.0
    %3043 = vmatpush2.msra.mxu0 0.0
    %3044 = vmatprep.subr.mxu0 0.0
    %3045 = vmatpush2.msra.mxu0 0.0
    %3046 = vmatprep.subr.mxu0 0.0
    %3047 = vmatpush2.msra.mxu0 0.0
    %3048 = vmatprep.subr.mxu0 0.0
    %3049 = vmatpush2.msra.mxu0 0.0
    %3050 = vmatprep.subr.mxu0 0.0
    %3051 = vmatpush2.msra.mxu0 0.0
    %3052 = vmatprep.subr.mxu0 0.0
    %3053 = vmatpush2.msra.mxu0 0.0
    %3054 = vmatprep.subr.mxu0 0.0
    %3055 = vmatpush2.msra.mxu0 0.0
    %3056 = vmatprep.subr.mxu0 0.0
    %3057 = vmatpush2.msra.mxu0 0.0
    %3058 = vmatprep.subr.mxu0 0.0
    %3059 = vmatpush2.msra.mxu0 0.0
    %3060 = vmatprep.subr.mxu0 0.0
    %3061 = vmatpush2.msra.mxu0 0.0
    %3062 = vmatprep.subr.mxu0 0.0
    %3063 = vmatpush2.msra.mxu0 0.0
    %3064 = vmatprep.subr.mxu0 0.0
    %3065 = vmatpush2.msra.mxu0 0.0
    %3066 = vmatprep.subr.mxu0 0.0
    %3067 = vmatpush2.msra.mxu0 0.0
    %3068 = vmatprep.subr.mxu0 0.0
    %3069 = vmatpush2.msra.mxu0 0.0
    %3070 = vmatprep.mubr.f32.mxu0 0.0
    %3071 = vmatmul.mubr.f32.gmra.mxu0 %v2834
    %v3072 = vpop.f32.mrf.mxu0
    %v3073 = vadd.f32 0.0, %v3072
    %v3074 = vpop.f32.mrf.mxu0
    %v3075 = vadd.f32 0.0, %v3074
    %3076 = vdwg.mxu0
    %3077 = vmatprep.subr.mxu0 0.0
    %3078 = vmatpush1.msra.mxu0 %v1001
    %3079 = vmatprep.subr.mxu0 0.0
    %3080 = vmatpush1.msra.mxu0 %v998
    %3081 = vmatprep.subr.mxu0 0.0
    %3082 = vmatpush1.msra.mxu0 %v995
    %3083 = vmatprep.subr.mxu0 0.0
    %3084 = vmatpush1.msra.mxu0 %v992
    %3085 = vmatprep.subr.mxu0 0.0
    %3086 = vmatpush1.msra.mxu0 %v989
    %3087 = vmatprep.subr.mxu0 0.0
    %3088 = vmatpush1.msra.mxu0 %v986
    %3089 = vmatprep.subr.mxu0 0.0
    %3090 = vmatpush1.msra.mxu0 %v983
    %3091 = vmatprep.subr.mxu0 0.0
    %3092 = vmatpush1.msra.mxu0 %v980
    %3093 = vmatprep.subr.mxu0 0.0
    %3094 = vmatpush1.msra.mxu0 %v977
    %3095 = vmatprep.subr.mxu0 0.0
    %3096 = vmatpush1.msra.mxu0 %v974
    %3097 = vmatprep.subr.mxu0 0.0
    %3098 = vmatpush1.msra.mxu0 %v971
    %3099 = vmatprep.subr.mxu0 0.0
    %3100 = vmatpush1.msra.mxu0 %v968
    %3101 = vmatprep.subr.mxu0 0.0
    %3102 = vmatpush1.msra.mxu0 %v965
    %3103 = vmatprep.subr.mxu0 0.0
    %3104 = vmatpush1.msra.mxu0 %v962
    %3105 = vmatprep.subr.mxu0 0.0
    %3106 = vmatpush1.msra.mxu0 %v959
    %3107 = vmatprep.subr.mxu0 0.0
    %3108 = vmatpush1.msra.mxu0 %v956
    %3109 = vmatprep.subr.mxu0 0.0
    %3110 = vmatpush2.msra.mxu0 0.0
    %3111 = vmatprep.subr.mxu0 0.0
    %3112 = vmatpush2.msra.mxu0 0.0
    %3113 = vmatprep.subr.mxu0 0.0
    %3114 = vmatpush2.msra.mxu0 0.0
    %3115 = vmatprep.subr.mxu0 0.0
    %3116 = vmatpush2.msra.mxu0 0.0
    %3117 = vmatprep.subr.mxu0 0.0
    %3118 = vmatpush2.msra.mxu0 0.0
    %3119 = vmatprep.subr.mxu0 0.0
    %3120 = vmatpush2.msra.mxu0 0.0
    %3121 = vmatprep.subr.mxu0 0.0
    %3122 = vmatpush2.msra.mxu0 0.0
    %3123 = vmatprep.subr.mxu0 0.0
    %3124 = vmatpush2.msra.mxu0 0.0
    %3125 = vmatprep.subr.mxu0 0.0
    %3126 = vmatpush2.msra.mxu0 0.0
    %3127 = vmatprep.subr.mxu0 0.0
    %3128 = vmatpush2.msra.mxu0 0.0
    %3129 = vmatprep.subr.mxu0 0.0
    %3130 = vmatpush2.msra.mxu0 0.0
    %3131 = vmatprep.subr.mxu0 0.0
    %3132 = vmatpush2.msra.mxu0 0.0
    %3133 = vmatprep.subr.mxu0 0.0
    %3134 = vmatpush2.msra.mxu0 0.0
    %3135 = vmatprep.subr.mxu0 0.0
    %3136 = vmatpush2.msra.mxu0 0.0
    %3137 = vmatprep.subr.mxu0 0.0
    %3138 = vmatpush2.msra.mxu0 0.0
    %3139 = vmatprep.subr.mxu0 0.0
    %3140 = vmatpush2.msra.mxu0 0.0
    %3141 = vmatprep.mubr.f32.mxu0 0.0
    %3142 = vmatmul.mubr.f32.gmra.mxu0 %v2834
    %v3143 = vpop.f32.mrf.mxu0
    %v3144 = vadd.f32 0.0, %v3143
    %v3145 = vpop.f32.mrf.mxu0
    %3146 = vdwg.mxu0
    %v3147 = vadd.f32 %v3003, %v3073
    %v3148 = vxor.u32 %v3147, 2147483648
    %v3149 = vmul.f32 %v3148, 1.442695
    %v3150 = vpow.pop %v3149
    %v3151 = vadd.f32 %v3150, 1.0
    %v3152 = vrcp.pop %v3151
    %v3153 = vmul.f32 1.0, %v3152
    %v3154 = vadd.f32 %v3004, %v3075
    %v3155 = vxor.u32 %v3154, 2147483648
    %v3156 = vmul.f32 %v3155, 1.442695
    %v3157 = vpow.pop %v3156
    %v3158 = vadd.f32 %v3157, 1.0
    %v3159 = vrcp.pop %v3158
    %v3160 = vmul.f32 1.0, %v3159
    %v3161 = vadd.f32 %v3144, %v733
    %v3162 = vmul.f32 %v3153, %v3161
    %v3163 = vadd.f32 %v3005, %v3162
    %v3164 = vtanh.pop %v3163
    %v3165 = vsub.f32 1.0, %v3160
    %v3166 = vmul.f32 %v3165, %v3164
    %v3167 = vmul.f32 %v3160, %v2834
    %v3168 = vadd.f32 %v3166, %v3167
    %s3169 = scalar_lea.vmem [#allocation2], 168
    %v3170 = vld [vmem:[%s3169] sm:$0xff]
    %v3171 = vld [vmem:[%s3169 + $0x8] sm:$0xff]
    %v3172 = vld [vmem:[%s3169 + $0x10] sm:$0xff]
    %3173 = vmatprep.subr.mxu0 %v784
    %3174 = vmatpush1.msra.mxu0 %v783
    %3175 = vmatprep.subr.mxu0 %v781
    %3176 = vmatpush1.msra.mxu0 %v780
    %3177 = vmatprep.subr.mxu0 %v778
    %3178 = vmatpush1.msra.mxu0 %v777
    %3179 = vmatprep.subr.mxu0 %v775
    %3180 = vmatpush1.msra.mxu0 %v774
    %3181 = vmatprep.subr.mxu0 %v772
    %3182 = vmatpush1.msra.mxu0 %v771
    %3183 = vmatprep.subr.mxu0 %v769
    %3184 = vmatpush1.msra.mxu0 %v768
    %3185 = vmatprep.subr.mxu0 %v766
    %3186 = vmatpush1.msra.mxu0 %v765
    %3187 = vmatprep.subr.mxu0 %v763
    %3188 = vmatpush1.msra.mxu0 %v762
    %3189 = vmatprep.subr.mxu0 %v760
    %3190 = vmatpush1.msra.mxu0 %v759
    %3191 = vmatprep.subr.mxu0 %v757
    %3192 = vmatpush1.msra.mxu0 %v756
    %3193 = vmatprep.subr.mxu0 %v754
    %3194 = vmatpush1.msra.mxu0 %v753
    %3195 = vmatprep.subr.mxu0 %v751
    %3196 = vmatpush1.msra.mxu0 %v750
    %3197 = vmatprep.subr.mxu0 %v748
    %3198 = vmatpush1.msra.mxu0 %v747
    %3199 = vmatprep.subr.mxu0 %v745
    %3200 = vmatpush1.msra.mxu0 %v744
    %3201 = vmatprep.subr.mxu0 %v742
    %3202 = vmatpush1.msra.mxu0 %v741
    %3203 = vmatprep.subr.mxu0 %v739
    %3204 = vmatpush1.msra.mxu0 %v738
    %3205 = vmatprep.subr.mxu0 0.0
    %3206 = vmatpush2.msra.mxu0 0.0
    %3207 = vmatprep.subr.mxu0 0.0
    %3208 = vmatpush2.msra.mxu0 0.0
    %3209 = vmatprep.subr.mxu0 0.0
    %3210 = vmatpush2.msra.mxu0 0.0
    %3211 = vmatprep.subr.mxu0 0.0
    %3212 = vmatpush2.msra.mxu0 0.0
    %3213 = vmatprep.subr.mxu0 0.0
    %3214 = vmatpush2.msra.mxu0 0.0
    %3215 = vmatprep.subr.mxu0 0.0
    %3216 = vmatpush2.msra.mxu0 0.0
    %3217 = vmatprep.subr.mxu0 0.0
    %3218 = vmatpush2.msra.mxu0 0.0
    %3219 = vmatprep.subr.mxu0 0.0
    %3220 = vmatpush2.msra.mxu0 0.0
    %3221 = vmatprep.subr.mxu0 0.0
    %3222 = vmatpush2.msra.mxu0 0.0
    %3223 = vmatprep.subr.mxu0 0.0
    %3224 = vmatpush2.msra.mxu0 0.0
    %3225 = vmatprep.subr.mxu0 0.0
    %3226 = vmatpush2.msra.mxu0 0.0
    %3227 = vmatprep.subr.mxu0 0.0
    %3228 = vmatpush2.msra.mxu0 0.0
    %3229 = vmatprep.subr.mxu0 0.0
    %3230 = vmatpush2.msra.mxu0 0.0
    %3231 = vmatprep.subr.mxu0 0.0
    %3232 = vmatpush2.msra.mxu0 0.0
    %3233 = vmatprep.subr.mxu0 0.0
    %3234 = vmatpush2.msra.mxu0 0.0
    %3235 = vmatprep.subr.mxu0 0.0
    %3236 = vmatpush2.msra.mxu0 0.0
    %3237 = vmatprep.mubr.f32.mxu0 0.0
    %3238 = vmatmul.mubr.f32.gmra.mxu0 %v3001
    %v3239 = vpop.f32.mrf.mxu0
    %v3240 = vadd.f32 0.0, %v3239
    %v3241 = vpop.f32.mrf.mxu0
    %v3242 = vadd.f32 0.0, %v3241
    %3243 = vdwg.mxu0
    %3244 = vmatprep.subr.mxu0 0.0
    %3245 = vmatpush1.msra.mxu0 %v785
    %3246 = vmatprep.subr.mxu0 0.0
    %3247 = vmatpush1.msra.mxu0 %v782
    %3248 = vmatprep.subr.mxu0 0.0
    %3249 = vmatpush1.msra.mxu0 %v779
    %3250 = vmatprep.subr.mxu0 0.0
    %3251 = vmatpush1.msra.mxu0 %v776
    %3252 = vmatprep.subr.mxu0 0.0
    %3253 = vmatpush1.msra.mxu0 %v773
    %3254 = vmatprep.subr.mxu0 0.0
    %3255 = vmatpush1.msra.mxu0 %v770
    %3256 = vmatprep.subr.mxu0 0.0
    %3257 = vmatpush1.msra.mxu0 %v767
    %3258 = vmatprep.subr.mxu0 0.0
    %3259 = vmatpush1.msra.mxu0 %v764
    %3260 = vmatprep.subr.mxu0 0.0
    %3261 = vmatpush1.msra.mxu0 %v761
    %3262 = vmatprep.subr.mxu0 0.0
    %3263 = vmatpush1.msra.mxu0 %v758
    %3264 = vmatprep.subr.mxu0 0.0
    %3265 = vmatpush1.msra.mxu0 %v755
    %3266 = vmatprep.subr.mxu0 0.0
    %3267 = vmatpush1.msra.mxu0 %v752
    %3268 = vmatprep.subr.mxu0 0.0
    %3269 = vmatpush1.msra.mxu0 %v749
    %3270 = vmatprep.subr.mxu0 0.0
    %3271 = vmatpush1.msra.mxu0 %v746
    %3272 = vmatprep.subr.mxu0 0.0
    %3273 = vmatpush1.msra.mxu0 %v743
    %3274 = vmatprep.subr.mxu0 0.0
    %3275 = vmatpush1.msra.mxu0 %v740
    %3276 = vmatprep.subr.mxu0 0.0
    %3277 = vmatpush2.msra.mxu0 0.0
    %3278 = vmatprep.subr.mxu0 0.0
    %3279 = vmatpush2.msra.mxu0 0.0
    %3280 = vmatprep.subr.mxu0 0.0
    %3281 = vmatpush2.msra.mxu0 0.0
    %3282 = vmatprep.subr.mxu0 0.0
    %3283 = vmatpush2.msra.mxu0 0.0
    %3284 = vmatprep.subr.mxu0 0.0
    %3285 = vmatpush2.msra.mxu0 0.0
    %3286 = vmatprep.subr.mxu0 0.0
    %3287 = vmatpush2.msra.mxu0 0.0
    %3288 = vmatprep.subr.mxu0 0.0
    %3289 = vmatpush2.msra.mxu0 0.0
    %3290 = vmatprep.subr.mxu0 0.0
    %3291 = vmatpush2.msra.mxu0 0.0
    %3292 = vmatprep.subr.mxu0 0.0
    %3293 = vmatpush2.msra.mxu0 0.0
    %3294 = vmatprep.subr.mxu0 0.0
    %3295 = vmatpush2.msra.mxu0 0.0
    %3296 = vmatprep.subr.mxu0 0.0
    %3297 = vmatpush2.msra.mxu0 0.0
    %3298 = vmatprep.subr.mxu0 0.0
    %3299 = vmatpush2.msra.mxu0 0.0
    %3300 = vmatprep.subr.mxu0 0.0
    %3301 = vmatpush2.msra.mxu0 0.0
    %3302 = vmatprep.subr.mxu0 0.0
    %3303 = vmatpush2.msra.mxu0 0.0
    %3304 = vmatprep.subr.mxu0 0.0
    %3305 = vmatpush2.msra.mxu0 0.0
    %3306 = vmatprep.subr.mxu0 0.0
    %3307 = vmatpush2.msra.mxu0 0.0
    %3308 = vmatprep.mubr.f32.mxu0 0.0
    %3309 = vmatmul.mubr.f32.gmra.mxu0 %v3001
    %v3310 = vpop.f32.mrf.mxu0
    %v3311 = vadd.f32 0.0, %v3310
    %v3312 = vpop.f32.mrf.mxu0
    %3313 = vdwg.mxu0
    %v3314 = vadd.f32 %v3170, %v3240
    %v3315 = vxor.u32 %v3314, 2147483648
    %v3316 = vmul.f32 %v3315, 1.442695
    %v3317 = vpow.pop %v3316
    %v3318 = vadd.f32 %v3317, 1.0
    %v3319 = vrcp.pop %v3318
    %v3320 = vmul.f32 1.0, %v3319
    %v3321 = vadd.f32 %v3171, %v3242
    %v3322 = vxor.u32 %v3321, 2147483648
    %v3323 = vmul.f32 %v3322, 1.442695
    %v3324 = vpow.pop %v3323
    %v3325 = vadd.f32 %v3324, 1.0
    %v3326 = vrcp.pop %v3325
    %v3327 = vmul.f32 1.0, %v3326
    %v3328 = vadd.f32 %v3311, %v725
    %v3329 = vmul.f32 %v3320, %v3328
    %v3330 = vadd.f32 %v3172, %v3329
    %v3331 = vtanh.pop %v3330
    %v3332 = vsub.f32 1.0, %v3327
    %v3333 = vmul.f32 %v3332, %v3331
    %v3334 = vmul.f32 %v3327, %v3001
    %v3335 = vadd.f32 %v3333, %v3334
    %v3336 = vld [vmem:[%s695] sm:$0xff]
    %v3337 = vld [vmem:[%s695 + $0x8] sm:$0xff]
    %v3338 = vld [vmem:[%s695 + $0x10] sm:$0xff]
    %3339 = vmatprep.subr.mxu0 %v1000
    %3340 = vmatpush1.msra.mxu0 %v999
    %3341 = vmatprep.subr.mxu0 %v997
    %3342 = vmatpush1.msra.mxu0 %v996
    %3343 = vmatprep.subr.mxu0 %v994
    %3344 = vmatpush1.msra.mxu0 %v993
    %3345 = vmatprep.subr.mxu0 %v991
    %3346 = vmatpush1.msra.mxu0 %v990
    %3347 = vmatprep.subr.mxu0 %v988
    %3348 = vmatpush1.msra.mxu0 %v987
    %3349 = vmatprep.subr.mxu0 %v985
    %3350 = vmatpush1.msra.mxu0 %v984
    %3351 = vmatprep.subr.mxu0 %v982
    %3352 = vmatpush1.msra.mxu0 %v981
    %3353 = vmatprep.subr.mxu0 %v979
    %3354 = vmatpush1.msra.mxu0 %v978
    %3355 = vmatprep.subr.mxu0 %v976
    %3356 = vmatpush1.msra.mxu0 %v975
    %3357 = vmatprep.subr.mxu0 %v973
    %3358 = vmatpush1.msra.mxu0 %v972
    %3359 = vmatprep.subr.mxu0 %v970
    %3360 = vmatpush1.msra.mxu0 %v969
    %3361 = vmatprep.subr.mxu0 %v967
    %3362 = vmatpush1.msra.mxu0 %v966
    %3363 = vmatprep.subr.mxu0 %v964
    %3364 = vmatpush1.msra.mxu0 %v963
    %3365 = vmatprep.subr.mxu0 %v961
    %3366 = vmatpush1.msra.mxu0 %v960
    %3367 = vmatprep.subr.mxu0 %v958
    %3368 = vmatpush1.msra.mxu0 %v957
    %3369 = vmatprep.subr.mxu0 %v955
    %3370 = vmatpush1.msra.mxu0 %v954
    %3371 = vmatprep.subr.mxu0 0.0
    %3372 = vmatpush2.msra.mxu0 0.0
    %3373 = vmatprep.subr.mxu0 0.0
    %3374 = vmatpush2.msra.mxu0 0.0
    %3375 = vmatprep.subr.mxu0 0.0
    %3376 = vmatpush2.msra.mxu0 0.0
    %3377 = vmatprep.subr.mxu0 0.0
    %3378 = vmatpush2.msra.mxu0 0.0
    %3379 = vmatprep.subr.mxu0 0.0
    %3380 = vmatpush2.msra.mxu0 0.0
    %3381 = vmatprep.subr.mxu0 0.0
    %3382 = vmatpush2.msra.mxu0 0.0
    %3383 = vmatprep.subr.mxu0 0.0
    %3384 = vmatpush2.msra.mxu0 0.0
    %3385 = vmatprep.subr.mxu0 0.0
    %3386 = vmatpush2.msra.mxu0 0.0
    %3387 = vmatprep.subr.mxu0 0.0
    %3388 = vmatpush2.msra.mxu0 0.0
    %3389 = vmatprep.subr.mxu0 0.0
    %3390 = vmatpush2.msra.mxu0 0.0
    %3391 = vmatprep.subr.mxu0 0.0
    %3392 = vmatpush2.msra.mxu0 0.0
    %3393 = vmatprep.subr.mxu0 0.0
    %3394 = vmatpush2.msra.mxu0 0.0
    %3395 = vmatprep.subr.mxu0 0.0
    %3396 = vmatpush2.msra.mxu0 0.0
    %3397 = vmatprep.subr.mxu0 0.0
    %3398 = vmatpush2.msra.mxu0 0.0
    %3399 = vmatprep.subr.mxu0 0.0
    %3400 = vmatpush2.msra.mxu0 0.0
    %3401 = vmatprep.subr.mxu0 0.0
    %3402 = vmatpush2.msra.mxu0 0.0
    %3403 = vmatprep.mubr.f32.mxu0 0.0
    %3404 = vmatmul.mubr.f32.gmra.mxu0 %v3168
    %v3405 = vpop.f32.mrf.mxu0
    %v3406 = vadd.f32 0.0, %v3405
    %v3407 = vpop.f32.mrf.mxu0
    %v3408 = vadd.f32 0.0, %v3407
    %3409 = vdwg.mxu0
    %3410 = vmatprep.subr.mxu0 0.0
    %3411 = vmatpush1.msra.mxu0 %v1001
    %3412 = vmatprep.subr.mxu0 0.0
    %3413 = vmatpush1.msra.mxu0 %v998
    %3414 = vmatprep.subr.mxu0 0.0
    %3415 = vmatpush1.msra.mxu0 %v995
    %3416 = vmatprep.subr.mxu0 0.0
    %3417 = vmatpush1.msra.mxu0 %v992
    %3418 = vmatprep.subr.mxu0 0.0
    %3419 = vmatpush1.msra.mxu0 %v989
    %3420 = vmatprep.subr.mxu0 0.0
    %3421 = vmatpush1.msra.mxu0 %v986
    %3422 = vmatprep.subr.mxu0 0.0
    %3423 = vmatpush1.msra.mxu0 %v983
    %3424 = vmatprep.subr.mxu0 0.0
    %3425 = vmatpush1.msra.mxu0 %v980
    %3426 = vmatprep.subr.mxu0 0.0
    %3427 = vmatpush1.msra.mxu0 %v977
    %3428 = vmatprep.subr.mxu0 0.0
    %3429 = vmatpush1.msra.mxu0 %v974
    %3430 = vmatprep.subr.mxu0 0.0
    %3431 = vmatpush1.msra.mxu0 %v971
    %3432 = vmatprep.subr.mxu0 0.0
    %3433 = vmatpush1.msra.mxu0 %v968
    %3434 = vmatprep.subr.mxu0 0.0
    %3435 = vmatpush1.msra.mxu0 %v965
    %3436 = vmatprep.subr.mxu0 0.0
    %3437 = vmatpush1.msra.mxu0 %v962
    %3438 = vmatprep.subr.mxu0 0.0
    %3439 = vmatpush1.msra.mxu0 %v959
    %3440 = vmatprep.subr.mxu0 0.0
    %3441 = vmatpush1.msra.mxu0 %v956
    %3442 = vmatprep.subr.mxu0 0.0
    %3443 = vmatpush2.msra.mxu0 0.0
    %3444 = vmatprep.subr.mxu0 0.0
    %3445 = vmatpush2.msra.mxu0 0.0
    %3446 = vmatprep.subr.mxu0 0.0
    %3447 = vmatpush2.msra.mxu0 0.0
    %3448 = vmatprep.subr.mxu0 0.0
    %3449 = vmatpush2.msra.mxu0 0.0
    %3450 = vmatprep.subr.mxu0 0.0
    %3451 = vmatpush2.msra.mxu0 0.0
    %3452 = vmatprep.subr.mxu0 0.0
    %3453 = vmatpush2.msra.mxu0 0.0
    %3454 = vmatprep.subr.mxu0 0.0
    %3455 = vmatpush2.msra.mxu0 0.0
    %3456 = vmatprep.subr.mxu0 0.0
    %3457 = vmatpush2.msra.mxu0 0.0
    %3458 = vmatprep.subr.mxu0 0.0
    %3459 = vmatpush2.msra.mxu0 0.0
    %3460 = vmatprep.subr.mxu0 0.0
    %3461 = vmatpush2.msra.mxu0 0.0
    %3462 = vmatprep.subr.mxu0 0.0
    %3463 = vmatpush2.msra.mxu0 0.0
    %3464 = vmatprep.subr.mxu0 0.0
    %3465 = vmatpush2.msra.mxu0 0.0
    %3466 = vmatprep.subr.mxu0 0.0
    %3467 = vmatpush2.msra.mxu0 0.0
    %3468 = vmatprep.subr.mxu0 0.0
    %3469 = vmatpush2.msra.mxu0 0.0
    %3470 = vmatprep.subr.mxu0 0.0
    %3471 = vmatpush2.msra.mxu0 0.0
    %3472 = vmatprep.subr.mxu0 0.0
    %3473 = vmatpush2.msra.mxu0 0.0
    %3474 = vmatprep.mubr.f32.mxu0 0.0
    %3475 = vmatmul.mubr.f32.gmra.mxu0 %v3168
    %v3476 = vpop.f32.mrf.mxu0
    %v3477 = vadd.f32 0.0, %v3476
    %v3478 = vpop.f32.mrf.mxu0
    %3479 = vdwg.mxu0
    %v3480 = vadd.f32 %v3336, %v3406
    %v3481 = vxor.u32 %v3480, 2147483648
    %v3482 = vmul.f32 %v3481, 1.442695
    %v3483 = vpow.pop %v3482
    %v3484 = vadd.f32 %v3483, 1.0
    %v3485 = vrcp.pop %v3484
    %v3486 = vmul.f32 1.0, %v3485
    %v3487 = vadd.f32 %v3337, %v3408
    %v3488 = vxor.u32 %v3487, 2147483648
    %v3489 = vmul.f32 %v3488, 1.442695
    %v3490 = vpow.pop %v3489
    %v3491 = vadd.f32 %v3490, 1.0
    %v3492 = vrcp.pop %v3491
    %v3493 = vmul.f32 1.0, %v3492
    %v3494 = vadd.f32 %v3477, %v733
    %v3495 = vmul.f32 %v3486, %v3494
    %v3496 = vadd.f32 %v3338, %v3495
    %v3497 = vtanh.pop %v3496
    %v3498 = vsub.f32 1.0, %v3493
    %v3499 = vmul.f32 %v3498, %v3497
    %v3500 = vmul.f32 %v3493, %v3168
    %v3501 = vadd.f32 %v3499, %v3500
    %v3502 = vld [vmem:[#allocation11] sm:$0xff]
    %v3503 = vld [vmem:[#allocation11 + $0x8] sm:$0xff]
    %v3504 = vld [vmem:[#allocation11 + $0x10] sm:$0xff]
    %v3505 = vld [vmem:[#allocation11 + $0x18] sm:$0xff]
    %v3506 = vld [vmem:[#allocation11 + $0x20] sm:$0xff]
    %v3507 = vld [vmem:[#allocation11 + $0x28] sm:$0xff]
    %v3508 = vld [vmem:[#allocation11 + $0x30] sm:$0xff]
    %v3509 = vld [vmem:[#allocation11 + $0x38] sm:$0xff]
    %v3510 = vld [vmem:[#allocation11 + $0x40] sm:$0xff]
    %v3511 = vld [vmem:[#allocation11 + $0x48] sm:$0xff]
    %v3512 = vld [vmem:[#allocation11 + $0x50] sm:$0xff]
    %v3513 = vld [vmem:[#allocation11 + $0x58] sm:$0xff]
    %v3514 = vld [vmem:[#allocation11 + $0x60] sm:$0xff]
    %v3515 = vld [vmem:[#allocation11 + $0x68] sm:$0xff]
    %v3516 = vld [vmem:[#allocation11 + $0x70] sm:$0xff]
    %v3517 = vld [vmem:[#allocation11 + $0x78] sm:$0xff]
    %s3518 = scalar_lea.vmem [#allocation11], 128
    %v3519 = vld [vmem:[%s3518] sm:$0xff]
    %v3520 = vld [vmem:[%s3518 + $0x8] sm:$0xff]
    %v3521 = vld [vmem:[%s3518 + $0x10] sm:$0xff]
    %v3522 = vld [vmem:[%s3518 + $0x18] sm:$0xff]
    %v3523 = vld [vmem:[%s3518 + $0x20] sm:$0xff]
    %v3524 = vld [vmem:[%s3518 + $0x28] sm:$0xff]
    %v3525 = vld [vmem:[%s3518 + $0x30] sm:$0xff]
    %v3526 = vld [vmem:[%s3518 + $0x38] sm:$0xff]
    %v3527 = vld [vmem:[%s3518 + $0x40] sm:$0xff]
    %v3528 = vld [vmem:[%s3518 + $0x48] sm:$0xff]
    %v3529 = vld [vmem:[%s3518 + $0x50] sm:$0xff]
    %v3530 = vld [vmem:[%s3518 + $0x58] sm:$0xff]
    %v3531 = vld [vmem:[%s3518 + $0x60] sm:$0xff]
    %v3532 = vld [vmem:[%s3518 + $0x68] sm:$0xff]
    %v3533 = vld [vmem:[%s3518 + $0x70] sm:$0xff]
    %v3534 = vld [vmem:[%s3518 + $0x78] sm:$0xff]
    %3535 = vmatprep.subr.mxu0 0.0
    %3536 = vmatpush1.msra.mxu0 %v3534
    %3537 = vmatprep.subr.mxu0 0.0
    %3538 = vmatpush1.msra.mxu0 %v3533
    %3539 = vmatprep.subr.mxu0 0.0
    %3540 = vmatpush1.msra.mxu0 %v3532
    %3541 = vmatprep.subr.mxu0 0.0
    %3542 = vmatpush1.msra.mxu0 %v3531
    %3543 = vmatprep.subr.mxu0 0.0
    %3544 = vmatpush1.msra.mxu0 %v3530
    %3545 = vmatprep.subr.mxu0 0.0
    %3546 = vmatpush1.msra.mxu0 %v3529
    %3547 = vmatprep.subr.mxu0 0.0
    %3548 = vmatpush1.msra.mxu0 %v3528
    %3549 = vmatprep.subr.mxu0 0.0
    %3550 = vmatpush1.msra.mxu0 %v3527
    %3551 = vmatprep.subr.mxu0 0.0
    %3552 = vmatpush1.msra.mxu0 %v3526
    %3553 = vmatprep.subr.mxu0 0.0
    %3554 = vmatpush1.msra.mxu0 %v3525
    %3555 = vmatprep.subr.mxu0 0.0
    %3556 = vmatpush1.msra.mxu0 %v3524
    %3557 = vmatprep.subr.mxu0 0.0
    %3558 = vmatpush1.msra.mxu0 %v3523
    %3559 = vmatprep.subr.mxu0 0.0
    %3560 = vmatpush1.msra.mxu0 %v3522
    %3561 = vmatprep.subr.mxu0 0.0
    %3562 = vmatpush1.msra.mxu0 %v3521
    %3563 = vmatprep.subr.mxu0 0.0
    %3564 = vmatpush1.msra.mxu0 %v3520
    %3565 = vmatprep.subr.mxu0 0.0
    %3566 = vmatpush1.msra.mxu0 %v3519
    %3567 = vmatprep.subr.mxu0 0.0
    %3568 = vmatpush2.msra.mxu0 0.0
    %3569 = vmatprep.subr.mxu0 0.0
    %3570 = vmatpush2.msra.mxu0 0.0
    %3571 = vmatprep.subr.mxu0 0.0
    %3572 = vmatpush2.msra.mxu0 0.0
    %3573 = vmatprep.subr.mxu0 0.0
    %3574 = vmatpush2.msra.mxu0 0.0
    %3575 = vmatprep.subr.mxu0 0.0
    %3576 = vmatpush2.msra.mxu0 0.0
    %3577 = vmatprep.subr.mxu0 0.0
    %3578 = vmatpush2.msra.mxu0 0.0
    %3579 = vmatprep.subr.mxu0 0.0
    %3580 = vmatpush2.msra.mxu0 0.0
    %3581 = vmatprep.subr.mxu0 0.0
    %3582 = vmatpush2.msra.mxu0 0.0
    %3583 = vmatprep.subr.mxu0 0.0
    %3584 = vmatpush2.msra.mxu0 0.0
    %3585 = vmatprep.subr.mxu0 0.0
    %3586 = vmatpush2.msra.mxu0 0.0
    %3587 = vmatprep.subr.mxu0 0.0
    %3588 = vmatpush2.msra.mxu0 0.0
    %3589 = vmatprep.subr.mxu0 0.0
    %3590 = vmatpush2.msra.mxu0 0.0
    %3591 = vmatprep.subr.mxu0 0.0
    %3592 = vmatpush2.msra.mxu0 0.0
    %3593 = vmatprep.subr.mxu0 0.0
    %3594 = vmatpush2.msra.mxu0 0.0
    %3595 = vmatprep.subr.mxu0 0.0
    %3596 = vmatpush2.msra.mxu0 0.0
    %3597 = vmatprep.subr.mxu0 0.0
    %3598 = vmatpush2.msra.mxu0 0.0
    %3599 = vmatprep.mubr.f32.mxu0 0.0
    %3600 = vmatmul.mubr.f32.gmra.mxu0 %v3501
    %v3601 = vpop.f32.mrf.mxu0
    %v3602 = vadd.f32 0.0, %v3601
    %v3603 = vpop.f32.mrf.mxu0
    %3604 = vdwg.mxu0
    %3605 = vmatprep.subr.mxu0 0.0
    %3606 = vmatpush1.msra.mxu0 %v3517
    %3607 = vmatprep.subr.mxu0 0.0
    %3608 = vmatpush1.msra.mxu0 %v3516
    %3609 = vmatprep.subr.mxu0 0.0
    %3610 = vmatpush1.msra.mxu0 %v3515
    %3611 = vmatprep.subr.mxu0 0.0
    %3612 = vmatpush1.msra.mxu0 %v3514
    %3613 = vmatprep.subr.mxu0 0.0
    %3614 = vmatpush1.msra.mxu0 %v3513
    %3615 = vmatprep.subr.mxu0 0.0
    %3616 = vmatpush1.msra.mxu0 %v3512
    %3617 = vmatprep.subr.mxu0 0.0
    %3618 = vmatpush1.msra.mxu0 %v3511
    %3619 = vmatprep.subr.mxu0 0.0
    %3620 = vmatpush1.msra.mxu0 %v3510
    %3621 = vmatprep.subr.mxu0 0.0
    %3622 = vmatpush1.msra.mxu0 %v3509
    %3623 = vmatprep.subr.mxu0 0.0
    %3624 = vmatpush1.msra.mxu0 %v3508
    %3625 = vmatprep.subr.mxu0 0.0
    %3626 = vmatpush1.msra.mxu0 %v3507
    %3627 = vmatprep.subr.mxu0 0.0
    %3628 = vmatpush1.msra.mxu0 %v3506
    %3629 = vmatprep.subr.mxu0 0.0
    %3630 = vmatpush1.msra.mxu0 %v3505
    %3631 = vmatprep.subr.mxu0 0.0
    %3632 = vmatpush1.msra.mxu0 %v3504
    %3633 = vmatprep.subr.mxu0 0.0
    %3634 = vmatpush1.msra.mxu0 %v3503
    %3635 = vmatprep.subr.mxu0 0.0
    %3636 = vmatpush1.msra.mxu0 %v3502
    %3637 = vmatprep.subr.mxu0 0.0
    %3638 = vmatpush2.msra.mxu0 0.0
    %3639 = vmatprep.subr.mxu0 0.0
    %3640 = vmatpush2.msra.mxu0 0.0
    %3641 = vmatprep.subr.mxu0 0.0
    %3642 = vmatpush2.msra.mxu0 0.0
    %3643 = vmatprep.subr.mxu0 0.0
    %3644 = vmatpush2.msra.mxu0 0.0
    %3645 = vmatprep.subr.mxu0 0.0
    %3646 = vmatpush2.msra.mxu0 0.0
    %3647 = vmatprep.subr.mxu0 0.0
    %3648 = vmatpush2.msra.mxu0 0.0
    %3649 = vmatprep.subr.mxu0 0.0
    %3650 = vmatpush2.msra.mxu0 0.0
    %3651 = vmatprep.subr.mxu0 0.0
    %3652 = vmatpush2.msra.mxu0 0.0
    %3653 = vmatprep.subr.mxu0 0.0
    %3654 = vmatpush2.msra.mxu0 0.0
    %3655 = vmatprep.subr.mxu0 0.0
    %3656 = vmatpush2.msra.mxu0 0.0
    %3657 = vmatprep.subr.mxu0 0.0
    %3658 = vmatpush2.msra.mxu0 0.0
    %3659 = vmatprep.subr.mxu0 0.0
    %3660 = vmatpush2.msra.mxu0 0.0
    %3661 = vmatprep.subr.mxu0 0.0
    %3662 = vmatpush2.msra.mxu0 0.0
    %3663 = vmatprep.subr.mxu0 0.0
    %3664 = vmatpush2.msra.mxu0 0.0
    %3665 = vmatprep.subr.mxu0 0.0
    %3666 = vmatpush2.msra.mxu0 0.0
    %3667 = vmatprep.subr.mxu0 0.0
    %3668 = vmatpush2.msra.mxu0 0.0
    %3669 = vmatprep.mubr.f32.mxu0 0.0
    %3670 = vmatmul.mubr.f32.gmra.mxu0 %v3335
    %v3671 = vpop.f32.mrf.mxu0
    %v3672 = vadd.f32 %v3602, %v3671
    %v3673 = vpop.f32.mrf.mxu0
    %3674 = vdwg.mxu0
    %v3675 = vld [vmem:[%s6] sm:$0x1]
    %v3677 = vlaneseq
    %v3678 = vshrl.u32 %v3677, 7
    %v3679 = vsub.s32 0, %v3678
    %v3680 = vrot.slane %v3675, %v3679
    %v3682 = vadd.f32 %v3672, %v3680
    %3683 = vst [vmem:[#allocation12] sm:$0xff] %v3682
    // Predicated region
    $region50: #{tpu_custom_call.1} parent=1 // pred_check
      _
    $region51: #{tpu_custom_call.1} parent=1 // pred_check_branch
      %3685 = sbr.rel (0) target = $region53
    $region52: #{tpu_custom_call.1} parent=1 // pred_region
      %s3687 = ssub.s32 128, 128
      %3688 = vsyncadd [#allocation5], %s3687
      %s3690 = sshll.u32 [#allocation12], 4
      %s3691 = int_to_ptr.vmem [resolvable:$true] %s3690
      %3693 = dma.vmem_to_hbm [thread:$0]  %s3691, 128, %s7, [#allocation5]
    $region53: #{tpu_custom_call.1} parent=1 // pred_fallthru
      _
    // Predicated region
    $region54: #{tpu_custom_call.1} parent=1 // pred_check
      _
    $region55: #{tpu_custom_call.1} parent=1 // pred_check_branch
      %3695 = sbr.rel (0) target = $region57
    $region56: #{tpu_custom_call.1} parent=1 // pred_region
      %3696 = dma.done [#allocation5], 128
    $region57: #{tpu_custom_call.1} parent=1 // pred_fallthru
      _
    %3697 = vsyncpa [#allocation4], 1
    %3698 = vsyncpa [#allocation7], 1
    %3699 = vsyncpa [#allocation10], 1
    %3700 = vsyncpa [#allocation5], 1

</llo_original>
